<compile_context>
chip_gen: v6e
topology: v6e:2x2x1
jax: 0.10.0
libtpu: 0.0.40
codegen_flags: <defaults>
</compile_context>

<pallas_src>
import functools
import math

import jax
import jax.numpy as jnp
from jax import lax
from jax.experimental import pallas as pl
from jax.experimental.pallas import tpu as pltpu


# ------------------------------ tiling helpers ------------------------------

def _round_up(n, m):
    return ((n + m - 1) // m) * m


def _pick_row_tile(m, max_tile=512):
    """Largest divisor of m (multiple of 16, <= max_tile) keeping >=2 blocks."""
    cap = min(max_tile, m)
    if m >= 32:
        cap = min(cap, m // 2)          # >=2 row blocks -> megacore has work
    for t in range(cap, 15, -1):
        if m % t == 0 and t % 16 == 0:
            return t
    for t in range(cap, 7, -1):         # fallback: multiple-of-8 divisor
        if m % t == 0 and t % 8 == 0:
            return t
    return m


# ---------------------- 1x1 matmul + fused BN stats kernel -------------------

def _mm_stats_epilogue(acc, o_ref, sum_ref, ssq_ref):
    o_ref[...] = acc.astype(o_ref.dtype)
    s = jnp.sum(acc, axis=0, keepdims=True)
    q = jnp.sum(acc * acc, axis=0, keepdims=True)
    # Stats blocks are (8, tn) to satisfy the (8, 128) tiling rule; the same
    # per-block sum is broadcast to all 8 sublane rows and divided out later.
    sum_ref[...] = jnp.broadcast_to(s, sum_ref.shape)
    ssq_ref[...] = jnp.broadcast_to(q, ssq_ref.shape)


def _mm_kernel(a_ref, w_ref, o_ref, sum_ref, ssq_ref):
    acc = jnp.dot(a_ref[...], w_ref[...], preferred_element_type=jnp.float32)
    _mm_stats_epilogue(acc, o_ref, sum_ref, ssq_ref)


def _mm_prologue_bn_kernel(a_ref, w_ref, mean_ref, rstd_ref,
                           o_ref, sum_ref, ssq_ref):
    # BN-apply (+ReLU) of the previous layer fused into this matmul's A load.
    a = a_ref[...].astype(jnp.float32)
    a = jnp.maximum((a - mean_ref[...]) * rstd_ref[...], 0.0)
    acc = jnp.dot(a.astype(jnp.bfloat16), w_ref[...],
                  preferred_element_type=jnp.float32)
    _mm_stats_epilogue(acc, o_ref, sum_ref, ssq_ref)


def conv1x1_bn(a, w, mean=None, rstd=None):
    """A (M,K) bf16 @ W (K,N) bf16 -> (out bf16, per-block sum, sumsq).

    If mean/rstd are given, relu((a - mean) * rstd) is applied to the A tile
    before the matmul (BN-apply of the producer layer fused into the consumer).
    """
    m, k = a.shape
    k2, n = w.shape
    assert k == k2
    assert m % 16 == 0, m     # TODO(synk): row masking for ragged row counts
    tm = _pick_row_tile(m)
    tn = 256 if n % 256 == 0 else (128 if n % 128 == 0 else n)
    grid = (m // tm, n // tn)

    a_spec = pl.BlockSpec((tm, k), lambda i, j: (i, 0))
    w_spec = pl.BlockSpec((k, tn), lambda i, j: (0, j))
    vec_spec = pl.BlockSpec((1, k), lambda i, j: (0, 0))
    o_spec = pl.BlockSpec((tm, tn), lambda i, j: (i, j))
    st_spec = pl.BlockSpec((8, tn), lambda i, j: (i, j))

    if mean is None:
        kernel, in_specs, args = _mm_kernel, [a_spec, w_spec], (a, w)
    else:
        kernel = _mm_prologue_bn_kernel
        in_specs = [a_spec, w_spec, vec_spec, vec_spec]
        args = (a, w, mean, rstd)

    out, sp, sq = pl.pallas_call(
        kernel,
        out_shape=(jax.ShapeDtypeStruct((m, n), jnp.bfloat16),
                   jax.ShapeDtypeStruct((grid[0] * 8, n), jnp.float32),
                   jax.ShapeDtypeStruct((grid[0] * 8, n), jnp.float32)),
        grid_spec=pltpu.PrefetchScalarGridSpec(
            num_scalar_prefetch=0,
            grid=grid,
            in_specs=in_specs,
            out_specs=[o_spec, st_spec, st_spec]),
        compiler_params=pltpu.CompilerParams(
            dimension_semantics=("parallel", "parallel")),
        cost_estimate=pl.CostEstimate(
            flops=2 * m * n * k, transcendentals=0,
            bytes_accessed=2 * m * k + 2 * k * n + 2 * m * n),
    )(*args)
    return out, sp, sq


# --------------------- direct 3x3 conv kernel (no im2col) --------------------

def _conv3x3_kernel(x_ref, rstd_ref, w_ref, o_ref, sum_ref, ssq_ref,
                    *, stride, ho, wo, cin):
    """x_ref: (s*s phases, Hq, Wq, Cin) bf16 holding (conv1_out - mean1), zero
    padded.  Prologue applies *rstd1 + ReLU per tap; 9 shifted matmuls
    accumulate in f32; epilogue writes bf16 rows + bn2 stats partials."""
    rstd = rstd_ref[...]                                   # (1, cin) f32
    cout = o_ref.shape[-1]
    acc = jnp.zeros((ho * wo, cout), jnp.float32)
    for di in range(3):
        for dj in range(3):
            p = (di % stride) * stride + (dj % stride)     # phase plane
            oi, oj = di // stride, dj // stride            # offset in phase
            tap = x_ref[p, oi:oi + ho, oj:oj + wo, :]      # (ho, wo, cin)
            t = tap.astype(jnp.float32).reshape(ho * wo, cin)
            t = jnp.maximum(t * rstd, 0.0).astype(jnp.bfloat16)
            k0 = (di * 3 + dj) * cin
            acc = acc + jnp.dot(t, w_ref[k0:k0 + cin, :],
                                preferred_element_type=jnp.float32)
    _mm_stats_epilogue(acc, o_ref, sum_ref, ssq_ref)


def _make_phases(z, stride):
    """z: (B, H, W, C) -> zero-padded stride-phase stack (B*s*s, Hq, Wq, C)
    so the 3x3 kernel gathers all taps with contiguous in-kernel slices."""
    b, h, w, c = z.shape
    hp, wp = h + 2, w + 2
    hpr, wpr = _round_up(hp, stride), _round_up(wp, stride)
    z = jnp.pad(z, ((0, 0), (1, 1 + hpr - hp), (1, 1 + wpr - wp), (0, 0)))
    if stride == 1:
        return z
    phases = [z[:, pi::stride, pj::stride, :]
              for pi in range(stride) for pj in range(stride)]
    st = jnp.stack(phases, axis=1)                         # (B, s*s, Hq, Wq, C)
    return st.reshape(b * stride * stride, st.shape[2], st.shape[3], c)


def conv3x3_bn(phases, rstd, w_flat, *, batch, stride, ho, wo):
    bs2, hq, wq, c = phases.shape
    s2 = bs2 // batch
    kk, cout = w_flat.shape
    assert kk == 9 * c
    m = batch * ho * wo

    kernel = functools.partial(_conv3x3_kernel, stride=stride,
                               ho=ho, wo=wo, cin=c)
    out, sp, sq = pl.pallas_call(
        kernel,
        out_shape=(jax.ShapeDtypeStruct((m, cout), jnp.bfloat16),
                   jax.ShapeDtypeStruct((batch * 8, cout), jnp.float32),
                   jax.ShapeDtypeStruct((batch * 8, cout), jnp.float32)),
        grid_spec=pltpu.PrefetchScalarGridSpec(
            num_scalar_prefetch=0,
            grid=(batch,),
            in_specs=[pl.BlockSpec((s2, hq, wq, c), lambda i: (i, 0, 0, 0)),
                      pl.BlockSpec((1, c), lambda i: (0, 0)),
                      pl.BlockSpec((9 * c, cout), lambda i: (0, 0))],
            out_specs=[pl.BlockSpec((ho * wo, cout), lambda i: (i, 0)),
                       pl.BlockSpec((8, cout), lambda i: (i, 0)),
                       pl.BlockSpec((8, cout), lambda i: (i, 0))]),
        compiler_params=pltpu.CompilerParams(
            dimension_semantics=("parallel",)),
    )(phases, rstd, w_flat)
    return out, sp, sq


# --------------- fused bn3 + (bn_d) + residual add + ReLU kernel --------------

def _bn_add_relu_kernel(x_ref, mean_ref, rstd_ref, res_ref, o_ref):
    y = (x_ref[...].astype(jnp.float32) - mean_ref[...]) * rstd_ref[...]
    y = y + res_ref[...].astype(jnp.float32)
    o_ref[...] = jnp.maximum(y, 0.0)


def _bn_add_relu_ds_kernel(x_ref, mean_ref, rstd_ref, res_ref,
                           mean_d_ref, rstd_d_ref, o_ref):
    r = (res_ref[...].astype(jnp.float32) - mean_d_ref[...]) * rstd_d_ref[...]
    y = (x_ref[...].astype(jnp.float32) - mean_ref[...]) * rstd_ref[...] + r
    o_ref[...] = jnp.maximum(y, 0.0)


def bn_residual_relu(x, mean, rstd, res, mean_d=None, rstd_d=None):
    m, c = x.shape
    tm = _pick_row_tile(m)
    row = pl.BlockSpec((tm, c), lambda i: (i, 0))
    vec = pl.BlockSpec((1, c), lambda i: (0, 0))
    if mean_d is None:
        kernel, in_specs, args = _bn_add_relu_kernel, [row, vec, vec, row], \
            (x, mean, rstd, res)
    else:
        kernel = _bn_add_relu_ds_kernel
        in_specs = [row, vec, vec, row, vec, vec]
        args = (x, mean, rstd, res, mean_d, rstd_d)
    return pl.pallas_call(
        kernel,
        out_shape=jax.ShapeDtypeStruct((m, c), jnp.float32),
        grid_spec=pltpu.PrefetchScalarGridSpec(
            num_scalar_prefetch=0,
            grid=(m // tm,),
            in_specs=in_specs,
            out_specs=row),
        compiler_params=pltpu.CompilerParams(
            dimension_semantics=("parallel",)),
    )(*args)


# ----------------------------- BN stats finalize ------------------------------

def _finish_stats(sum_p, ssq_p, count, eps=1e-5):
    # Each grid block wrote its sum broadcast over 8 sublane rows -> /8.
    s = jnp.sum(sum_p, axis=0) / 8.0
    q = jnp.sum(ssq_p, axis=0) / 8.0
    mean = s / count
    var = jnp.maximum(q / count - mean * mean, 0.0)
    return mean[None, :], lax.rsqrt(var + eps)[None, :]


# ------------------------------- conv plumbing --------------------------------

def _grouped_to_dense(w, groups=2):
    """Grouped weight (Cout, Cin_g, kh, kw) -> block-diagonal dense weight."""
    cout, cin_g, kh, kw = w.shape
    out_g = cout // groups
    dense = jnp.zeros((cout, cin_g * groups, kh, kw), w.dtype)
    for g in range(groups):
        dense = dense.at[g * out_g:(g + 1) * out_g,
                         g * cin_g:(g + 1) * cin_g].set(
                             w[g * out_g:(g + 1) * out_g])
    return dense


def _flatten_1x1(w_dense):
    cout, cin = w_dense.shape[:2]
    return w_dense.reshape(cout, cin).T                     # (Cin, Cout)


def _flatten_kxk(w_dense):
    cout, cin, kh, kw = w_dense.shape
    # (kh, kw, Cin, Cout): tap-major / channel-minor, matches the kernel's tap loop.
    return jnp.transpose(w_dense, (2, 3, 1, 0)).reshape(kh * kw * cin, cout)


# -------------------------------- parameters ----------------------------------

def _conv_init(key, cout, cin_g, kh, kw):
    std = math.sqrt(2.0 / (kh * kw * cout))
    return std * jax.random.normal(key, (cout, cin_g, kh, kw), jnp.float32)


def build_bottleneck_params(key, inplanes, planes, stride, with_downsample):
    ks = jax.random.split(key, 4)
    raw = {
        'w1': _conv_init(ks[0], planes, inplanes // 2, 1, 1),
        'w2': _conv_init(ks[1], planes, planes // 2, 3, 3),
        'w3': _conv_init(ks[2], planes * 4, planes // 2, 1, 1),
        # Standard ResNet downsample (1x1 conv + BN); groups=2 to match the
        # PyContrast half-ResNet that instantiates this Bottleneck.
        'wd': (_conv_init(ks[3], planes * 4, inplanes // 2, 1, 1)
               if with_downsample else None),
    }
    params = {
        'stride': stride,
        'planes': planes,
        'w1_flat': _flatten_1x1(_grouped_to_dense(raw['w1'])).astype(jnp.bfloat16),
        'w2_flat': _flatten_kxk(_grouped_to_dense(raw['w2'])).astype(jnp.bfloat16),
        'w3_flat': _flatten_1x1(_grouped_to_dense(raw['w3'])).astype(jnp.bfloat16),
    }
    if with_downsample:
        params['wd_flat'] = _flatten_1x1(
            _grouped_to_dense(raw['wd'])).astype(jnp.bfloat16)
    return params, raw


# -------------------------------- forward pass ---------------------------------

def bottleneck_forward(x_nchw, p):
    """Bottleneck.forward: 1x1(g2)->BN->ReLU->3x3(g2,s)->BN->ReLU->1x1(g2)->BN
    (+ optional 1x1(g2)+BN downsample) -> add residual -> ReLU.
    Train-mode BN with PyTorch default init (gamma=1, beta=0)."""
    b, cin, h, w = x_nchw.shape
    s = p['stride']
    planes = p['planes']
    eps = 1e-5

    x_nhwc = jnp.transpose(x_nchw, (0, 2, 3, 1))            # one layout change in
    x_rows32 = x_nhwc.reshape(b * h * w, cin)
    x_rows = x_rows32.astype(jnp.bfloat16)

    # conv1 (1x1, g2); bn1 stats fused in the matmul epilogue.
    out1, sp, sq = conv1x1_bn(x_rows, p['w1_flat'])
    mean1, rstd1 = _finish_stats(sp, sq, b * h * w, eps)

    # conv2 (3x3, stride, pad=1, g2).  bn1-apply is fused: the mean shift is
    # folded into the zero-padded input (z = out1 - mean1), *rstd1 + ReLU run
    # in the kernel prologue; bn2 stats come out of the epilogue.
    ho = (h - 1) // s + 1
    wo = (w - 1) // s + 1
    z = (out1.reshape(b, h, w, planes).astype(jnp.float32)
         - mean1.reshape(1, 1, 1, planes)).astype(jnp.bfloat16)
    phases = _make_phases(z, s)
    out2, sp, sq = conv3x3_bn(phases, rstd1, p['w2_flat'],
                              batch=b, stride=s, ho=ho, wo=wo)
    mean2, rstd2 = _finish_stats(sp, sq, b * ho * wo, eps)

    # conv3 (1x1, g2) with bn2-apply + ReLU fused into its prologue.
    out3, sp, sq = conv1x1_bn(out2, p['w3_flat'], mean=mean2, rstd=rstd2)
    mean3, rstd3 = _finish_stats(sp, sq, b * ho * wo, eps)

    # residual branch
    if 'wd_flat' in p:
        x_ds = x_nhwc[:, ::s, ::s, :].reshape(b * ho * wo, cin).astype(jnp.bfloat16)
        res, sp, sq = conv1x1_bn(x_ds, p['wd_flat'])
        mean_d, rstd_d = _finish_stats(sp, sq, b * ho * wo, eps)
        out = bn_residual_relu(out3, mean3, rstd3, res, mean_d, rstd_d)
    else:
        out = bn_residual_relu(out3, mean3, rstd3, x_rows32)

    out = out.reshape(b, ho, wo, planes * 4)
    return jnp.transpose(out, (0, 3, 1, 2))                  # back to NCHW


# ------------------------------ pure-XLA reference -----------------------------

def bottleneck_reference(x, raw, stride, eps=1e-5):
    """f32 reference with PyTorch Bottleneck semantics (train-mode BN, gamma=1/beta=0)."""
    def conv(inp, wgt, st, pad):
        return lax.conv_general_dilated(
            inp, wgt, window_strides=(st, st), padding=((pad, pad), (pad, pad)),
            dimension_numbers=('NCHW', 'OIHW', 'NCHW'), feature_group_count=2)

    def bn(inp, relu):
        mean = jnp.mean(inp, axis=(0, 2, 3), keepdims=True)
        var = jnp.mean(jnp.square(inp - mean), axis=(0, 2, 3), keepdims=True)
        y = (inp - mean) * lax.rsqrt(var + eps)
        return jnp.maximum(y, 0.0) if relu else y

    out = bn(conv(x, raw['w1'], 1, 0), True)
    out = bn(conv(out, raw['w2'], stride, 1), True)
    out = bn(conv(out, raw['w3'], 1, 0), False)
    res = x if raw['wd'] is None else bn(conv(x, raw['wd'], stride, 0), False)
    return jnp.maximum(out + res, 0.0)


# ------------------------------------ main --------------------------------------

def _check(out, ref, name):
    assert out.shape == ref.shape, (name, out.shape, ref.shape)
    assert bool(jnp.all(jnp.isfinite(out))), name
    rel = float(jnp.linalg.norm(out - ref) / (jnp.linalg.norm(ref) + 1e-12))
    mx = float(jnp.max(jnp.abs(out - ref)))
    # The Pallas path stores all intermediate activations in bf16 and feeds the
    # MXU bf16 inputs (f32 accumulation); the reference is pure f32, hence the
    # loose-but-meaningful tolerance.
    assert rel < 0.08 and mx < 0.5, (name, rel, mx)


if __name__ == "__main__":
    root = jax.random.PRNGKey(0)
    kx1, kx2, kp1, kp2 = jax.random.split(root, 4)
    b, h, w = 2, 16, 16

    # Case 1: stage-entry block -- stride 2 with conv+BN downsample.
    inplanes, planes, stride = 128, 64, 2
    x1 = jax.random.normal(kx1, (b, inplanes, h, w), jnp.float32)
    p1, raw1 = build_bottleneck_params(kp1, inplanes, planes, stride, True)
    y1 = jax.block_until_ready(jax.jit(lambda v: bottleneck_forward(v, p1))(x1))
    assert y1.shape == (b, planes * 4, h // 2, w // 2), y1.shape
    _check(y1, bottleneck_reference(x1, raw1, stride), "downsample")

    # Case 2: identity-residual block -- stride 1, inplanes == planes*4.
    inplanes, planes, stride = 256, 64, 1
    x2 = jax.random.normal(kx2, (b, inplanes, h, w), jnp.float32)
    p2, raw2 = build_bottleneck_params(kp2, inplanes, planes, stride, False)
    y2 = jax.block_until_ready(jax.jit(lambda v: bottleneck_forward(v, p2))(x2))
    assert y2.shape == (b, planes * 4, h, w), y2.shape
    _check(y2, bottleneck_reference(x2, raw2, stride), "identity")

    print("KERNEL_OK")
</pallas_src>

<mosaic_0001>
module attributes {stable_mosaic.version = 11 : i64} {
  func.func @_mm_kernel(%arg0: i32, %arg1: i32, %arg2: memref<256x128xbf16, #tpu.memory_space<vmem>>, %arg3: memref<128x64xbf16, #tpu.memory_space<vmem>>, %arg4: memref<256x64xbf16, #tpu.memory_space<vmem>>, %arg5: memref<8x64xf32, #tpu.memory_space<vmem>>, %arg6: memref<8x64xf32, #tpu.memory_space<vmem>>) attributes {dimension_semantics = [#tpu.dimension_semantics<parallel>, #tpu.dimension_semantics<parallel>], iteration_bounds = array<i64: 2, 1>, scalar_prefetch = 0 : i64, scratch_operands = 0 : i64, tpu.core_type = #tpu.core_type<tc>, window_params = [{transform_indices = @transform_0, window_bounds = array<i64: 256, 128>}, {transform_indices = @transform_1, window_bounds = array<i64: 128, 64>}, {transform_indices = @transform_2, window_bounds = array<i64: 256, 64>}, {transform_indices = @transform_3, window_bounds = array<i64: 8, 64>}, {transform_indices = @transform_4, window_bounds = array<i64: 8, 64>}]} {
    %c0 = arith.constant 0 : index
    %c0_0 = arith.constant 0 : index
    %0 = vector.load %arg2[%c0, %c0_0] : memref<256x128xbf16, #tpu.memory_space<vmem>>, vector<256x128xbf16>
    %c0_1 = arith.constant 0 : index
    %c0_2 = arith.constant 0 : index
    %1 = vector.load %arg3[%c0_1, %c0_2] : memref<128x64xbf16, #tpu.memory_space<vmem>>, vector<128x64xbf16>
    %cst = arith.constant dense<0.000000e+00> : vector<256x64xf32>
    %2 = tpu.matmul %0, %1, %cst {dimension_numbers = #tpu.dot_dimension_numbers<[1], [0], [0], [1], [0, 0, 1, 1], [], []>} : vector<256x128xbf16>, vector<128x64xbf16>, vector<256x64xf32> -> vector<256x64xf32>
    %3 = arith.truncf %2 : vector<256x64xf32> to vector<256x64xbf16>
    %c0_3 = arith.constant 0 : index
    %c0_4 = arith.constant 0 : index
    %4 = vector.load %arg4[%c0_3, %c0_4] : memref<256x64xbf16, #tpu.memory_space<vmem>>, vector<256x64xbf16>
    tpu.vector_store %arg4[%c0_3, %c0_4], %3 {strides = array<i32>} : memref<256x64xbf16, #tpu.memory_space<vmem>>, vector<256x64xbf16>,
    %cst_5 = arith.constant dense<0.000000e+00> : vector<64xf32>
    %5 = vector.multi_reduction <add>, %2, %cst_5 [0] : vector<256x64xf32> to vector<64xf32>
    %6 = vector.shape_cast %5 : vector<64xf32> to vector<1x64xf32>
    %7 = arith.mulf %2, %2 : vector<256x64xf32>
    %cst_6 = arith.constant dense<0.000000e+00> : vector<64xf32>
    %8 = vector.multi_reduction <add>, %7, %cst_6 [0] : vector<256x64xf32> to vector<64xf32>
    %9 = vector.shape_cast %8 : vector<64xf32> to vector<1x64xf32>
    %10 = vector.shape_cast %6 : vector<1x64xf32> to vector<1x64xf32>
    %11 = vector.broadcast %10 : vector<1x64xf32> to vector<8x64xf32>
    %c0_7 = arith.constant 0 : index
    %c0_8 = arith.constant 0 : index
    %12 = vector.load %arg5[%c0_7, %c0_8] : memref<8x64xf32, #tpu.memory_space<vmem>>, vector<8x64xf32>
    tpu.vector_store %arg5[%c0_7, %c0_8], %11 {strides = array<i32>} : memref<8x64xf32, #tpu.memory_space<vmem>>, vector<8x64xf32>,
    %13 = vector.shape_cast %9 : vector<1x64xf32> to vector<1x64xf32>
    %14 = vector.broadcast %13 : vector<1x64xf32> to vector<8x64xf32>
    %c0_9 = arith.constant 0 : index
    %c0_10 = arith.constant 0 : index
    %15 = vector.load %arg6[%c0_9, %c0_10] : memref<8x64xf32, #tpu.memory_space<vmem>>, vector<8x64xf32>
    tpu.vector_store %arg6[%c0_9, %c0_10], %14 {strides = array<i32>} : memref<8x64xf32, #tpu.memory_space<vmem>>, vector<8x64xf32>,
    return
  }
  func.func @transform_0(%arg0: i32, %arg1: i32) -> (i32, i32) {
    %c0_i32 = arith.constant 0 : i32
    %c0_i32_0 = arith.constant 0 : i32
    return %arg0, %c0_i32 : i32, i32
  }
  func.func @transform_1(%arg0: i32, %arg1: i32) -> (i32, i32) {
    %c0_i32 = arith.constant 0 : i32
    %c0_i32_0 = arith.constant 0 : i32
    return %c0_i32, %arg1 : i32, i32
  }
  func.func @transform_2(%arg0: i32, %arg1: i32) -> (i32, i32) {
    %c0_i32 = arith.constant 0 : i32
    return %arg0, %arg1 : i32, i32
  }
  func.func @transform_3(%arg0: i32, %arg1: i32) -> (i32, i32) {
    %c0_i32 = arith.constant 0 : i32
    return %arg0, %arg1 : i32, i32
  }
  func.func @transform_4(%arg0: i32, %arg1: i32) -> (i32, i32) {
    %c0_i32 = arith.constant 0 : i32
    return %arg0, %arg1 : i32, i32
  }
}

module attributes {stable_mosaic.version = 11 : i64} {
  func.func @_mm_prologue_bn_kernel(%arg0: i32, %arg1: i32, %arg2: memref<64x64xbf16, #tpu.memory_space<vmem>>, %arg3: memref<64x256xbf16, #tpu.memory_space<vmem>>, %arg4: memref<1x64xf32, #tpu.memory_space<vmem>>, %arg5: memref<1x64xf32, #tpu.memory_space<vmem>>, %arg6: memref<64x256xbf16, #tpu.memory_space<vmem>>, %arg7: memref<8x256xf32, #tpu.memory_space<vmem>>, %arg8: memref<8x256xf32, #tpu.memory_space<vmem>>) attributes {dimension_semantics = [#tpu.dimension_semantics<parallel>, #tpu.dimension_semantics<parallel>], iteration_bounds = array<i64: 2, 1>, scalar_prefetch = 0 : i64, scratch_operands = 0 : i64, tpu.core_type = #tpu.core_type<tc>, window_params = [{transform_indices = @transform_0, window_bounds = array<i64: 64, 64>}, {transform_indices = @transform_1, window_bounds = array<i64: 64, 256>}, {pipeline_mode = #tpu.pipeline_mode<synchronous>, transform_indices = @transform_2, window_bounds = array<i64: 1, 64>}, {pipeline_mode = #tpu.pipeline_mode<synchronous>, transform_indices = @transform_3, window_bounds = array<i64: 1, 64>}, {transform_indices = @transform_4, window_bounds = array<i64: 64, 256>}, {transform_indices = @transform_5, window_bounds = array<i64: 8, 256>}, {transform_indices = @transform_6, window_bounds = array<i64: 8, 256>}]} {
    %c0 = arith.constant 0 : index
    %c0_0 = arith.constant 0 : index
    %0 = vector.load %arg2[%c0, %c0_0] : memref<64x64xbf16, #tpu.memory_space<vmem>>, vector<64x64xbf16>
    %1 = arith.extf %0 : vector<64x64xbf16> to vector<64x64xf32>
    %c0_1 = arith.constant 0 : index
    %c0_2 = arith.constant 0 : index
    %2 = vector.load %arg4[%c0_1, %c0_2] : memref<1x64xf32, #tpu.memory_space<vmem>>, vector<1x64xf32>
    %3 = vector.broadcast %2 : vector<1x64xf32> to vector<64x64xf32>
    %4 = arith.subf %1, %3 : vector<64x64xf32>
    %c0_3 = arith.constant 0 : index
    %c0_4 = arith.constant 0 : index
    %5 = vector.load %arg5[%c0_3, %c0_4] : memref<1x64xf32, #tpu.memory_space<vmem>>, vector<1x64xf32>
    %6 = vector.broadcast %5 : vector<1x64xf32> to vector<64x64xf32>
    %7 = arith.mulf %4, %6 : vector<64x64xf32>
    %cst = arith.constant 0.000000e+00 : f32
    %8 = vector.broadcast %cst : f32 to vector<64x64xf32>
    %9 = arith.maximumf %7, %8 : vector<64x64xf32>
    %10 = arith.truncf %9 : vector<64x64xf32> to vector<64x64xbf16>
    %c0_5 = arith.constant 0 : index
    %c0_6 = arith.constant 0 : index
    %11 = vector.load %arg3[%c0_5, %c0_6] : memref<64x256xbf16, #tpu.memory_space<vmem>>, vector<64x256xbf16>
    %cst_7 = arith.constant dense<0.000000e+00> : vector<64x256xf32>
    %12 = tpu.matmul %10, %11, %cst_7 {dimension_numbers = #tpu.dot_dimension_numbers<[1], [0], [0], [1], [0, 0, 1, 1], [], []>} : vector<64x64xbf16>, vector<64x256xbf16>, vector<64x256xf32> -> vector<64x256xf32>
    %13 = arith.truncf %12 : vector<64x256xf32> to vector<64x256xbf16>
    %c0_8 = arith.constant 0 : index
    %c0_9 = arith.constant 0 : index
    %14 = vector.load %arg6[%c0_8, %c0_9] : memref<64x256xbf16, #tpu.memory_space<vmem>>, vector<64x256xbf16>
    tpu.vector_store %arg6[%c0_8, %c0_9], %13 {strides = array<i32>} : memref<64x256xbf16, #tpu.memory_space<vmem>>, vector<64x256xbf16>,
    %cst_10 = arith.constant dense<0.000000e+00> : vector<256xf32>
    %15 = vector.multi_reduction <add>, %12, %cst_10 [0] : vector<64x256xf32> to vector<256xf32>
    %16 = vector.shape_cast %15 : vector<256xf32> to vector<1x256xf32>
    %17 = arith.mulf %12, %12 : vector<64x256xf32>
    %cst_11 = arith.constant dense<0.000000e+00> : vector<256xf32>
    %18 = vector.multi_reduction <add>, %17, %cst_11 [0] : vector<64x256xf32> to vector<256xf32>
    %19 = vector.shape_cast %18 : vector<256xf32> to vector<1x256xf32>
    %20 = vector.shape_cast %16 : vector<1x256xf32> to vector<1x256xf32>
    %21 = vector.broadcast %20 : vector<1x256xf32> to vector<8x256xf32>
    %c0_12 = arith.constant 0 : index
    %c0_13 = arith.constant 0 : index
    %22 = vector.load %arg7[%c0_12, %c0_13] : memref<8x256xf32, #tpu.memory_space<vmem>>, vector<8x256xf32>
    tpu.vector_store %arg7[%c0_12, %c0_13], %21 {strides = array<i32>} : memref<8x256xf32, #tpu.memory_space<vmem>>, vector<8x256xf32>,
    %23 = vector.shape_cast %19 : vector<1x256xf32> to vector<1x256xf32>
    %24 = vector.broadcast %23 : vector<1x256xf32> to vector<8x256xf32>
    %c0_14 = arith.constant 0 : index
    %c0_15 = arith.constant 0 : index
    %25 = vector.load %arg8[%c0_14, %c0_15] : memref<8x256xf32, #tpu.memory_space<vmem>>, vector<8x256xf32>
    tpu.vector_store %arg8[%c0_14, %c0_15], %24 {strides = array<i32>} : memref<8x256xf32, #tpu.memory_space<vmem>>, vector<8x256xf32>,
    return
  }
  func.func @transform_0(%arg0: i32, %arg1: i32) -> (i32, i32) {
    %c0_i32 = arith.constant 0 : i32
    %c0_i32_0 = arith.constant 0 : i32
    return %arg0, %c0_i32 : i32, i32
  }
  func.func @transform_1(%arg0: i32, %arg1: i32) -> (i32, i32) {
    %c0_i32 = arith.constant 0 : i32
    %c0_i32_0 = arith.constant 0 : i32
    return %c0_i32, %arg1 : i32, i32
  }
  func.func @transform_2(%arg0: i32, %arg1: i32) -> (i32, i32) {
    %c0_i32 = arith.constant 0 : i32
    %c0_i32_0 = arith.constant 0 : i32
    %c0_i32_1 = arith.constant 0 : i32
    return %c0_i32, %c0_i32_0 : i32, i32
  }
  func.func @transform_3(%arg0: i32, %arg1: i32) -> (i32, i32) {
    %c0_i32 = arith.constant 0 : i32
    %c0_i32_0 = arith.constant 0 : i32
    %c0_i32_1 = arith.constant 0 : i32
    return %c0_i32, %c0_i32_0 : i32, i32
  }
  func.func @transform_4(%arg0: i32, %arg1: i32) -> (i32, i32) {
    %c0_i32 = arith.constant 0 : i32
    return %arg0, %arg1 : i32, i32
  }
  func.func @transform_5(%arg0: i32, %arg1: i32) -> (i32, i32) {
    %c0_i32 = arith.constant 0 : i32
    return %arg0, %arg1 : i32, i32
  }
  func.func @transform_6(%arg0: i32, %arg1: i32) -> (i32, i32) {
    %c0_i32 = arith.constant 0 : i32
    return %arg0, %arg1 : i32, i32
  }
}

module attributes {stable_mosaic.version = 11 : i64} {
  func.func @_conv3x3_kernel(%arg0: i32, %arg1: memref<4x9x9x64xbf16, #tpu.memory_space<vmem>>, %arg2: memref<1x64xf32, #tpu.memory_space<vmem>>, %arg3: memref<576x64xbf16, #tpu.memory_space<vmem>>, %arg4: memref<64x64xbf16, #tpu.memory_space<vmem>>, %arg5: memref<8x64xf32, #tpu.memory_space<vmem>>, %arg6: memref<8x64xf32, #tpu.memory_space<vmem>>) attributes {dimension_semantics = [#tpu.dimension_semantics<parallel>], iteration_bounds = array<i64: 2>, scalar_prefetch = 0 : i64, scratch_operands = 0 : i64, tpu.core_type = #tpu.core_type<tc>, window_params = [{transform_indices = @transform_0, window_bounds = array<i64: 4, 9, 9, 64>}, {pipeline_mode = #tpu.pipeline_mode<synchronous>, transform_indices = @transform_1, window_bounds = array<i64: 1, 64>}, {pipeline_mode = #tpu.pipeline_mode<synchronous>, transform_indices = @transform_2, window_bounds = array<i64: 576, 64>}, {transform_indices = @transform_3, window_bounds = array<i64: 64, 64>}, {transform_indices = @transform_4, window_bounds = array<i64: 8, 64>}, {transform_indices = @transform_5, window_bounds = array<i64: 8, 64>}]} {
    %c0 = arith.constant 0 : index
    %c0_0 = arith.constant 0 : index
    %0 = vector.load %arg2[%c0, %c0_0] : memref<1x64xf32, #tpu.memory_space<vmem>>, vector<1x64xf32>
    %cst = arith.constant 0.000000e+00 : f32
    %1 = vector.broadcast %cst : f32 to vector<64x64xf32>
    %c0_1 = arith.constant 0 : index
    %c0_2 = arith.constant 0 : index
    %c0_3 = arith.constant 0 : index
    %c0_4 = arith.constant 0 : index
    %2 = vector.load %arg1[%c0_1, %c0_2, %c0_3, %c0_4] : memref<4x9x9x64xbf16, #tpu.memory_space<vmem>>, vector<1x8x8x64xbf16>
    %3 = vector.shape_cast %2 : vector<1x8x8x64xbf16> to vector<8x8x64xbf16>
    %4 = arith.extf %3 : vector<8x8x64xbf16> to vector<8x8x64xf32>
    %5 = vector.shape_cast %4 : vector<8x8x64xf32> to vector<64x64xf32>
    %6 = vector.broadcast %0 : vector<1x64xf32> to vector<64x64xf32>
    %7 = arith.mulf %5, %6 : vector<64x64xf32>
    %cst_5 = arith.constant 0.000000e+00 : f32
    %8 = vector.broadcast %cst_5 : f32 to vector<64x64xf32>
    %9 = arith.maximumf %7, %8 : vector<64x64xf32>
    %10 = arith.truncf %9 : vector<64x64xf32> to vector<64x64xbf16>
    %c0_6 = arith.constant 0 : index
    %c0_7 = arith.constant 0 : index
    %11 = vector.load %arg3[%c0_6, %c0_7] : memref<576x64xbf16, #tpu.memory_space<vmem>>, vector<64x64xbf16>
    %cst_8 = arith.constant dense<0.000000e+00> : vector<64x64xf32>
    %12 = tpu.matmul %10, %11, %cst_8 {dimension_numbers = #tpu.dot_dimension_numbers<[1], [0], [0], [1], [0, 0, 1, 1], [], []>} : vector<64x64xbf16>, vector<64x64xbf16>, vector<64x64xf32> -> vector<64x64xf32>
    %13 = arith.addf %1, %12 : vector<64x64xf32>
    %c1 = arith.constant 1 : index
    %c0_9 = arith.constant 0 : index
    %c0_10 = arith.constant 0 : index
    %c0_11 = arith.constant 0 : index
    %14 = vector.load %arg1[%c1, %c0_9, %c0_10, %c0_11] : memref<4x9x9x64xbf16, #tpu.memory_space<vmem>>, vector<1x8x8x64xbf16>
    %15 = vector.shape_cast %14 : vector<1x8x8x64xbf16> to vector<8x8x64xbf16>
    %16 = arith.extf %15 : vector<8x8x64xbf16> to vector<8x8x64xf32>
    %17 = vector.shape_cast %16 : vector<8x8x64xf32> to vector<64x64xf32>
    %18 = vector.broadcast %0 : vector<1x64xf32> to vector<64x64xf32>
    %19 = arith.mulf %17, %18 : vector<64x64xf32>
    %cst_12 = arith.constant 0.000000e+00 : f32
    %20 = vector.broadcast %cst_12 : f32 to vector<64x64xf32>
    %21 = arith.maximumf %19, %20 : vector<64x64xf32>
    %22 = arith.truncf %21 : vector<64x64xf32> to vector<64x64xbf16>
    %c64 = arith.constant 64 : index
    %c0_13 = arith.constant 0 : index
    %23 = vector.load %arg3[%c64, %c0_13] : memref<576x64xbf16, #tpu.memory_space<vmem>>, vector<64x64xbf16>
    %cst_14 = arith.constant dense<0.000000e+00> : vector<64x64xf32>
    %24 = tpu.matmul %22, %23, %cst_14 {dimension_numbers = #tpu.dot_dimension_numbers<[1], [0], [0], [1], [0, 0, 1, 1], [], []>} : vector<64x64xbf16>, vector<64x64xbf16>, vector<64x64xf32> -> vector<64x64xf32>
    %25 = arith.addf %13, %24 : vector<64x64xf32>
    %c0_15 = arith.constant 0 : index
    %c0_16 = arith.constant 0 : index
    %c1_17 = arith.constant 1 : index
    %c0_18 = arith.constant 0 : index
    %26 = vector.load %arg1[%c0_15, %c0_16, %c1_17, %c0_18] : memref<4x9x9x64xbf16, #tpu.memory_space<vmem>>, vector<1x8x8x64xbf16>
    %27 = vector.shape_cast %26 : vector<1x8x8x64xbf16> to vector<8x8x64xbf16>
    %28 = arith.extf %27 : vector<8x8x64xbf16> to vector<8x8x64xf32>
    %29 = vector.shape_cast %28 : vector<8x8x64xf32> to vector<64x64xf32>
    %30 = vector.broadcast %0 : vector<1x64xf32> to vector<64x64xf32>
    %31 = arith.mulf %29, %30 : vector<64x64xf32>
    %cst_19 = arith.constant 0.000000e+00 : f32
    %32 = vector.broadcast %cst_19 : f32 to vector<64x64xf32>
    %33 = arith.maximumf %31, %32 : vector<64x64xf32>
    %34 = arith.truncf %33 : vector<64x64xf32> to vector<64x64xbf16>
    %c128 = arith.constant 128 : index
    %c0_20 = arith.constant 0 : index
    %35 = vector.load %arg3[%c128, %c0_20] : memref<576x64xbf16, #tpu.memory_space<vmem>>, vector<64x64xbf16>
    %cst_21 = arith.constant dense<0.000000e+00> : vector<64x64xf32>
    %36 = tpu.matmul %34, %35, %cst_21 {dimension_numbers = #tpu.dot_dimension_numbers<[1], [0], [0], [1], [0, 0, 1, 1], [], []>} : vector<64x64xbf16>, vector<64x64xbf16>, vector<64x64xf32> -> vector<64x64xf32>
    %37 = arith.addf %25, %36 : vector<64x64xf32>
    %c2 = arith.constant 2 : index
    %c0_22 = arith.constant 0 : index
    %c0_23 = arith.constant 0 : index
    %c0_24 = arith.constant 0 : index
    %38 = vector.load %arg1[%c2, %c0_22, %c0_23, %c0_24] : memref<4x9x9x64xbf16, #tpu.memory_space<vmem>>, vector<1x8x8x64xbf16>
    %39 = vector.shape_cast %38 : vector<1x8x8x64xbf16> to vector<8x8x64xbf16>
    %40 = arith.extf %39 : vector<8x8x64xbf16> to vector<8x8x64xf32>
    %41 = vector.shape_cast %40 : vector<8x8x64xf32> to vector<64x64xf32>
    %42 = vector.broadcast %0 : vector<1x64xf32> to vector<64x64xf32>
    %43 = arith.mulf %41, %42 : vector<64x64xf32>
    %cst_25 = arith.constant 0.000000e+00 : f32
    %44 = vector.broadcast %cst_25 : f32 to vector<64x64xf32>
    %45 = arith.maximumf %43, %44 : vector<64x64xf32>
    %46 = arith.truncf %45 : vector<64x64xf32> to vector<64x64xbf16>
    %c192 = arith.constant 192 : index
    %c0_26 = arith.constant 0 : index
    %47 = vector.load %arg3[%c192, %c0_26] : memref<576x64xbf16, #tpu.memory_space<vmem>>, vector<64x64xbf16>
    %cst_27 = arith.constant dense<0.000000e+00> : vector<64x64xf32>
    %48 = tpu.matmul %46, %47, %cst_27 {dimension_numbers = #tpu.dot_dimension_numbers<[1], [0], [0], [1], [0, 0, 1, 1], [], []>} : vector<64x64xbf16>, vector<64x64xbf16>, vector<64x64xf32> -> vector<64x64xf32>
    %49 = arith.addf %37, %48 : vector<64x64xf32>
    %c3 = arith.constant 3 : index
    %c0_28 = arith.constant 0 : index
    %c0_29 = arith.constant 0 : index
    %c0_30 = arith.constant 0 : index
    %50 = vector.load %arg1[%c3, %c0_28, %c0_29, %c0_30] : memref<4x9x9x64xbf16, #tpu.memory_space<vmem>>, vector<1x8x8x64xbf16>
    %51 = vector.shape_cast %50 : vector<1x8x8x64xbf16> to vector<8x8x64xbf16>
    %52 = arith.extf %51 : vector<8x8x64xbf16> to vector<8x8x64xf32>
    %53 = vector.shape_cast %52 : vector<8x8x64xf32> to vector<64x64xf32>
    %54 = vector.broadcast %0 : vector<1x64xf32> to vector<64x64xf32>
    %55 = arith.mulf %53, %54 : vector<64x64xf32>
    %cst_31 = arith.constant 0.000000e+00 : f32
    %56 = vector.broadcast %cst_31 : f32 to vector<64x64xf32>
    %57 = arith.maximumf %55, %56 : vector<64x64xf32>
    %58 = arith.truncf %57 : vector<64x64xf32> to vector<64x64xbf16>
    %c256 = arith.constant 256 : index
    %c0_32 = arith.constant 0 : index
    %59 = vector.load %arg3[%c256, %c0_32] : memref<576x64xbf16, #tpu.memory_space<vmem>>, vector<64x64xbf16>
    %cst_33 = arith.constant dense<0.000000e+00> : vector<64x64xf32>
    %60 = tpu.matmul %58, %59, %cst_33 {dimension_numbers = #tpu.dot_dimension_numbers<[1], [0], [0], [1], [0, 0, 1, 1], [], []>} : vector<64x64xbf16>, vector<64x64xbf16>, vector<64x64xf32> -> vector<64x64xf32>
    %61 = arith.addf %49, %60 : vector<64x64xf32>
    %c2_34 = arith.constant 2 : index
    %c0_35 = arith.constant 0 : index
    %c1_36 = arith.constant 1 : index
    %c0_37 = arith.constant 0 : index
    %62 = vector.load %arg1[%c2_34, %c0_35, %c1_36, %c0_37] : memref<4x9x9x64xbf16, #tpu.memory_space<vmem>>, vector<1x8x8x64xbf16>
    %63 = vector.shape_cast %62 : vector<1x8x8x64xbf16> to vector<8x8x64xbf16>
    %64 = arith.extf %63 : vector<8x8x64xbf16> to vector<8x8x64xf32>
    %65 = vector.shape_cast %64 : vector<8x8x64xf32> to vector<64x64xf32>
    %66 = vector.broadcast %0 : vector<1x64xf32> to vector<64x64xf32>
    %67 = arith.mulf %65, %66 : vector<64x64xf32>
    %cst_38 = arith.constant 0.000000e+00 : f32
    %68 = vector.broadcast %cst_38 : f32 to vector<64x64xf32>
    %69 = arith.maximumf %67, %68 : vector<64x64xf32>
    %70 = arith.truncf %69 : vector<64x64xf32> to vector<64x64xbf16>
    %c320 = arith.constant 320 : index
    %c0_39 = arith.constant 0 : index
    %71 = vector.load %arg3[%c320, %c0_39] : memref<576x64xbf16, #tpu.memory_space<vmem>>, vector<64x64xbf16>
    %cst_40 = arith.constant dense<0.000000e+00> : vector<64x64xf32>
    %72 = tpu.matmul %70, %71, %cst_40 {dimension_numbers = #tpu.dot_dimension_numbers<[1], [0], [0], [1], [0, 0, 1, 1], [], []>} : vector<64x64xbf16>, vector<64x64xbf16>, vector<64x64xf32> -> vector<64x64xf32>
    %73 = arith.addf %61, %72 : vector<64x64xf32>
    %c0_41 = arith.constant 0 : index
    %c1_42 = arith.constant 1 : index
    %c0_43 = arith.constant 0 : index
    %c0_44 = arith.constant 0 : index
    %74 = vector.load %arg1[%c0_41, %c1_42, %c0_43, %c0_44] : memref<4x9x9x64xbf16, #tpu.memory_space<vmem>>, vector<1x8x8x64xbf16>
    %75 = vector.shape_cast %74 : vector<1x8x8x64xbf16> to vector<8x8x64xbf16>
    %76 = arith.extf %75 : vector<8x8x64xbf16> to vector<8x8x64xf32>
    %77 = vector.shape_cast %76 : vector<8x8x64xf32> to vector<64x64xf32>
    %78 = vector.broadcast %0 : vector<1x64xf32> to vector<64x64xf32>
    %79 = arith.mulf %77, %78 : vector<64x64xf32>
    %cst_45 = arith.constant 0.000000e+00 : f32
    %80 = vector.broadcast %cst_45 : f32 to vector<64x64xf32>
    %81 = arith.maximumf %79, %80 : vector<64x64xf32>
    %82 = arith.truncf %81 : vector<64x64xf32> to vector<64x64xbf16>
    %c384 = arith.constant 384 : index
    %c0_46 = arith.constant 0 : index
    %83 = vector.load %arg3[%c384, %c0_46] : memref<576x64xbf16, #tpu.memory_space<vmem>>, vector<64x64xbf16>
    %cst_47 = arith.constant dense<0.000000e+00> : vector<64x64xf32>
    %84 = tpu.matmul %82, %83, %cst_47 {dimension_numbers = #tpu.dot_dimension_numbers<[1], [0], [0], [1], [0, 0, 1, 1], [], []>} : vector<64x64xbf16>, vector<64x64xbf16>, vector<64x64xf32> -> vector<64x64xf32>
    %85 = arith.addf %73, %84 : vector<64x64xf32>
    %c1_48 = arith.constant 1 : index
    %c1_49 = arith.constant 1 : index
    %c0_50 = arith.constant 0 : index
    %c0_51 = arith.constant 0 : index
    %86 = vector.load %arg1[%c1_48, %c1_49, %c0_50, %c0_51] : memref<4x9x9x64xbf16, #tpu.memory_space<vmem>>, vector<1x8x8x64xbf16>
    %87 = vector.shape_cast %86 : vector<1x8x8x64xbf16> to vector<8x8x64xbf16>
    %88 = arith.extf %87 : vector<8x8x64xbf16> to vector<8x8x64xf32>
    %89 = vector.shape_cast %88 : vector<8x8x64xf32> to vector<64x64xf32>
    %90 = vector.broadcast %0 : vector<1x64xf32> to vector<64x64xf32>
    %91 = arith.mulf %89, %90 : vector<64x64xf32>
    %cst_52 = arith.constant 0.000000e+00 : f32
    %92 = vector.broadcast %cst_52 : f32 to vector<64x64xf32>
    %93 = arith.maximumf %91, %92 : vector<64x64xf32>
    %94 = arith.truncf %93 : vector<64x64xf32> to vector<64x64xbf16>
    %c448 = arith.constant 448 : index
    %c0_53 = arith.constant 0 : index
    %95 = vector.load %arg3[%c448, %c0_53] : memref<576x64xbf16, #tpu.memory_space<vmem>>, vector<64x64xbf16>
    %cst_54 = arith.constant dense<0.000000e+00> : vector<64x64xf32>
    %96 = tpu.matmul %94, %95, %cst_54 {dimension_numbers = #tpu.dot_dimension_numbers<[1], [0], [0], [1], [0, 0, 1, 1], [], []>} : vector<64x64xbf16>, vector<64x64xbf16>, vector<64x64xf32> -> vector<64x64xf32>
    %97 = arith.addf %85, %96 : vector<64x64xf32>
    %c0_55 = arith.constant 0 : index
    %c1_56 = arith.constant 1 : index
    %c1_57 = arith.constant 1 : index
    %c0_58 = arith.constant 0 : index
    %98 = vector.load %arg1[%c0_55, %c1_56, %c1_57, %c0_58] : memref<4x9x9x64xbf16, #tpu.memory_space<vmem>>, vector<1x8x8x64xbf16>
    %99 = vector.shape_cast %98 : vector<1x8x8x64xbf16> to vector<8x8x64xbf16>
    %100 = arith.extf %99 : vector<8x8x64xbf16> to vector<8x8x64xf32>
    %101 = vector.shape_cast %100 : vector<8x8x64xf32> to vector<64x64xf32>
    %102 = vector.broadcast %0 : vector<1x64xf32> to vector<64x64xf32>
    %103 = arith.mulf %101, %102 : vector<64x64xf32>
    %cst_59 = arith.constant 0.000000e+00 : f32
    %104 = vector.broadcast %cst_59 : f32 to vector<64x64xf32>
    %105 = arith.maximumf %103, %104 : vector<64x64xf32>
    %106 = arith.truncf %105 : vector<64x64xf32> to vector<64x64xbf16>
    %c512 = arith.constant 512 : index
    %c0_60 = arith.constant 0 : index
    %107 = vector.load %arg3[%c512, %c0_60] : memref<576x64xbf16, #tpu.memory_space<vmem>>, vector<64x64xbf16>
    %cst_61 = arith.constant dense<0.000000e+00> : vector<64x64xf32>
    %108 = tpu.matmul %106, %107, %cst_61 {dimension_numbers = #tpu.dot_dimension_numbers<[1], [0], [0], [1], [0, 0, 1, 1], [], []>} : vector<64x64xbf16>, vector<64x64xbf16>, vector<64x64xf32> -> vector<64x64xf32>
    %109 = arith.addf %97, %108 : vector<64x64xf32>
    %110 = arith.truncf %109 : vector<64x64xf32> to vector<64x64xbf16>
    %c0_62 = arith.constant 0 : index
    %c0_63 = arith.constant 0 : index
    %111 = vector.load %arg4[%c0_62, %c0_63] : memref<64x64xbf16, #tpu.memory_space<vmem>>, vector<64x64xbf16>
    tpu.vector_store %arg4[%c0_62, %c0_63], %110 {strides = array<i32>} : memref<64x64xbf16, #tpu.memory_space<vmem>>, vector<64x64xbf16>,
    %cst_64 = arith.constant dense<0.000000e+00> : vector<64xf32>
    %112 = vector.multi_reduction <add>, %109, %cst_64 [0] : vector<64x64xf32> to vector<64xf32>
    %113 = vector.shape_cast %112 : vector<64xf32> to vector<1x64xf32>
    %114 = arith.mulf %109, %109 : vector<64x64xf32>
    %cst_65 = arith.constant dense<0.000000e+00> : vector<64xf32>
    %115 = vector.multi_reduction <add>, %114, %cst_65 [0] : vector<64x64xf32> to vector<64xf32>
    %116 = vector.shape_cast %115 : vector<64xf32> to vector<1x64xf32>
    %117 = vector.shape_cast %113 : vector<1x64xf32> to vector<1x64xf32>
    %118 = vector.broadcast %117 : vector<1x64xf32> to vector<8x64xf32>
    %c0_66 = arith.constant 0 : index
    %c0_67 = arith.constant 0 : index
    %119 = vector.load %arg5[%c0_66, %c0_67] : memref<8x64xf32, #tpu.memory_space<vmem>>, vector<8x64xf32>
    tpu.vector_store %arg5[%c0_66, %c0_67], %118 {strides = array<i32>} : memref<8x64xf32, #tpu.memory_space<vmem>>, vector<8x64xf32>,
    %120 = vector.shape_cast %116 : vector<1x64xf32> to vector<1x64xf32>
    %121 = vector.broadcast %120 : vector<1x64xf32> to vector<8x64xf32>
    %c0_68 = arith.constant 0 : index
    %c0_69 = arith.constant 0 : index
    %122 = vector.load %arg6[%c0_68, %c0_69] : memref<8x64xf32, #tpu.memory_space<vmem>>, vector<8x64xf32>
    tpu.vector_store %arg6[%c0_68, %c0_69], %121 {strides = array<i32>} : memref<8x64xf32, #tpu.memory_space<vmem>>, vector<8x64xf32>,
    return
  }
  func.func @transform_0(%arg0: i32) -> (i32, i32, i32, i32) {
    %c0_i32 = arith.constant 0 : i32
    %c0_i32_0 = arith.constant 0 : i32
    %c0_i32_1 = arith.constant 0 : i32
    %c0_i32_2 = arith.constant 0 : i32
    return %arg0, %c0_i32, %c0_i32_0, %c0_i32_1 : i32, i32, i32, i32
  }
  func.func @transform_1(%arg0: i32) -> (i32, i32) {
    %c0_i32 = arith.constant 0 : i32
    %c0_i32_0 = arith.constant 0 : i32
    %c0_i32_1 = arith.constant 0 : i32
    return %c0_i32, %c0_i32_0 : i32, i32
  }
  func.func @transform_2(%arg0: i32) -> (i32, i32) {
    %c0_i32 = arith.constant 0 : i32
    %c0_i32_0 = arith.constant 0 : i32
    %c0_i32_1 = arith.constant 0 : i32
    return %c0_i32, %c0_i32_0 : i32, i32
  }
  func.func @transform_3(%arg0: i32) -> (i32, i32) {
    %c0_i32 = arith.constant 0 : i32
    %c0_i32_0 = arith.constant 0 : i32
    return %arg0, %c0_i32 : i32, i32
  }
  func.func @transform_4(%arg0: i32) -> (i32, i32) {
    %c0_i32 = arith.constant 0 : i32
    %c0_i32_0 = arith.constant 0 : i32
    return %arg0, %c0_i32 : i32, i32
  }
  func.func @transform_5(%arg0: i32) -> (i32, i32) {
    %c0_i32 = arith.constant 0 : i32
    %c0_i32_0 = arith.constant 0 : i32
    return %arg0, %c0_i32 : i32, i32
  }
}

module attributes {stable_mosaic.version = 11 : i64} {
  func.func @_bn_add_relu_ds_kernel(%arg0: i32, %arg1: memref<64x256xbf16, #tpu.memory_space<vmem>>, %arg2: memref<1x256xf32, #tpu.memory_space<vmem>>, %arg3: memref<1x256xf32, #tpu.memory_space<vmem>>, %arg4: memref<64x256xbf16, #tpu.memory_space<vmem>>, %arg5: memref<1x256xf32, #tpu.memory_space<vmem>>, %arg6: memref<1x256xf32, #tpu.memory_space<vmem>>, %arg7: memref<64x256xf32, #tpu.memory_space<vmem>>) attributes {dimension_semantics = [#tpu.dimension_semantics<parallel>], iteration_bounds = array<i64: 2>, scalar_prefetch = 0 : i64, scratch_operands = 0 : i64, tpu.core_type = #tpu.core_type<tc>, window_params = [{transform_indices = @transform_0, window_bounds = array<i64: 64, 256>}, {pipeline_mode = #tpu.pipeline_mode<synchronous>, transform_indices = @transform_1, window_bounds = array<i64: 1, 256>}, {pipeline_mode = #tpu.pipeline_mode<synchronous>, transform_indices = @transform_2, window_bounds = array<i64: 1, 256>}, {transform_indices = @transform_3, window_bounds = array<i64: 64, 256>}, {pipeline_mode = #tpu.pipeline_mode<synchronous>, transform_indices = @transform_4, window_bounds = array<i64: 1, 256>}, {pipeline_mode = #tpu.pipeline_mode<synchronous>, transform_indices = @transform_5, window_bounds = array<i64: 1, 256>}, {transform_indices = @transform_6, window_bounds = array<i64: 64, 256>}]} {
    %c0 = arith.constant 0 : index
    %c0_0 = arith.constant 0 : index
    %0 = vector.load %arg4[%c0, %c0_0] : memref<64x256xbf16, #tpu.memory_space<vmem>>, vector<64x256xbf16>
    %1 = arith.extf %0 : vector<64x256xbf16> to vector<64x256xf32>
    %c0_1 = arith.constant 0 : index
    %c0_2 = arith.constant 0 : index
    %2 = vector.load %arg5[%c0_1, %c0_2] : memref<1x256xf32, #tpu.memory_space<vmem>>, vector<1x256xf32>
    %3 = vector.broadcast %2 : vector<1x256xf32> to vector<64x256xf32>
    %4 = arith.subf %1, %3 : vector<64x256xf32>
    %c0_3 = arith.constant 0 : index
    %c0_4 = arith.constant 0 : index
    %5 = vector.load %arg6[%c0_3, %c0_4] : memref<1x256xf32, #tpu.memory_space<vmem>>, vector<1x256xf32>
    %6 = vector.broadcast %5 : vector<1x256xf32> to vector<64x256xf32>
    %7 = arith.mulf %4, %6 : vector<64x256xf32>
    %c0_5 = arith.constant 0 : index
    %c0_6 = arith.constant 0 : index
    %8 = vector.load %arg1[%c0_5, %c0_6] : memref<64x256xbf16, #tpu.memory_space<vmem>>, vector<64x256xbf16>
    %9 = arith.extf %8 : vector<64x256xbf16> to vector<64x256xf32>
    %c0_7 = arith.constant 0 : index
    %c0_8 = arith.constant 0 : index
    %10 = vector.load %arg2[%c0_7, %c0_8] : memref<1x256xf32, #tpu.memory_space<vmem>>, vector<1x256xf32>
    %11 = vector.broadcast %10 : vector<1x256xf32> to vector<64x256xf32>
    %12 = arith.subf %9, %11 : vector<64x256xf32>
    %c0_9 = arith.constant 0 : index
    %c0_10 = arith.constant 0 : index
    %13 = vector.load %arg3[%c0_9, %c0_10] : memref<1x256xf32, #tpu.memory_space<vmem>>, vector<1x256xf32>
    %14 = vector.broadcast %13 : vector<1x256xf32> to vector<64x256xf32>
    %15 = arith.mulf %12, %14 : vector<64x256xf32>
    %16 = arith.addf %15, %7 : vector<64x256xf32>
    %cst = arith.constant 0.000000e+00 : f32
    %17 = vector.broadcast %cst : f32 to vector<64x256xf32>
    %18 = arith.maximumf %16, %17 : vector<64x256xf32>
    %c0_11 = arith.constant 0 : index
    %c0_12 = arith.constant 0 : index
    %19 = vector.load %arg7[%c0_11, %c0_12] : memref<64x256xf32, #tpu.memory_space<vmem>>, vector<64x256xf32>
    tpu.vector_store %arg7[%c0_11, %c0_12], %18 {strides = array<i32>} : memref<64x256xf32, #tpu.memory_space<vmem>>, vector<64x256xf32>,
    return
  }
  func.func @transform_0(%arg0: i32) -> (i32, i32) {
    %c0_i32 = arith.constant 0 : i32
    %c0_i32_0 = arith.constant 0 : i32
    return %arg0, %c0_i32 : i32, i32
  }
  func.func @transform_1(%arg0: i32) -> (i32, i32) {
    %c0_i32 = arith.constant 0 : i32
    %c0_i32_0 = arith.constant 0 : i32
    %c0_i32_1 = arith.constant 0 : i32
    return %c0_i32, %c0_i32_0 : i32, i32
  }
  func.func @transform_2(%arg0: i32) -> (i32, i32) {
    %c0_i32 = arith.constant 0 : i32
    %c0_i32_0 = arith.constant 0 : i32
    %c0_i32_1 = arith.constant 0 : i32
    return %c0_i32, %c0_i32_0 : i32, i32
  }
  func.func @transform_3(%arg0: i32) -> (i32, i32) {
    %c0_i32 = arith.constant 0 : i32
    %c0_i32_0 = arith.constant 0 : i32
    return %arg0, %c0_i32 : i32, i32
  }
  func.func @transform_4(%arg0: i32) -> (i32, i32) {
    %c0_i32 = arith.constant 0 : i32
    %c0_i32_0 = arith.constant 0 : i32
    %c0_i32_1 = arith.constant 0 : i32
    return %c0_i32, %c0_i32_0 : i32, i32
  }
  func.func @transform_5(%arg0: i32) -> (i32, i32) {
    %c0_i32 = arith.constant 0 : i32
    %c0_i32_0 = arith.constant 0 : i32
    %c0_i32_1 = arith.constant 0 : i32
    return %c0_i32, %c0_i32_0 : i32, i32
  }
  func.func @transform_6(%arg0: i32) -> (i32, i32) {
    %c0_i32 = arith.constant 0 : i32
    %c0_i32_0 = arith.constant 0 : i32
    return %arg0, %c0_i32 : i32, i32
  }
}

module attributes {stable_mosaic.version = 11 : i64} {
  func.func @_mm_kernel(%arg0: i32, %arg1: i32, %arg2: memref<64x128xbf16, #tpu.memory_space<vmem>>, %arg3: memref<128x256xbf16, #tpu.memory_space<vmem>>, %arg4: memref<64x256xbf16, #tpu.memory_space<vmem>>, %arg5: memref<8x256xf32, #tpu.memory_space<vmem>>, %arg6: memref<8x256xf32, #tpu.memory_space<vmem>>) attributes {dimension_semantics = [#tpu.dimension_semantics<parallel>, #tpu.dimension_semantics<parallel>], iteration_bounds = array<i64: 2, 1>, scalar_prefetch = 0 : i64, scratch_operands = 0 : i64, tpu.core_type = #tpu.core_type<tc>, window_params = [{transform_indices = @transform_0, window_bounds = array<i64: 64, 128>}, {transform_indices = @transform_1, window_bounds = array<i64: 128, 256>}, {transform_indices = @transform_2, window_bounds = array<i64: 64, 256>}, {transform_indices = @transform_3, window_bounds = array<i64: 8, 256>}, {transform_indices = @transform_4, window_bounds = array<i64: 8, 256>}]} {
    %c0 = arith.constant 0 : index
    %c0_0 = arith.constant 0 : index
    %0 = vector.load %arg2[%c0, %c0_0] : memref<64x128xbf16, #tpu.memory_space<vmem>>, vector<64x128xbf16>
    %c0_1 = arith.constant 0 : index
    %c0_2 = arith.constant 0 : index
    %1 = vector.load %arg3[%c0_1, %c0_2] : memref<128x256xbf16, #tpu.memory_space<vmem>>, vector<128x256xbf16>
    %cst = arith.constant dense<0.000000e+00> : vector<64x256xf32>
    %2 = tpu.matmul %0, %1, %cst {dimension_numbers = #tpu.dot_dimension_numbers<[1], [0], [0], [1], [0, 0, 1, 1], [], []>} : vector<64x128xbf16>, vector<128x256xbf16>, vector<64x256xf32> -> vector<64x256xf32>
    %3 = arith.truncf %2 : vector<64x256xf32> to vector<64x256xbf16>
    %c0_3 = arith.constant 0 : index
    %c0_4 = arith.constant 0 : index
    %4 = vector.load %arg4[%c0_3, %c0_4] : memref<64x256xbf16, #tpu.memory_space<vmem>>, vector<64x256xbf16>
    tpu.vector_store %arg4[%c0_3, %c0_4], %3 {strides = array<i32>} : memref<64x256xbf16, #tpu.memory_space<vmem>>, vector<64x256xbf16>,
    %cst_5 = arith.constant dense<0.000000e+00> : vector<256xf32>
    %5 = vector.multi_reduction <add>, %2, %cst_5 [0] : vector<64x256xf32> to vector<256xf32>
    %6 = vector.shape_cast %5 : vector<256xf32> to vector<1x256xf32>
    %7 = arith.mulf %2, %2 : vector<64x256xf32>
    %cst_6 = arith.constant dense<0.000000e+00> : vector<256xf32>
    %8 = vector.multi_reduction <add>, %7, %cst_6 [0] : vector<64x256xf32> to vector<256xf32>
    %9 = vector.shape_cast %8 : vector<256xf32> to vector<1x256xf32>
    %10 = vector.shape_cast %6 : vector<1x256xf32> to vector<1x256xf32>
    %11 = vector.broadcast %10 : vector<1x256xf32> to vector<8x256xf32>
    %c0_7 = arith.constant 0 : index
    %c0_8 = arith.constant 0 : index
    %12 = vector.load %arg5[%c0_7, %c0_8] : memref<8x256xf32, #tpu.memory_space<vmem>>, vector<8x256xf32>
    tpu.vector_store %arg5[%c0_7, %c0_8], %11 {strides = array<i32>} : memref<8x256xf32, #tpu.memory_space<vmem>>, vector<8x256xf32>,
    %13 = vector.shape_cast %9 : vector<1x256xf32> to vector<1x256xf32>
    %14 = vector.broadcast %13 : vector<1x256xf32> to vector<8x256xf32>
    %c0_9 = arith.constant 0 : index
    %c0_10 = arith.constant 0 : index
    %15 = vector.load %arg6[%c0_9, %c0_10] : memref<8x256xf32, #tpu.memory_space<vmem>>, vector<8x256xf32>
    tpu.vector_store %arg6[%c0_9, %c0_10], %14 {strides = array<i32>} : memref<8x256xf32, #tpu.memory_space<vmem>>, vector<8x256xf32>,
    return
  }
  func.func @transform_0(%arg0: i32, %arg1: i32) -> (i32, i32) {
    %c0_i32 = arith.constant 0 : i32
    %c0_i32_0 = arith.constant 0 : i32
    return %arg0, %c0_i32 : i32, i32
  }
  func.func @transform_1(%arg0: i32, %arg1: i32) -> (i32, i32) {
    %c0_i32 = arith.constant 0 : i32
    %c0_i32_0 = arith.constant 0 : i32
    return %c0_i32, %arg1 : i32, i32
  }
  func.func @transform_2(%arg0: i32, %arg1: i32) -> (i32, i32) {
    %c0_i32 = arith.constant 0 : i32
    return %arg0, %arg1 : i32, i32
  }
  func.func @transform_3(%arg0: i32, %arg1: i32) -> (i32, i32) {
    %c0_i32 = arith.constant 0 : i32
    return %arg0, %arg1 : i32, i32
  }
  func.func @transform_4(%arg0: i32, %arg1: i32) -> (i32, i32) {
    %c0_i32 = arith.constant 0 : i32
    return %arg0, %arg1 : i32, i32
  }
}

</mosaic_0001>

<llo_original>
// kernel: _lambda_.5
$region0: #{_lambda_.5}
  #allocation0 [shape = 'u32[]', space=smem, size = 0x4, offset = 0x4, fixed_abs, tag = 'smem constant byte address 0x4 - core index']
  #allocation1 [shape = 'u32[144,128]{1,0:T(1,128)}', space=vmem, size = 0x12000, scoped, tag = 'internal scratch']
  %s0 = inlined_call_operand.vmem [shape: bf16[512,128], index: 0, kind: input, shape index: {}]
  %s1 = inlined_call_operand.vmem [shape: bf16[128,64], index: 1, kind: input, shape index: {}]
  %s2 = inlined_call_operand.vmem [shape: bf16[512,64], index: 2, kind: output, shape index: {0}]
  %s3 = inlined_call_operand.vmem [shape: f32[16,64], index: 3, kind: output, shape index: {1}]
  %s4 = inlined_call_operand.vmem [shape: f32[16,64], index: 4, kind: output, shape index: {2}]
  %5 = xla_tuple %s2, %s3, %s4
  %s6 = sld [smem:[#allocation0]]
  $region57: #{_lambda_.5} parent=0
    _
  %s8 = ssub.s32 1, %s6
  %s9 = scalar_select 0, %s8, %s6
  loop: start=0, step=1, limit=4
  $region2: #{_lambda_.5} parent=0 // loop_pre_header
    _
  $region3: #{_lambda_.5} parent=0 // loop_header
    %s11 = sphi 0, %s15
    %p12 = scmp.ge.s32.totalorder %s11, 4
    %s18 = sphi 0, %s30
    %s19 = sphi 0, %s26
    %s20 = sphi 0, %s18
    %s21 = sphi 0, %s19
    %s22 = sphi 0, %s20
    %s23 = sphi 0, %s21
    %s33 = sphi 0, %s35
    %s36 = sphi 0, %s33
    %s37 = sphi 0, %s36
    %s53 = sphi 0, %s37
    %s59 = sphi 0, %s61
    %s62 = sphi 0, %s59
    %s63 = sphi 0, %s62
    %s79 = sphi 0, %s63
    %s87 = sphi 0, %s89
    %s90 = sphi 0, %s87
    %s91 = sphi 0, %s90
    %s107 = sphi 0, %s91
    %s115 = sphi 0, %s117
    %s118 = sphi 0, %s115
    %s119 = sphi 0, %s118
    %s135 = sphi 0, %s119
    %s143 = sphi 0, %s145
    %s146 = sphi 0, %s143
    %s147 = sphi 0, %s146
    %s163 = sphi 0, %s147
  $region4: #{_lambda_.5} parent=0 // loop_header_branch
    %14 = sbr.rel (%p12) target = $region8
  $region5: #{_lambda_.5} parent=0 // loop_body
    %s16 = ssub.s32 %s11, 1
    %s17 = ssub.s32 %s11, 2
    %s24 = sadd.s32 1, %s19
    %p25 = scmp.ge.s32.totalorder %s24, 1
    %s26 = scalar_select %p25, 0, %s24
    %s27 = sadd.s32 1, %s18
    %s28 = scalar_select %p25, %s27, %s18
    %p29 = scmp.ge.s32.totalorder %s28, 2
    %s30 = scalar_select %p29, 0, %s28
    %s31 = ssub.s32 %s18, %s30
    %p32 = scmp.eq.s32.totalorder %s31, 0
    %s34 = sadd.s32 %s33, 1
    %s35 = scalar_select %p32, %s33, %s34
    %p38 = pneg %p32
    %p39 = scmp.eq.s32.totalorder %s11, 1
    %p40 = por %p38, %p39
    %p41 = scmp.ne.s32.totalorder %s33, %s36
    %p42 = scmp.eq.s32.totalorder %s11, 0
    %p43 = por %p41, %p42
    %p44 = scmp.ne.s32.totalorder %s33, %s36
    %p45 = scmp.eq.s32.totalorder %s16, 1
    %p46 = por %p44, %p45
    %p47 = scmp.ne.s32.totalorder %s36, %s37
    %p48 = scmp.eq.s32.totalorder %s16, 0
    %p49 = por %p47, %p48
    %p50 = scmp.ne.s32.totalorder %s36, %s37
    %p51 = scmp.eq.s32.totalorder %s17, 1
    %p52 = por %p50, %p51
    %p54 = scmp.ne.s32.totalorder %s37, %s53
    %p55 = scmp.eq.s32.totalorder %s17, 0
    %p56 = por %p54, %p55
    %s57 = ssub.s32 %s19, %s26
    %p58 = scmp.eq.s32.totalorder %s57, 0
    %s60 = sadd.s32 %s59, 1
    %s61 = scalar_select %p58, %s59, %s60
    %p64 = pneg %p58
    %p65 = scmp.eq.s32.totalorder %s11, 1
    %p66 = por %p64, %p65
    %p67 = scmp.ne.s32.totalorder %s59, %s62
    %p68 = scmp.eq.s32.totalorder %s11, 0
    %p69 = por %p67, %p68
    %p70 = scmp.ne.s32.totalorder %s59, %s62
    %p71 = scmp.eq.s32.totalorder %s16, 1
    %p72 = por %p70, %p71
    %p73 = scmp.ne.s32.totalorder %s62, %s63
    %p74 = scmp.eq.s32.totalorder %s16, 0
    %p75 = por %p73, %p74
    %p76 = scmp.ne.s32.totalorder %s62, %s63
    %p77 = scmp.eq.s32.totalorder %s17, 1
    %p78 = por %p76, %p77
    %p80 = scmp.ne.s32.totalorder %s63, %s79
    %p81 = scmp.eq.s32.totalorder %s17, 0
    %p82 = por %p80, %p81
    %s83 = ssub.s32 %s18, %s30
    %s84 = ssub.s32 %s19, %s26
    %s85 = sor.u32 %s83, %s84
    %p86 = scmp.eq.s32.totalorder %s85, 0
    %s88 = sadd.s32 %s87, 1
    %s89 = scalar_select %p86, %s87, %s88
    %p92 = pneg %p86
    %p93 = scmp.eq.s32.totalorder %s11, 1
    %p94 = por %p92, %p93
    %p95 = scmp.ne.s32.totalorder %s87, %s90
    %p96 = scmp.eq.s32.totalorder %s11, 0
    %p97 = por %p95, %p96
    %p98 = scmp.ne.s32.totalorder %s87, %s90
    %p99 = scmp.eq.s32.totalorder %s16, 1
    %p100 = por %p98, %p99
    %p101 = scmp.ne.s32.totalorder %s90, %s91
    %p102 = scmp.eq.s32.totalorder %s16, 0
    %p103 = por %p101, %p102
    %p104 = scmp.ne.s32.totalorder %s90, %s91
    %p105 = scmp.eq.s32.totalorder %s17, 1
    %p106 = por %p104, %p105
    %p108 = scmp.ne.s32.totalorder %s91, %s107
    %p109 = scmp.eq.s32.totalorder %s17, 0
    %p110 = por %p108, %p109
    %s111 = ssub.s32 %s18, %s30
    %s112 = ssub.s32 %s19, %s26
    %s113 = sor.u32 %s111, %s112
    %p114 = scmp.eq.s32.totalorder %s113, 0
    %s116 = sadd.s32 %s115, 1
    %s117 = scalar_select %p114, %s115, %s116
    %p120 = pneg %p114
    %p121 = scmp.eq.s32.totalorder %s11, 1
    %p122 = por %p120, %p121
    %p123 = scmp.ne.s32.totalorder %s115, %s118
    %p124 = scmp.eq.s32.totalorder %s11, 0
    %p125 = por %p123, %p124
    %p126 = scmp.ne.s32.totalorder %s115, %s118
    %p127 = scmp.eq.s32.totalorder %s16, 1
    %p128 = por %p126, %p127
    %p129 = scmp.ne.s32.totalorder %s118, %s119
    %p130 = scmp.eq.s32.totalorder %s16, 0
    %p131 = por %p129, %p130
    %p132 = scmp.ne.s32.totalorder %s118, %s119
    %p133 = scmp.eq.s32.totalorder %s17, 1
    %p134 = por %p132, %p133
    %p136 = scmp.ne.s32.totalorder %s119, %s135
    %p137 = scmp.eq.s32.totalorder %s17, 0
    %p138 = por %p136, %p137
    %s139 = ssub.s32 %s18, %s30
    %s140 = ssub.s32 %s19, %s26
    %s141 = sor.u32 %s139, %s140
    %p142 = scmp.eq.s32.totalorder %s141, 0
    %s144 = sadd.s32 %s143, 1
    %s145 = scalar_select %p142, %s143, %s144
    %p148 = pneg %p142
    %p149 = scmp.eq.s32.totalorder %s11, 1
    %p150 = por %p148, %p149
    %p151 = scmp.ne.s32.totalorder %s143, %s146
    %p152 = scmp.eq.s32.totalorder %s11, 0
    %p153 = por %p151, %p152
    %p154 = scmp.ne.s32.totalorder %s143, %s146
    %p155 = scmp.eq.s32.totalorder %s16, 1
    %p156 = por %p154, %p155
    %p157 = scmp.ne.s32.totalorder %s146, %s147
    %p158 = scmp.eq.s32.totalorder %s16, 0
    %p159 = por %p157, %p158
    %p160 = scmp.ne.s32.totalorder %s146, %s147
    %p161 = scmp.eq.s32.totalorder %s17, 1
    %p162 = por %p160, %p161
    %p164 = scmp.ne.s32.totalorder %s147, %s163
    %p165 = scmp.eq.s32.totalorder %s17, 0
    %p166 = por %p164, %p165
    %p167 = scmp.le.s32.totalorder 1, %s11
    %p168 = scmp.lt.s32.totalorder %s11, 3
    %p169 = pnand %p167, %p168
    %p170 = pneg %p169
    // Predicated region
    $region9: #{_lambda_.5} parent=5 // pred_check
      _
    $region10: #{_lambda_.5} parent=5 // pred_check_branch
      %172 = sbr.rel (%p169) target = $region12
    $region11: #{_lambda_.5} parent=5 // pred_region
      %s173 = ssub.s32 %s11, 1
      // Predicated region
      $region13: #{_lambda_.5} parent=11 // pred_check
        %p174 = pneg %p75
      $region14: #{_lambda_.5} parent=11 // pred_check_branch
        %176 = sbr.rel (%p174) target = $region16
      $region15: #{_lambda_.5} parent=11 // pred_region
        %p177 = scmp.lt.s32.totalorder %s21, 0
        %s178 = scalar_select %p177, %s21, 0
        %s179 = smul.addr %s178, 4
        %s180 = scalar_lea.vmem %s1, %s179
      $region16: #{_lambda_.5} parent=11 // pred_fallthru
        _
    $region12: #{_lambda_.5} parent=5 // pred_fallthru
      _
    %p181 = scmp.lt.s32.totalorder %s11, 2
    // Predicated region
    $region17: #{_lambda_.5} parent=5 // pred_check
      %p182 = pneg %p181
    $region18: #{_lambda_.5} parent=5 // pred_check_branch
      %184 = sbr.rel (%p182) target = $region20
    $region19: #{_lambda_.5} parent=5 // pred_region
      // Predicated region
      $region21: #{_lambda_.5} parent=19 // pred_check
        %p185 = pneg %p43
      $region22: #{_lambda_.5} parent=19 // pred_check_branch
        %187 = sbr.rel (%p185) target = $region24
      $region23: #{_lambda_.5} parent=19 // pred_region
        %s188 = smul.u32 32, %s18
        %p189 = scmp.lt.s32.totalorder %s188, 63
        %s190 = scalar_select %p189, %s188, 63
        %s191 = smul.addr %s190, 4
        %s192 = scalar_lea.vmem %s0, %s191
        %s193 = smul.u32 32, %s18
      $region24: #{_lambda_.5} parent=19 // pred_fallthru
        _
    $region20: #{_lambda_.5} parent=5 // pred_fallthru
      _
    %p194 = scmp.le.s32.totalorder 1, %s11
    %p195 = scmp.lt.s32.totalorder %s11, 3
    %p196 = pnand %p194, %p195
    %p197 = pneg %p196
    // Predicated region
    $region25: #{_lambda_.5} parent=5 // pred_check
      _
    $region26: #{_lambda_.5} parent=5 // pred_check_branch
      %199 = sbr.rel (%p196) target = $region28
    $region27: #{_lambda_.5} parent=5 // pred_region
      %s200 = ssub.s32 %s11, 1
      %s201 = smul.u32 32, %s20
      %p202 = scmp.lt.s32.totalorder %s201, 63
      %s203 = scalar_select %p202, %s201, 63
      %s204 = smul.addr %s203, 4
      %s205 = scalar_lea.vmem %s0, %s204
      %p206 = pneg %p49
      %p207 = pneg %p46
      %p208 = scmp.lt.s32.totalorder %s21, 0
      %s209 = scalar_select %p208, %s21, 0
      %s210 = smul.addr %s209, 4
      %s211 = scalar_lea.vmem %s1, %s210
      %p212 = pneg %p75
      %p213 = pneg %p72
      %p214 = pneg %p103
      %p215 = pneg %p100
      %s216 = smul.u32 32, %s20
      %p217 = scmp.lt.s32.totalorder %s216, 63
      %s218 = scalar_select %p217, %s216, 63
      %p219 = scmp.lt.s32.totalorder %s21, 0
      %s220 = scalar_select %p219, %s21, 0
      %s221 = sadd.s32 %s220, %s218
      %s222 = smul.addr %s221, 4
      %s223 = scalar_lea.vmem %s2, %s222
      %p224 = pneg %p131
      %p225 = pneg %p128
      %p226 = scmp.lt.s32.totalorder %s20, 1
      %s227 = scalar_select %p226, %s20, 1
      %p228 = scmp.lt.s32.totalorder %s21, 0
      %s229 = scalar_select %p228, %s21, 0
      %s230 = sadd.s32 %s229, %s227
      %s231 = smul.addr %s230, 8
      %s232 = scalar_lea.vmem %s3, %s231
      %p233 = pneg %p159
      %p234 = pneg %p156
      %p235 = scmp.lt.s32.totalorder %s20, 1
      %s236 = scalar_select %p235, %s20, 1
      %p237 = scmp.lt.s32.totalorder %s21, 0
      %s238 = scalar_select %p237, %s21, 0
      %s239 = sadd.s32 %s238, %s236
      %s240 = smul.addr %s239, 8
      %s241 = scalar_lea.vmem %s4, %s240
      %s242 = smul.u32 32, %s20
      %p243 = scmp.lt.s32.totalorder %s242, 63
      %s244 = scalar_select %p243, %s242, 63
      %s245 = smul.addr %s244, 4
      %s246 = scalar_lea.vmem %s0, %s245
      %s247 = smul.u32 32, %s20
      %p248 = scmp.lt.s32.totalorder %s21, 0
      %s249 = scalar_select %p248, %s21, 0
      %s250 = smul.addr %s249, 4
      %s251 = scalar_lea.vmem %s1, %s250
      %s252 = smul.u32 32, %s20
      %p253 = scmp.lt.s32.totalorder %s252, 63
      %s254 = scalar_select %p253, %s252, 63
      %p255 = scmp.lt.s32.totalorder %s21, 0
      %s256 = scalar_select %p255, %s21, 0
      %s257 = sadd.s32 %s256, %s254
      %s258 = smul.addr %s257, 4
      %s259 = scalar_lea.vmem %s2, %s258
      %s260 = smul.u32 32, %s20
      %p261 = scmp.lt.s32.totalorder %s20, 1
      %s262 = scalar_select %p261, %s20, 1
      %p263 = scmp.lt.s32.totalorder %s21, 0
      %s264 = scalar_select %p263, %s21, 0
      %s265 = sadd.s32 %s264, %s262
      %s266 = smul.addr %s265, 8
      %s267 = scalar_lea.vmem %s3, %s266
      %p268 = scmp.lt.s32.totalorder %s20, 1
      %s269 = scalar_select %p268, %s20, 1
      %p270 = scmp.lt.s32.totalorder %s21, 0
      %s271 = scalar_select %p270, %s21, 0
      %s272 = sadd.s32 %s271, %s269
      %s273 = smul.addr %s272, 8
      %s274 = scalar_lea.vmem %s4, %s273
      %v276 = vld [vmem:[%s246] sm:$0xf]
      %v277 = vld [vmem:[%s246 + $0x4] sm:$0xf]
      %v278 = vld [vmem:[%s246 + $0x8] sm:$0xf]
      %v279 = vld [vmem:[%s246 + $0xc] sm:$0xf]
      %v280 = vld [vmem:[%s246 + $0x10] sm:$0xf]
      %v281 = vld [vmem:[%s246 + $0x14] sm:$0xf]
      %v282 = vld [vmem:[%s246 + $0x18] sm:$0xf]
      %v283 = vld [vmem:[%s246 + $0x1c] sm:$0xf]
      %v284 = vld [vmem:[%s246 + $0x20] sm:$0xf]
      %v285 = vld [vmem:[%s246 + $0x24] sm:$0xf]
      %v286 = vld [vmem:[%s246 + $0x28] sm:$0xf]
      %v287 = vld [vmem:[%s246 + $0x2c] sm:$0xf]
      %v288 = vld [vmem:[%s246 + $0x30] sm:$0xf]
      %v289 = vld [vmem:[%s246 + $0x34] sm:$0xf]
      %v290 = vld [vmem:[%s246 + $0x38] sm:$0xf]
      %v291 = vld [vmem:[%s246 + $0x3c] sm:$0xf]
      %v292 = vld [vmem:[%s246 + $0x40] sm:$0xf]
      %v293 = vld [vmem:[%s246 + $0x44] sm:$0xf]
      %v294 = vld [vmem:[%s246 + $0x48] sm:$0xf]
      %v295 = vld [vmem:[%s246 + $0x4c] sm:$0xf]
      %v296 = vld [vmem:[%s246 + $0x50] sm:$0xf]
      %v297 = vld [vmem:[%s246 + $0x54] sm:$0xf]
      %v298 = vld [vmem:[%s246 + $0x58] sm:$0xf]
      %v299 = vld [vmem:[%s246 + $0x5c] sm:$0xf]
      %v300 = vld [vmem:[%s246 + $0x60] sm:$0xf]
      %v301 = vld [vmem:[%s246 + $0x64] sm:$0xf]
      %v302 = vld [vmem:[%s246 + $0x68] sm:$0xf]
      %v303 = vld [vmem:[%s246 + $0x6c] sm:$0xf]
      %v304 = vld [vmem:[%s246 + $0x70] sm:$0xf]
      %v305 = vld [vmem:[%s246 + $0x74] sm:$0xf]
      %v306 = vld [vmem:[%s246 + $0x78] sm:$0xf]
      %v307 = vld [vmem:[%s246 + $0x7c] sm:$0xf]
      %v308 = vld [vmem:[%s251] sm:$0xf]
      %v309 = vld [vmem:[%s251 + $0x4] sm:$0xf]
      %v310 = vld [vmem:[%s251 + $0x8] sm:$0xf]
      %v311 = vld [vmem:[%s251 + $0xc] sm:$0xf]
      %v312 = vld [vmem:[%s251 + $0x10] sm:$0xf]
      %v313 = vld [vmem:[%s251 + $0x14] sm:$0xf]
      %v314 = vld [vmem:[%s251 + $0x18] sm:$0xf]
      %v315 = vld [vmem:[%s251 + $0x1c] sm:$0xf]
      %v316 = vld [vmem:[%s251 + $0x20] sm:$0xf]
      %v317 = vld [vmem:[%s251 + $0x24] sm:$0xf]
      %v318 = vld [vmem:[%s251 + $0x28] sm:$0xf]
      %v319 = vld [vmem:[%s251 + $0x2c] sm:$0xf]
      %v320 = vld [vmem:[%s251 + $0x30] sm:$0xf]
      %v321 = vld [vmem:[%s251 + $0x34] sm:$0xf]
      %v322 = vld [vmem:[%s251 + $0x38] sm:$0xf]
      %v323 = vld [vmem:[%s251 + $0x3c] sm:$0xf]
      %v356 = vunpack.c.l.b16 %v276
      %v357 = vunpack.c.l.b16 %v277
      %v358 = vunpack.c.l.b16 %v278
      %v359 = vunpack.c.l.b16 %v279
      %v360 = vunpack.c.l.b16 %v280
      %v361 = vunpack.c.l.b16 %v281
      %v362 = vunpack.c.l.b16 %v282
      %v363 = vunpack.c.l.b16 %v283
      %v364 = vunpack.c.l.b16 %v284
      %v365 = vunpack.c.l.b16 %v285
      %v366 = vunpack.c.l.b16 %v286
      %v367 = vunpack.c.l.b16 %v287
      %v368 = vunpack.c.l.b16 %v288
      %v369 = vunpack.c.l.b16 %v289
      %v370 = vunpack.c.l.b16 %v290
      %v371 = vunpack.c.l.b16 %v291
      %v372 = vunpack.c.l.b16 %v292
      %v373 = vunpack.c.l.b16 %v293
      %v374 = vunpack.c.l.b16 %v294
      %v375 = vunpack.c.l.b16 %v295
      %v376 = vunpack.c.l.b16 %v296
      %v377 = vunpack.c.l.b16 %v297
      %v378 = vunpack.c.l.b16 %v298
      %v379 = vunpack.c.l.b16 %v299
      %v380 = vunpack.c.l.b16 %v300
      %v381 = vunpack.c.l.b16 %v301
      %v382 = vunpack.c.l.b16 %v302
      %v383 = vunpack.c.l.b16 %v303
      %v384 = vunpack.c.l.b16 %v304
      %v385 = vunpack.c.l.b16 %v305
      %v386 = vunpack.c.l.b16 %v306
      %v387 = vunpack.c.l.b16 %v307
      %v388 = vpack.c.b16 %v357, %v356
      %v389 = vpack.c.b16 %v359, %v358
      %v390 = vpack.c.b16 %v361, %v360
      %v391 = vpack.c.b16 %v363, %v362
      %v392 = vpack.c.b16 %v365, %v364
      %v393 = vpack.c.b16 %v367, %v366
      %v394 = vpack.c.b16 %v369, %v368
      %v395 = vpack.c.b16 %v371, %v370
      %v396 = vpack.c.b16 %v373, %v372
      %v397 = vpack.c.b16 %v375, %v374
      %v398 = vpack.c.b16 %v377, %v376
      %v399 = vpack.c.b16 %v379, %v378
      %v400 = vpack.c.b16 %v381, %v380
      %v401 = vpack.c.b16 %v383, %v382
      %v402 = vpack.c.b16 %v385, %v384
      %v403 = vpack.c.b16 %v387, %v386
      %v436 = vunpack.c.l.b16 %v308
      %v437 = vunpack.c.l.b16 %v309
      %v438 = vunpack.c.l.b16 %v310
      %v439 = vunpack.c.l.b16 %v311
      %v440 = vunpack.c.l.b16 %v312
      %v441 = vunpack.c.l.b16 %v313
      %v442 = vunpack.c.l.b16 %v314
      %v443 = vunpack.c.l.b16 %v315
      %v444 = vunpack.c.l.b16 %v316
      %v445 = vunpack.c.l.b16 %v317
      %v446 = vunpack.c.l.b16 %v318
      %v447 = vunpack.c.l.b16 %v319
      %v448 = vunpack.c.l.b16 %v320
      %v449 = vunpack.c.l.b16 %v321
      %v450 = vunpack.c.l.b16 %v322
      %v451 = vunpack.c.l.b16 %v323
      %v452 = vpack.c.b16 %v437, %v436
      %v453 = vpack.c.b16 %v439, %v438
      %v454 = vpack.c.b16 %v441, %v440
      %v455 = vpack.c.b16 %v443, %v442
      %v456 = vpack.c.b16 %v445, %v444
      %v457 = vpack.c.b16 %v447, %v446
      %v458 = vpack.c.b16 %v449, %v448
      %v459 = vpack.c.b16 %v451, %v450
      %468 = vmatprep.subr.bf16.mxu0 0
      %469 = vmatpush1.bf16.msra.mxu0 %v459
      %470 = vmatprep.subr.bf16.mxu0 0
      %471 = vmatpush1.bf16.msra.mxu0 %v458
      %472 = vmatprep.subr.bf16.mxu0 0
      %473 = vmatpush1.bf16.msra.mxu0 %v457
      %474 = vmatprep.subr.bf16.mxu0 0
      %475 = vmatpush1.bf16.msra.mxu0 %v456
      %476 = vmatprep.subr.bf16.mxu0 0
      %477 = vmatpush1.bf16.msra.mxu0 %v455
      %478 = vmatprep.subr.bf16.mxu0 0
      %479 = vmatpush1.bf16.msra.mxu0 %v454
      %480 = vmatprep.subr.bf16.mxu0 0
      %481 = vmatpush1.bf16.msra.mxu0 %v453
      %482 = vmatprep.subr.bf16.mxu0 0
      %483 = vmatpush1.bf16.msra.mxu0 %v452
      %484 = vmatprep.subr.bf16.mxu0 0
      %485 = vmatpush2.bf16.msra.mxu0 0
      %486 = vmatprep.subr.bf16.mxu0 0
      %487 = vmatpush2.bf16.msra.mxu0 0
      %488 = vmatprep.subr.bf16.mxu0 0
      %489 = vmatpush2.bf16.msra.mxu0 0
      %490 = vmatprep.subr.bf16.mxu0 0
      %491 = vmatpush2.bf16.msra.mxu0 0
      %492 = vmatprep.subr.bf16.mxu0 0
      %493 = vmatpush2.bf16.msra.mxu0 0
      %494 = vmatprep.subr.bf16.mxu0 0
      %495 = vmatpush2.bf16.msra.mxu0 0
      %496 = vmatprep.subr.bf16.mxu0 0
      %497 = vmatpush2.bf16.msra.mxu0 0
      %498 = vmatprep.subr.bf16.mxu0 0
      %499 = vmatpush2.bf16.msra.mxu0 0
      %500 = vmatprep.mubr.bf16.mxu0 0
      %501 = vmatmul.mubr.bf16.gmra.mxu0 %v388
      %v502 = vpop.f32.mrf.mxu0
      %v503 = vadd.f32 0.0, %v502
      %v504 = vpop.f32.mrf.mxu0
      %v505 = vpop.f32.mrf.mxu0
      %v506 = vadd.f32 0.0, %v505
      %v507 = vpop.f32.mrf.mxu0
      %508 = vmatprep.mubr.bf16.mxu0 0
      %509 = vmatmul.mubr.bf16.gmra.mxu0 %v389
      %v510 = vpop.f32.mrf.mxu0
      %v511 = vadd.f32 0.0, %v510
      %v512 = vpop.f32.mrf.mxu0
      %v513 = vpop.f32.mrf.mxu0
      %v514 = vadd.f32 0.0, %v513
      %v515 = vpop.f32.mrf.mxu0
      %516 = vmatprep.mubr.bf16.mxu0 0
      %517 = vmatmul.mubr.bf16.gmra.mxu0 %v390
      %v518 = vpop.f32.mrf.mxu0
      %v519 = vadd.f32 0.0, %v518
      %v520 = vpop.f32.mrf.mxu0
      %v521 = vpop.f32.mrf.mxu0
      %v522 = vadd.f32 0.0, %v521
      %v523 = vpop.f32.mrf.mxu0
      %524 = vmatprep.mubr.bf16.mxu0 0
      %525 = vmatmul.mubr.bf16.gmra.mxu0 %v391
      %v526 = vpop.f32.mrf.mxu0
      %v527 = vadd.f32 0.0, %v526
      %v528 = vpop.f32.mrf.mxu0
      %v529 = vpop.f32.mrf.mxu0
      %v530 = vadd.f32 0.0, %v529
      %v531 = vpop.f32.mrf.mxu0
      %532 = vmatprep.mubr.bf16.mxu0 0
      %533 = vmatmul.mubr.bf16.gmra.mxu0 %v392
      %v534 = vpop.f32.mrf.mxu0
      %v535 = vadd.f32 0.0, %v534
      %v536 = vpop.f32.mrf.mxu0
      %v537 = vpop.f32.mrf.mxu0
      %v538 = vadd.f32 0.0, %v537
      %v539 = vpop.f32.mrf.mxu0
      %540 = vmatprep.mubr.bf16.mxu0 0
      %541 = vmatmul.mubr.bf16.gmra.mxu0 %v393
      %v542 = vpop.f32.mrf.mxu0
      %v543 = vadd.f32 0.0, %v542
      %v544 = vpop.f32.mrf.mxu0
      %v545 = vpop.f32.mrf.mxu0
      %v546 = vadd.f32 0.0, %v545
      %v547 = vpop.f32.mrf.mxu0
      %548 = vmatprep.mubr.bf16.mxu0 0
      %549 = vmatmul.mubr.bf16.gmra.mxu0 %v394
      %v550 = vpop.f32.mrf.mxu0
      %v551 = vadd.f32 0.0, %v550
      %v552 = vpop.f32.mrf.mxu0
      %v553 = vpop.f32.mrf.mxu0
      %v554 = vadd.f32 0.0, %v553
      %v555 = vpop.f32.mrf.mxu0
      %556 = vmatprep.mubr.bf16.mxu0 0
      %557 = vmatmul.mubr.bf16.gmra.mxu0 %v395
      %v558 = vpop.f32.mrf.mxu0
      %v559 = vadd.f32 0.0, %v558
      %v560 = vpop.f32.mrf.mxu0
      %v561 = vpop.f32.mrf.mxu0
      %v562 = vadd.f32 0.0, %v561
      %v563 = vpop.f32.mrf.mxu0
      %564 = vmatprep.mubr.bf16.mxu0 0
      %565 = vmatmul.mubr.bf16.gmra.mxu0 %v396
      %v566 = vpop.f32.mrf.mxu0
      %v567 = vadd.f32 0.0, %v566
      %v568 = vpop.f32.mrf.mxu0
      %v569 = vpop.f32.mrf.mxu0
      %v570 = vadd.f32 0.0, %v569
      %v571 = vpop.f32.mrf.mxu0
      %572 = vmatprep.mubr.bf16.mxu0 0
      %573 = vmatmul.mubr.bf16.gmra.mxu0 %v397
      %v574 = vpop.f32.mrf.mxu0
      %v575 = vadd.f32 0.0, %v574
      %v576 = vpop.f32.mrf.mxu0
      %v577 = vpop.f32.mrf.mxu0
      %v578 = vadd.f32 0.0, %v577
      %v579 = vpop.f32.mrf.mxu0
      %580 = vmatprep.mubr.bf16.mxu0 0
      %581 = vmatmul.mubr.bf16.gmra.mxu0 %v398
      %v582 = vpop.f32.mrf.mxu0
      %v583 = vadd.f32 0.0, %v582
      %v584 = vpop.f32.mrf.mxu0
      %v585 = vpop.f32.mrf.mxu0
      %v586 = vadd.f32 0.0, %v585
      %v587 = vpop.f32.mrf.mxu0
      %588 = vmatprep.mubr.bf16.mxu0 0
      %589 = vmatmul.mubr.bf16.gmra.mxu0 %v399
      %v590 = vpop.f32.mrf.mxu0
      %v591 = vadd.f32 0.0, %v590
      %v592 = vpop.f32.mrf.mxu0
      %v593 = vpop.f32.mrf.mxu0
      %v594 = vadd.f32 0.0, %v593
      %v595 = vpop.f32.mrf.mxu0
      %596 = vmatprep.mubr.bf16.mxu0 0
      %597 = vmatmul.mubr.bf16.gmra.mxu0 %v400
      %v598 = vpop.f32.mrf.mxu0
      %v599 = vadd.f32 0.0, %v598
      %v600 = vpop.f32.mrf.mxu0
      %v601 = vpop.f32.mrf.mxu0
      %v602 = vadd.f32 0.0, %v601
      %v603 = vpop.f32.mrf.mxu0
      %604 = vmatprep.mubr.bf16.mxu0 0
      %605 = vmatmul.mubr.bf16.gmra.mxu0 %v401
      %v606 = vpop.f32.mrf.mxu0
      %v607 = vadd.f32 0.0, %v606
      %v608 = vpop.f32.mrf.mxu0
      %v609 = vpop.f32.mrf.mxu0
      %v610 = vadd.f32 0.0, %v609
      %v611 = vpop.f32.mrf.mxu0
      %612 = vmatprep.mubr.bf16.mxu0 0
      %613 = vmatmul.mubr.bf16.gmra.mxu0 %v402
      %v614 = vpop.f32.mrf.mxu0
      %v615 = vadd.f32 0.0, %v614
      %v616 = vpop.f32.mrf.mxu0
      %v617 = vpop.f32.mrf.mxu0
      %v618 = vadd.f32 0.0, %v617
      %v619 = vpop.f32.mrf.mxu0
      %620 = vmatprep.mubr.bf16.mxu0 0
      %621 = vmatmul.mubr.bf16.gmra.mxu0 %v403
      %v622 = vpop.f32.mrf.mxu0
      %v623 = vadd.f32 0.0, %v622
      %v624 = vpop.f32.mrf.mxu0
      %v625 = vpop.f32.mrf.mxu0
      %v626 = vadd.f32 0.0, %v625
      %v627 = vpop.f32.mrf.mxu0
      %628 = vdwg.mxu0
      %v629 = vpack.c.bf16 %v506, %v503
      %v630 = vpack.c.bf16 %v514, %v511
      %v631 = vpack.c.bf16 %v522, %v519
      %v632 = vpack.c.bf16 %v530, %v527
      %v633 = vpack.c.bf16 %v538, %v535
      %v634 = vpack.c.bf16 %v546, %v543
      %v635 = vpack.c.bf16 %v554, %v551
      %v636 = vpack.c.bf16 %v562, %v559
      %v637 = vpack.c.bf16 %v570, %v567
      %v638 = vpack.c.bf16 %v578, %v575
      %v639 = vpack.c.bf16 %v586, %v583
      %v640 = vpack.c.bf16 %v594, %v591
      %v641 = vpack.c.bf16 %v602, %v599
      %v642 = vpack.c.bf16 %v610, %v607
      %v643 = vpack.c.bf16 %v618, %v615
      %v644 = vpack.c.bf16 %v626, %v623
      %v661 = vunpack.c.l.b16 %v629
      %v662 = vunpack.c.h.b16 %v629
      %v663 = vunpack.c.l.b16 %v630
      %v664 = vunpack.c.h.b16 %v630
      %v665 = vunpack.c.l.b16 %v631
      %v666 = vunpack.c.h.b16 %v631
      %v667 = vunpack.c.l.b16 %v632
      %v668 = vunpack.c.h.b16 %v632
      %v669 = vunpack.c.l.b16 %v633
      %v670 = vunpack.c.h.b16 %v633
      %v671 = vunpack.c.l.b16 %v634
      %v672 = vunpack.c.h.b16 %v634
      %v673 = vunpack.c.l.b16 %v635
      %v674 = vunpack.c.h.b16 %v635
      %v675 = vunpack.c.l.b16 %v636
      %v676 = vunpack.c.h.b16 %v636
      %v677 = vunpack.c.l.b16 %v637
      %v678 = vunpack.c.h.b16 %v637
      %v679 = vunpack.c.l.b16 %v638
      %v680 = vunpack.c.h.b16 %v638
      %v681 = vunpack.c.l.b16 %v639
      %v682 = vunpack.c.h.b16 %v639
      %v683 = vunpack.c.l.b16 %v640
      %v684 = vunpack.c.h.b16 %v640
      %v685 = vunpack.c.l.b16 %v641
      %v686 = vunpack.c.h.b16 %v641
      %v687 = vunpack.c.l.b16 %v642
      %v688 = vunpack.c.h.b16 %v642
      %v689 = vunpack.c.l.b16 %v643
      %v690 = vunpack.c.h.b16 %v643
      %v691 = vunpack.c.l.b16 %v644
      %v692 = vunpack.c.h.b16 %v644
      %v693 = vpack.c.b16 %v661, %v661
      %v694 = vpack.c.b16 %v662, %v662
      %v695 = vpack.c.b16 %v663, %v663
      %v696 = vpack.c.b16 %v664, %v664
      %v697 = vpack.c.b16 %v665, %v665
      %v698 = vpack.c.b16 %v666, %v666
      %v699 = vpack.c.b16 %v667, %v667
      %v700 = vpack.c.b16 %v668, %v668
      %v701 = vpack.c.b16 %v669, %v669
      %v702 = vpack.c.b16 %v670, %v670
      %v703 = vpack.c.b16 %v671, %v671
      %v704 = vpack.c.b16 %v672, %v672
      %v705 = vpack.c.b16 %v673, %v673
      %v706 = vpack.c.b16 %v674, %v674
      %v707 = vpack.c.b16 %v675, %v675
      %v708 = vpack.c.b16 %v676, %v676
      %v709 = vpack.c.b16 %v677, %v677
      %v710 = vpack.c.b16 %v678, %v678
      %v711 = vpack.c.b16 %v679, %v679
      %v712 = vpack.c.b16 %v680, %v680
      %v713 = vpack.c.b16 %v681, %v681
      %v714 = vpack.c.b16 %v682, %v682
      %v715 = vpack.c.b16 %v683, %v683
      %v716 = vpack.c.b16 %v684, %v684
      %v717 = vpack.c.b16 %v685, %v685
      %v718 = vpack.c.b16 %v686, %v686
      %v719 = vpack.c.b16 %v687, %v687
      %v720 = vpack.c.b16 %v688, %v688
      %v721 = vpack.c.b16 %v689, %v689
      %v722 = vpack.c.b16 %v690, %v690
      %v723 = vpack.c.b16 %v691, %v691
      %v724 = vpack.c.b16 %v692, %v692
      %vm757 = vcmask 519168
      %758 = vst.msk [vmem:[%s259] sm:$0xf] %vm757, %v693
      %759 = vst.msk [vmem:[%s259 + $0x4] sm:$0xf] %vm757, %v694
      %760 = vst.msk [vmem:[%s259 + $0x8] sm:$0xf] %vm757, %v695
      %761 = vst.msk [vmem:[%s259 + $0xc] sm:$0xf] %vm757, %v696
      %762 = vst.msk [vmem:[%s259 + $0x10] sm:$0xf] %vm757, %v697
      %763 = vst.msk [vmem:[%s259 + $0x14] sm:$0xf] %vm757, %v698
      %764 = vst.msk [vmem:[%s259 + $0x18] sm:$0xf] %vm757, %v699
      %765 = vst.msk [vmem:[%s259 + $0x1c] sm:$0xf] %vm757, %v700
      %766 = vst.msk [vmem:[%s259 + $0x20] sm:$0xf] %vm757, %v701
      %767 = vst.msk [vmem:[%s259 + $0x24] sm:$0xf] %vm757, %v702
      %768 = vst.msk [vmem:[%s259 + $0x28] sm:$0xf] %vm757, %v703
      %769 = vst.msk [vmem:[%s259 + $0x2c] sm:$0xf] %vm757, %v704
      %770 = vst.msk [vmem:[%s259 + $0x30] sm:$0xf] %vm757, %v705
      %771 = vst.msk [vmem:[%s259 + $0x34] sm:$0xf] %vm757, %v706
      %772 = vst.msk [vmem:[%s259 + $0x38] sm:$0xf] %vm757, %v707
      %773 = vst.msk [vmem:[%s259 + $0x3c] sm:$0xf] %vm757, %v708
      %774 = vst.msk [vmem:[%s259 + $0x40] sm:$0xf] %vm757, %v709
      %775 = vst.msk [vmem:[%s259 + $0x44] sm:$0xf] %vm757, %v710
      %776 = vst.msk [vmem:[%s259 + $0x48] sm:$0xf] %vm757, %v711
      %777 = vst.msk [vmem:[%s259 + $0x4c] sm:$0xf] %vm757, %v712
      %778 = vst.msk [vmem:[%s259 + $0x50] sm:$0xf] %vm757, %v713
      %779 = vst.msk [vmem:[%s259 + $0x54] sm:$0xf] %vm757, %v714
      %780 = vst.msk [vmem:[%s259 + $0x58] sm:$0xf] %vm757, %v715
      %781 = vst.msk [vmem:[%s259 + $0x5c] sm:$0xf] %vm757, %v716
      %782 = vst.msk [vmem:[%s259 + $0x60] sm:$0xf] %vm757, %v717
      %783 = vst.msk [vmem:[%s259 + $0x64] sm:$0xf] %vm757, %v718
      %784 = vst.msk [vmem:[%s259 + $0x68] sm:$0xf] %vm757, %v719
      %785 = vst.msk [vmem:[%s259 + $0x6c] sm:$0xf] %vm757, %v720
      %786 = vst.msk [vmem:[%s259 + $0x70] sm:$0xf] %vm757, %v721
      %787 = vst.msk [vmem:[%s259 + $0x74] sm:$0xf] %vm757, %v722
      %788 = vst.msk [vmem:[%s259 + $0x78] sm:$0xf] %vm757, %v723
      %789 = vst.msk [vmem:[%s259 + $0x7c] sm:$0xf] %vm757, %v724
      %vm790 = vcmask 523264
      %v791 = vsel %vm790, %v503, 0.0
      %v792 = vsel %vm790, %v506, 0.0
      %v793 = vadd.f32 %v791, %v792
      %v794 = vsel %vm790, %v511, 0.0
      %v795 = vadd.f32 %v793, %v794
      %v796 = vsel %vm790, %v514, 0.0
      %v797 = vadd.f32 %v795, %v796
      %v798 = vsel %vm790, %v519, 0.0
      %v799 = vadd.f32 %v797, %v798
      %v800 = vsel %vm790, %v522, 0.0
      %v801 = vadd.f32 %v799, %v800
      %v802 = vsel %vm790, %v527, 0.0
      %v803 = vadd.f32 %v801, %v802
      %v804 = vsel %vm790, %v530, 0.0
      %v805 = vadd.f32 %v803, %v804
      %v806 = vsel %vm790, %v535, 0.0
      %v807 = vadd.f32 %v805, %v806
      %v808 = vsel %vm790, %v538, 0.0
      %v809 = vadd.f32 %v807, %v808
      %v810 = vsel %vm790, %v543, 0.0
      %v811 = vadd.f32 %v809, %v810
      %v812 = vsel %vm790, %v546, 0.0
      %v813 = vadd.f32 %v811, %v812
      %v814 = vsel %vm790, %v551, 0.0
      %v815 = vadd.f32 %v813, %v814
      %v816 = vsel %vm790, %v554, 0.0
      %v817 = vadd.f32 %v815, %v816
      %v818 = vsel %vm790, %v559, 0.0
      %v819 = vadd.f32 %v817, %v818
      %v820 = vsel %vm790, %v562, 0.0
      %v821 = vadd.f32 %v819, %v820
      %v822 = vsel %vm790, %v567, 0.0
      %v823 = vadd.f32 %v821, %v822
      %v824 = vsel %vm790, %v570, 0.0
      %v825 = vadd.f32 %v823, %v824
      %v826 = vsel %vm790, %v575, 0.0
      %v827 = vadd.f32 %v825, %v826
      %v828 = vsel %vm790, %v578, 0.0
      %v829 = vadd.f32 %v827, %v828
      %v830 = vsel %vm790, %v583, 0.0
      %v831 = vadd.f32 %v829, %v830
      %v832 = vsel %vm790, %v586, 0.0
      %v833 = vadd.f32 %v831, %v832
      %v834 = vsel %vm790, %v591, 0.0
      %v835 = vadd.f32 %v833, %v834
      %v836 = vsel %vm790, %v594, 0.0
      %v837 = vadd.f32 %v835, %v836
      %v838 = vsel %vm790, %v599, 0.0
      %v839 = vadd.f32 %v837, %v838
      %v840 = vsel %vm790, %v602, 0.0
      %v841 = vadd.f32 %v839, %v840
      %v842 = vsel %vm790, %v607, 0.0
      %v843 = vadd.f32 %v841, %v842
      %v844 = vsel %vm790, %v610, 0.0
      %v845 = vadd.f32 %v843, %v844
      %v846 = vsel %vm790, %v615, 0.0
      %v847 = vadd.f32 %v845, %v846
      %v848 = vsel %vm790, %v618, 0.0
      %v849 = vadd.f32 %v847, %v848
      %v850 = vsel %vm790, %v623, 0.0
      %v851 = vadd.f32 %v849, %v850
      %v852 = vsel %vm790, %v626, 0.0
      %v853 = vadd.f32 %v851, %v852
      %v854 = vrot.slane %v853, 4
      %v855 = vadd.f32 %v853, %v854
      %v856 = vrot.slane %v855, 2
      %v857 = vadd.f32 %v855, %v856
      %v858 = vrot.slane %v857, 1
      %v859 = vadd.f32 %v857, %v858
      %v860 = vmul.f32 %v503, %v503
      %v861 = vmul.f32 %v506, %v506
      %v862 = vmul.f32 %v511, %v511
      %v863 = vmul.f32 %v514, %v514
      %v864 = vmul.f32 %v519, %v519
      %v865 = vmul.f32 %v522, %v522
      %v866 = vmul.f32 %v527, %v527
      %v867 = vmul.f32 %v530, %v530
      %v868 = vmul.f32 %v535, %v535
      %v869 = vmul.f32 %v538, %v538
      %v870 = vmul.f32 %v543, %v543
      %v871 = vmul.f32 %v546, %v546
      %v872 = vmul.f32 %v551, %v551
      %v873 = vmul.f32 %v554, %v554
      %v874 = vmul.f32 %v559, %v559
      %v875 = vmul.f32 %v562, %v562
      %v876 = vmul.f32 %v567, %v567
      %v877 = vmul.f32 %v570, %v570
      %v878 = vmul.f32 %v575, %v575
      %v879 = vmul.f32 %v578, %v578
      %v880 = vmul.f32 %v583, %v583
      %v881 = vmul.f32 %v586, %v586
      %v882 = vmul.f32 %v591, %v591
      %v883 = vmul.f32 %v594, %v594
      %v884 = vmul.f32 %v599, %v599
      %v885 = vmul.f32 %v602, %v602
      %v886 = vmul.f32 %v607, %v607
      %v887 = vmul.f32 %v610, %v610
      %v888 = vmul.f32 %v615, %v615
      %v889 = vmul.f32 %v618, %v618
      %v890 = vmul.f32 %v623, %v623
      %v891 = vmul.f32 %v626, %v626
      %v892 = vsel %vm790, %v860, 0.0
      %v893 = vsel %vm790, %v861, 0.0
      %v894 = vadd.f32 %v892, %v893
      %v895 = vsel %vm790, %v862, 0.0
      %v896 = vadd.f32 %v894, %v895
      %v897 = vsel %vm790, %v863, 0.0
      %v898 = vadd.f32 %v896, %v897
      %v899 = vsel %vm790, %v864, 0.0
      %v900 = vadd.f32 %v898, %v899
      %v901 = vsel %vm790, %v865, 0.0
      %v902 = vadd.f32 %v900, %v901
      %v903 = vsel %vm790, %v866, 0.0
      %v904 = vadd.f32 %v902, %v903
      %v905 = vsel %vm790, %v867, 0.0
      %v906 = vadd.f32 %v904, %v905
      %v907 = vsel %vm790, %v868, 0.0
      %v908 = vadd.f32 %v906, %v907
      %v909 = vsel %vm790, %v869, 0.0
      %v910 = vadd.f32 %v908, %v909
      %v911 = vsel %vm790, %v870, 0.0
      %v912 = vadd.f32 %v910, %v911
      %v913 = vsel %vm790, %v871, 0.0
      %v914 = vadd.f32 %v912, %v913
      %v915 = vsel %vm790, %v872, 0.0
      %v916 = vadd.f32 %v914, %v915
      %v917 = vsel %vm790, %v873, 0.0
      %v918 = vadd.f32 %v916, %v917
      %v919 = vsel %vm790, %v874, 0.0
      %v920 = vadd.f32 %v918, %v919
      %v921 = vsel %vm790, %v875, 0.0
      %v922 = vadd.f32 %v920, %v921
      %v923 = vsel %vm790, %v876, 0.0
      %v924 = vadd.f32 %v922, %v923
      %v925 = vsel %vm790, %v877, 0.0
      %v926 = vadd.f32 %v924, %v925
      %v927 = vsel %vm790, %v878, 0.0
      %v928 = vadd.f32 %v926, %v927
      %v929 = vsel %vm790, %v879, 0.0
      %v930 = vadd.f32 %v928, %v929
      %v931 = vsel %vm790, %v880, 0.0
      %v932 = vadd.f32 %v930, %v931
      %v933 = vsel %vm790, %v881, 0.0
      %v934 = vadd.f32 %v932, %v933
      %v935 = vsel %vm790, %v882, 0.0
      %v936 = vadd.f32 %v934, %v935
      %v937 = vsel %vm790, %v883, 0.0
      %v938 = vadd.f32 %v936, %v937
      %v939 = vsel %vm790, %v884, 0.0
      %v940 = vadd.f32 %v938, %v939
      %v941 = vsel %vm790, %v885, 0.0
      %v942 = vadd.f32 %v940, %v941
      %v943 = vsel %vm790, %v886, 0.0
      %v944 = vadd.f32 %v942, %v943
      %v945 = vsel %vm790, %v887, 0.0
      %v946 = vadd.f32 %v944, %v945
      %v947 = vsel %vm790, %v888, 0.0
      %v948 = vadd.f32 %v946, %v947
      %v949 = vsel %vm790, %v889, 0.0
      %v950 = vadd.f32 %v948, %v949
      %v951 = vsel %vm790, %v890, 0.0
      %v952 = vadd.f32 %v950, %v951
      %v953 = vsel %vm790, %v891, 0.0
      %v954 = vadd.f32 %v952, %v953
      %v955 = vrot.slane %v954, 4
      %v956 = vadd.f32 %v954, %v955
      %v957 = vrot.slane %v956, 2
      %v958 = vadd.f32 %v956, %v957
      %v959 = vrot.slane %v958, 1
      %v960 = vadd.f32 %v958, %v959
      %961 = vst.msk [vmem:[%s267] sm:$0xff] %vm790, %v859
      %962 = vst.msk [vmem:[%s274] sm:$0xff] %vm790, %v960
      %s963 = smul.u32 32, %s20
      %p964 = scmp.lt.s32.totalorder %s963, 63
      %s965 = scalar_select %p964, %s963, 63
      %p966 = scmp.lt.s32.totalorder %s21, 0
      %s967 = scalar_select %p966, %s21, 0
      %s968 = sadd.s32 %s967, %s965
      %s969 = smul.addr %s968, 4
      %s970 = scalar_lea.vmem %s2, %s969
      %p971 = scmp.lt.s32.totalorder %s20, 1
      %s972 = scalar_select %p971, %s20, 1
      %p973 = scmp.lt.s32.totalorder %s21, 0
      %s974 = scalar_select %p973, %s21, 0
      %s975 = sadd.s32 %s974, %s972
      %s976 = smul.addr %s975, 8
      %s977 = scalar_lea.vmem %s3, %s976
      %p978 = scmp.lt.s32.totalorder %s20, 1
      %s979 = scalar_select %p978, %s20, 1
      %p980 = scmp.lt.s32.totalorder %s21, 0
      %s981 = scalar_select %p980, %s21, 0
      %s982 = sadd.s32 %s981, %s979
      %s983 = smul.addr %s982, 8
      %s984 = scalar_lea.vmem %s4, %s983
      // Predicated region
      $region29: #{_lambda_.5} parent=27 // pred_check
        %p985 = pneg %p100
      $region30: #{_lambda_.5} parent=27 // pred_check_branch
        %987 = sbr.rel (%p985) target = $region32
      $region31: #{_lambda_.5} parent=27 // pred_region
        %s988 = smul.u32 32, %s20
      $region32: #{_lambda_.5} parent=27 // pred_fallthru
        _
      // Predicated region
      $region33: #{_lambda_.5} parent=27 // pred_check
        %p989 = pneg %p128
      $region34: #{_lambda_.5} parent=27 // pred_check_branch
        %991 = sbr.rel (%p989) target = $region36
      $region35: #{_lambda_.5} parent=27 // pred_region
        _
      $region36: #{_lambda_.5} parent=27 // pred_fallthru
        _
      // Predicated region
      $region37: #{_lambda_.5} parent=27 // pred_check
        %p992 = pneg %p156
      $region38: #{_lambda_.5} parent=27 // pred_check_branch
        %994 = sbr.rel (%p992) target = $region40
      $region39: #{_lambda_.5} parent=27 // pred_region
        _
      $region40: #{_lambda_.5} parent=27 // pred_fallthru
        _
    $region28: #{_lambda_.5} parent=5 // pred_fallthru
      _
    %p995 = scmp.le.s32.totalorder 2, %s11
    // Predicated region
    $region41: #{_lambda_.5} parent=5 // pred_check
      %p996 = pneg %p995
    $region42: #{_lambda_.5} parent=5 // pred_check_branch
      %998 = sbr.rel (%p996) target = $region44
    $region43: #{_lambda_.5} parent=5 // pred_region
      %s999 = ssub.s32 %s11, 2
      // Predicated region
      $region45: #{_lambda_.5} parent=43 // pred_check
        %p1000 = pneg %p106
      $region46: #{_lambda_.5} parent=43 // pred_check_branch
        %1002 = sbr.rel (%p1000) target = $region48
      $region47: #{_lambda_.5} parent=43 // pred_region
        %s1003 = smul.u32 32, %s22
        %p1004 = scmp.lt.s32.totalorder %s1003, 63
        %s1005 = scalar_select %p1004, %s1003, 63
        %p1006 = scmp.lt.s32.totalorder %s23, 0
        %s1007 = scalar_select %p1006, %s23, 0
        %s1008 = sadd.s32 %s1007, %s1005
        %s1009 = smul.addr %s1008, 4
        %s1010 = scalar_lea.vmem %s2, %s1009
      $region48: #{_lambda_.5} parent=43 // pred_fallthru
        _
      // Predicated region
      $region49: #{_lambda_.5} parent=43 // pred_check
        %p1011 = pneg %p134
      $region50: #{_lambda_.5} parent=43 // pred_check_branch
        %1013 = sbr.rel (%p1011) target = $region52
      $region51: #{_lambda_.5} parent=43 // pred_region
        %p1014 = scmp.lt.s32.totalorder %s22, 1
        %s1015 = scalar_select %p1014, %s22, 1
        %p1016 = scmp.lt.s32.totalorder %s23, 0
        %s1017 = scalar_select %p1016, %s23, 0
        %s1018 = sadd.s32 %s1017, %s1015
        %s1019 = smul.addr %s1018, 8
        %s1020 = scalar_lea.vmem %s3, %s1019
      $region52: #{_lambda_.5} parent=43 // pred_fallthru
        _
      // Predicated region
      $region53: #{_lambda_.5} parent=43 // pred_check
        %p1021 = pneg %p162
      $region54: #{_lambda_.5} parent=43 // pred_check_branch
        %1023 = sbr.rel (%p1021) target = $region56
      $region55: #{_lambda_.5} parent=43 // pred_region
        %p1024 = scmp.lt.s32.totalorder %s22, 1
        %s1025 = scalar_select %p1024, %s22, 1
        %p1026 = scmp.lt.s32.totalorder %s23, 0
        %s1027 = scalar_select %p1026, %s23, 0
        %s1028 = sadd.s32 %s1027, %s1025
        %s1029 = smul.addr %s1028, 8
        %s1030 = scalar_lea.vmem %s4, %s1029
      $region56: #{_lambda_.5} parent=43 // pred_fallthru
        _
    $region44: #{_lambda_.5} parent=5 // pred_fallthru
      _
  $region6: #{_lambda_.5} parent=0 // loop_footer
    %s15 = sadd.s32 1, %s11
  $region7: #{_lambda_.5} parent=0 // loop_footer_branch
    %10 = sbr.rel target = $region3
  $region8: #{_lambda_.5} parent=0 // loop_exit
    _

// kernel: _lambda_.7
$region0: #{_lambda_.7}
  #allocation0 [shape = 'u32[]', space=smem, size = 0x4, offset = 0x4, fixed_abs, tag = 'smem constant byte address 0x4 - core index']
  #allocation1 [shape = 'u32[144,128]{1,0:T(1,128)}', space=vmem, size = 0x12000, scoped, tag = 'internal scratch']
  %s0 = inlined_call_operand.vmem [shape: bf16[128,64], index: 0, kind: input, shape index: {}]
  %s1 = inlined_call_operand.vmem [shape: bf16[64,256], index: 1, kind: input, shape index: {}]
  %s2 = inlined_call_operand.vmem [shape: f32[1,64], index: 2, kind: input, shape index: {}]
  %s3 = inlined_call_operand.vmem [shape: f32[1,64], index: 3, kind: input, shape index: {}]
  %s4 = inlined_call_operand.vmem [shape: bf16[128,256], index: 4, kind: output, shape index: {0}]
  %s5 = inlined_call_operand.vmem [shape: f32[16,256], index: 5, kind: output, shape index: {1}]
  %s6 = inlined_call_operand.vmem [shape: f32[16,256], index: 6, kind: output, shape index: {2}]
  %7 = xla_tuple %s4, %s5, %s6
  %s8 = sld [smem:[#allocation0]]
  $region65: #{_lambda_.7} parent=0
    _
  %s10 = ssub.s32 1, %s8
  %s11 = scalar_select 0, %s10, %s8
  loop: start=0, step=1, limit=4
  $region2: #{_lambda_.7} parent=0 // loop_pre_header
    _
  $region3: #{_lambda_.7} parent=0 // loop_header
    %s13 = sphi 0, %s17
    %p14 = scmp.ge.s32.totalorder %s13, 4
    %s20 = sphi 0, %s32
    %s21 = sphi 0, %s28
    %s22 = sphi 0, %s20
    %s23 = sphi 0, %s21
    %s24 = sphi 0, %s22
    %s25 = sphi 0, %s23
    %s35 = sphi 0, %s37
    %s38 = sphi 0, %s35
    %s39 = sphi 0, %s38
    %s55 = sphi 0, %s39
    %s61 = sphi 0, %s63
    %s64 = sphi 0, %s61
    %s65 = sphi 0, %s64
    %s81 = sphi 0, %s65
    %s85 = sphi 0, %s85
    %s87 = sphi 0, %s85
    %s88 = sphi 0, %s87
    %s102 = sphi 0, %s88
    %s106 = sphi 0, %s106
    %s108 = sphi 0, %s106
    %s109 = sphi 0, %s108
    %s123 = sphi 0, %s109
    %s131 = sphi 0, %s133
    %s134 = sphi 0, %s131
    %s135 = sphi 0, %s134
    %s151 = sphi 0, %s135
    %s159 = sphi 0, %s161
    %s162 = sphi 0, %s159
    %s163 = sphi 0, %s162
    %s179 = sphi 0, %s163
    %s187 = sphi 0, %s189
    %s190 = sphi 0, %s187
    %s191 = sphi 0, %s190
    %s207 = sphi 0, %s191
  $region4: #{_lambda_.7} parent=0 // loop_header_branch
    %16 = sbr.rel (%p14) target = $region8
  $region5: #{_lambda_.7} parent=0 // loop_body
    %s18 = ssub.s32 %s13, 1
    %s19 = ssub.s32 %s13, 2
    %s26 = sadd.s32 1, %s21
    %p27 = scmp.ge.s32.totalorder %s26, 1
    %s28 = scalar_select %p27, 0, %s26
    %s29 = sadd.s32 1, %s20
    %s30 = scalar_select %p27, %s29, %s20
    %p31 = scmp.ge.s32.totalorder %s30, 2
    %s32 = scalar_select %p31, 0, %s30
    %s33 = ssub.s32 %s20, %s32
    %p34 = scmp.eq.s32.totalorder %s33, 0
    %s36 = sadd.s32 %s35, 1
    %s37 = scalar_select %p34, %s35, %s36
    %p40 = pneg %p34
    %p41 = scmp.eq.s32.totalorder %s13, 1
    %p42 = por %p40, %p41
    %p43 = scmp.ne.s32.totalorder %s35, %s38
    %p44 = scmp.eq.s32.totalorder %s13, 0
    %p45 = por %p43, %p44
    %p46 = scmp.ne.s32.totalorder %s35, %s38
    %p47 = scmp.eq.s32.totalorder %s18, 1
    %p48 = por %p46, %p47
    %p49 = scmp.ne.s32.totalorder %s38, %s39
    %p50 = scmp.eq.s32.totalorder %s18, 0
    %p51 = por %p49, %p50
    %p52 = scmp.ne.s32.totalorder %s38, %s39
    %p53 = scmp.eq.s32.totalorder %s19, 1
    %p54 = por %p52, %p53
    %p56 = scmp.ne.s32.totalorder %s39, %s55
    %p57 = scmp.eq.s32.totalorder %s19, 0
    %p58 = por %p56, %p57
    %s59 = ssub.s32 %s21, %s28
    %p60 = scmp.eq.s32.totalorder %s59, 0
    %s62 = sadd.s32 %s61, 1
    %s63 = scalar_select %p60, %s61, %s62
    %p66 = pneg %p60
    %p67 = scmp.eq.s32.totalorder %s13, 1
    %p68 = por %p66, %p67
    %p69 = scmp.ne.s32.totalorder %s61, %s64
    %p70 = scmp.eq.s32.totalorder %s13, 0
    %p71 = por %p69, %p70
    %p72 = scmp.ne.s32.totalorder %s61, %s64
    %p73 = scmp.eq.s32.totalorder %s18, 1
    %p74 = por %p72, %p73
    %p75 = scmp.ne.s32.totalorder %s64, %s65
    %p76 = scmp.eq.s32.totalorder %s18, 0
    %p77 = por %p75, %p76
    %p78 = scmp.ne.s32.totalorder %s64, %s65
    %p79 = scmp.eq.s32.totalorder %s19, 1
    %p80 = por %p78, %p79
    %p82 = scmp.ne.s32.totalorder %s65, %s81
    %p83 = scmp.eq.s32.totalorder %s19, 0
    %p84 = por %p82, %p83
    %s86 = sadd.s32 %s85, 1
    %p89 = scmp.eq.s32.totalorder %s13, 1
    %p90 = scmp.ne.s32.totalorder %s85, %s87
    %p91 = scmp.eq.s32.totalorder %s13, 0
    %p92 = por %p90, %p91
    %p93 = scmp.ne.s32.totalorder %s85, %s87
    %p94 = scmp.eq.s32.totalorder %s18, 1
    %p95 = por %p93, %p94
    %p96 = scmp.ne.s32.totalorder %s87, %s88
    %p97 = scmp.eq.s32.totalorder %s18, 0
    %p98 = por %p96, %p97
    %p99 = scmp.ne.s32.totalorder %s87, %s88
    %p100 = scmp.eq.s32.totalorder %s19, 1
    %p101 = por %p99, %p100
    %p103 = scmp.ne.s32.totalorder %s88, %s102
    %p104 = scmp.eq.s32.totalorder %s19, 0
    %p105 = por %p103, %p104
    %s107 = sadd.s32 %s106, 1
    %p110 = scmp.eq.s32.totalorder %s13, 1
    %p111 = scmp.ne.s32.totalorder %s106, %s108
    %p112 = scmp.eq.s32.totalorder %s13, 0
    %p113 = por %p111, %p112
    %p114 = scmp.ne.s32.totalorder %s106, %s108
    %p115 = scmp.eq.s32.totalorder %s18, 1
    %p116 = por %p114, %p115
    %p117 = scmp.ne.s32.totalorder %s108, %s109
    %p118 = scmp.eq.s32.totalorder %s18, 0
    %p119 = por %p117, %p118
    %p120 = scmp.ne.s32.totalorder %s108, %s109
    %p121 = scmp.eq.s32.totalorder %s19, 1
    %p122 = por %p120, %p121
    %p124 = scmp.ne.s32.totalorder %s109, %s123
    %p125 = scmp.eq.s32.totalorder %s19, 0
    %p126 = por %p124, %p125
    %s127 = ssub.s32 %s20, %s32
    %s128 = ssub.s32 %s21, %s28
    %s129 = sor.u32 %s127, %s128
    %p130 = scmp.eq.s32.totalorder %s129, 0
    %s132 = sadd.s32 %s131, 1
    %s133 = scalar_select %p130, %s131, %s132
    %p136 = pneg %p130
    %p137 = scmp.eq.s32.totalorder %s13, 1
    %p138 = por %p136, %p137
    %p139 = scmp.ne.s32.totalorder %s131, %s134
    %p140 = scmp.eq.s32.totalorder %s13, 0
    %p141 = por %p139, %p140
    %p142 = scmp.ne.s32.totalorder %s131, %s134
    %p143 = scmp.eq.s32.totalorder %s18, 1
    %p144 = por %p142, %p143
    %p145 = scmp.ne.s32.totalorder %s134, %s135
    %p146 = scmp.eq.s32.totalorder %s18, 0
    %p147 = por %p145, %p146
    %p148 = scmp.ne.s32.totalorder %s134, %s135
    %p149 = scmp.eq.s32.totalorder %s19, 1
    %p150 = por %p148, %p149
    %p152 = scmp.ne.s32.totalorder %s135, %s151
    %p153 = scmp.eq.s32.totalorder %s19, 0
    %p154 = por %p152, %p153
    %s155 = ssub.s32 %s20, %s32
    %s156 = ssub.s32 %s21, %s28
    %s157 = sor.u32 %s155, %s156
    %p158 = scmp.eq.s32.totalorder %s157, 0
    %s160 = sadd.s32 %s159, 1
    %s161 = scalar_select %p158, %s159, %s160
    %p164 = pneg %p158
    %p165 = scmp.eq.s32.totalorder %s13, 1
    %p166 = por %p164, %p165
    %p167 = scmp.ne.s32.totalorder %s159, %s162
    %p168 = scmp.eq.s32.totalorder %s13, 0
    %p169 = por %p167, %p168
    %p170 = scmp.ne.s32.totalorder %s159, %s162
    %p171 = scmp.eq.s32.totalorder %s18, 1
    %p172 = por %p170, %p171
    %p173 = scmp.ne.s32.totalorder %s162, %s163
    %p174 = scmp.eq.s32.totalorder %s18, 0
    %p175 = por %p173, %p174
    %p176 = scmp.ne.s32.totalorder %s162, %s163
    %p177 = scmp.eq.s32.totalorder %s19, 1
    %p178 = por %p176, %p177
    %p180 = scmp.ne.s32.totalorder %s163, %s179
    %p181 = scmp.eq.s32.totalorder %s19, 0
    %p182 = por %p180, %p181
    %s183 = ssub.s32 %s20, %s32
    %s184 = ssub.s32 %s21, %s28
    %s185 = sor.u32 %s183, %s184
    %p186 = scmp.eq.s32.totalorder %s185, 0
    %s188 = sadd.s32 %s187, 1
    %s189 = scalar_select %p186, %s187, %s188
    %p192 = pneg %p186
    %p193 = scmp.eq.s32.totalorder %s13, 1
    %p194 = por %p192, %p193
    %p195 = scmp.ne.s32.totalorder %s187, %s190
    %p196 = scmp.eq.s32.totalorder %s13, 0
    %p197 = por %p195, %p196
    %p198 = scmp.ne.s32.totalorder %s187, %s190
    %p199 = scmp.eq.s32.totalorder %s18, 1
    %p200 = por %p198, %p199
    %p201 = scmp.ne.s32.totalorder %s190, %s191
    %p202 = scmp.eq.s32.totalorder %s18, 0
    %p203 = por %p201, %p202
    %p204 = scmp.ne.s32.totalorder %s190, %s191
    %p205 = scmp.eq.s32.totalorder %s19, 1
    %p206 = por %p204, %p205
    %p208 = scmp.ne.s32.totalorder %s191, %s207
    %p209 = scmp.eq.s32.totalorder %s19, 0
    %p210 = por %p208, %p209
    %p211 = scmp.le.s32.totalorder 1, %s13
    %p212 = scmp.lt.s32.totalorder %s13, 3
    %p213 = pnand %p211, %p212
    %p214 = pneg %p213
    // Predicated region
    $region9: #{_lambda_.7} parent=5 // pred_check
      _
    $region10: #{_lambda_.7} parent=5 // pred_check_branch
      %216 = sbr.rel (%p213) target = $region12
    $region11: #{_lambda_.7} parent=5 // pred_region
      %s217 = ssub.s32 %s13, 1
      // Predicated region
      $region13: #{_lambda_.7} parent=11 // pred_check
        %p218 = pneg %p77
      $region14: #{_lambda_.7} parent=11 // pred_check_branch
        %220 = sbr.rel (%p218) target = $region16
      $region15: #{_lambda_.7} parent=11 // pred_region
        %s221 = smul.u32 2, %s23
        %p222 = scmp.lt.s32.totalorder %s221, 1
        %s223 = scalar_select %p222, %s221, 1
        %s224 = smul.addr %s223, 4
        %s225 = scalar_lea.vmem %s1, %s224
        %s226 = smul.u32 2, %s23
      $region16: #{_lambda_.7} parent=11 // pred_fallthru
        _
      // Predicated region
      $region17: #{_lambda_.7} parent=11 // pred_check
        %p227 = pneg %p98
      $region18: #{_lambda_.7} parent=11 // pred_check_branch
        %229 = sbr.rel (%p227) target = $region20
      $region19: #{_lambda_.7} parent=11 // pred_region
        _
      $region20: #{_lambda_.7} parent=11 // pred_fallthru
        _
      // Predicated region
      $region21: #{_lambda_.7} parent=11 // pred_check
        %p230 = pneg %p119
      $region22: #{_lambda_.7} parent=11 // pred_check_branch
        %232 = sbr.rel (%p230) target = $region24
      $region23: #{_lambda_.7} parent=11 // pred_region
        _
      $region24: #{_lambda_.7} parent=11 // pred_fallthru
        _
    $region12: #{_lambda_.7} parent=5 // pred_fallthru
      _
    %p233 = scmp.lt.s32.totalorder %s13, 2
    // Predicated region
    $region25: #{_lambda_.7} parent=5 // pred_check
      %p234 = pneg %p233
    $region26: #{_lambda_.7} parent=5 // pred_check_branch
      %236 = sbr.rel (%p234) target = $region28
    $region27: #{_lambda_.7} parent=5 // pred_region
      // Predicated region
      $region29: #{_lambda_.7} parent=27 // pred_check
        %p237 = pneg %p45
      $region30: #{_lambda_.7} parent=27 // pred_check_branch
        %239 = sbr.rel (%p237) target = $region32
      $region31: #{_lambda_.7} parent=27 // pred_region
        %s240 = smul.u32 8, %s20
        %p241 = scmp.lt.s32.totalorder %s240, 15
        %s242 = scalar_select %p241, %s240, 15
        %s243 = smul.addr %s242, 4
        %s244 = scalar_lea.vmem %s0, %s243
        %s245 = smul.u32 8, %s20
      $region32: #{_lambda_.7} parent=27 // pred_fallthru
        _
    $region28: #{_lambda_.7} parent=5 // pred_fallthru
      _
    %p246 = scmp.le.s32.totalorder 1, %s13
    %p247 = scmp.lt.s32.totalorder %s13, 3
    %p248 = pnand %p246, %p247
    %p249 = pneg %p248
    // Predicated region
    $region33: #{_lambda_.7} parent=5 // pred_check
      _
    $region34: #{_lambda_.7} parent=5 // pred_check_branch
      %251 = sbr.rel (%p248) target = $region36
    $region35: #{_lambda_.7} parent=5 // pred_region
      %s252 = ssub.s32 %s13, 1
      %s253 = smul.u32 8, %s22
      %p254 = scmp.lt.s32.totalorder %s253, 15
      %s255 = scalar_select %p254, %s253, 15
      %s256 = smul.addr %s255, 4
      %s257 = scalar_lea.vmem %s0, %s256
      %p258 = pneg %p51
      %p259 = pneg %p48
      %s260 = smul.u32 2, %s23
      %p261 = scmp.lt.s32.totalorder %s260, 1
      %s262 = scalar_select %p261, %s260, 1
      %s263 = smul.addr %s262, 4
      %s264 = scalar_lea.vmem %s1, %s263
      %p265 = pneg %p77
      %p266 = pneg %p74
      %p267 = pneg %p98
      %p268 = pneg %p95
      %p269 = pneg %p119
      %p270 = pneg %p116
      %p271 = pneg %p147
      %p272 = pneg %p144
      %s273 = smul.u32 8, %s22
      %s274 = smul.u32 2, %s23
      %p275 = scmp.lt.s32.totalorder %s273, 15
      %s276 = scalar_select %p275, %s273, 15
      %p277 = scmp.lt.s32.totalorder %s274, 1
      %s278 = scalar_select %p277, %s274, 1
      %s279 = smul.addr %s276, 2
      %s280 = sadd.s32 %s278, %s279
      %s281 = smul.addr %s280, 4
      %s282 = scalar_lea.vmem %s4, %s281
      %p283 = pneg %p175
      %p284 = pneg %p172
      %s285 = smul.u32 2, %s23
      %p286 = scmp.lt.s32.totalorder %s22, 1
      %s287 = scalar_select %p286, %s22, 1
      %p288 = scmp.lt.s32.totalorder %s285, 1
      %s289 = scalar_select %p288, %s285, 1
      %s290 = smul.addr %s287, 2
      %s291 = sadd.s32 %s289, %s290
      %s292 = smul.addr %s291, 8
      %s293 = scalar_lea.vmem %s5, %s292
      %p294 = pneg %p203
      %p295 = pneg %p200
      %s296 = smul.u32 2, %s23
      %p297 = scmp.lt.s32.totalorder %s22, 1
      %s298 = scalar_select %p297, %s22, 1
      %p299 = scmp.lt.s32.totalorder %s296, 1
      %s300 = scalar_select %p299, %s296, 1
      %s301 = smul.addr %s298, 2
      %s302 = sadd.s32 %s300, %s301
      %s303 = smul.addr %s302, 8
      %s304 = scalar_lea.vmem %s6, %s303
      %s305 = smul.u32 8, %s22
      %p306 = scmp.lt.s32.totalorder %s305, 15
      %s307 = scalar_select %p306, %s305, 15
      %s308 = smul.addr %s307, 4
      %s309 = scalar_lea.vmem %s0, %s308
      %s310 = smul.u32 8, %s22
      %s311 = smul.u32 2, %s23
      %p312 = scmp.lt.s32.totalorder %s311, 1
      %s313 = scalar_select %p312, %s311, 1
      %s314 = smul.addr %s313, 4
      %s315 = scalar_lea.vmem %s1, %s314
      %s316 = smul.u32 2, %s23
      %s317 = smul.u32 8, %s22
      %s318 = smul.u32 2, %s23
      %p319 = scmp.lt.s32.totalorder %s317, 15
      %s320 = scalar_select %p319, %s317, 15
      %p321 = scmp.lt.s32.totalorder %s318, 1
      %s322 = scalar_select %p321, %s318, 1
      %s323 = smul.addr %s320, 2
      %s324 = sadd.s32 %s322, %s323
      %s325 = smul.addr %s324, 4
      %s326 = scalar_lea.vmem %s4, %s325
      %s327 = smul.u32 8, %s22
      %s328 = smul.u32 2, %s23
      %s329 = smul.u32 2, %s23
      %p330 = scmp.lt.s32.totalorder %s22, 1
      %s331 = scalar_select %p330, %s22, 1
      %p332 = scmp.lt.s32.totalorder %s329, 1
      %s333 = scalar_select %p332, %s329, 1
      %s334 = smul.addr %s331, 2
      %s335 = sadd.s32 %s333, %s334
      %s336 = smul.addr %s335, 8
      %s337 = scalar_lea.vmem %s5, %s336
      %s338 = smul.u32 2, %s23
      %s339 = smul.u32 2, %s23
      %p340 = scmp.lt.s32.totalorder %s22, 1
      %s341 = scalar_select %p340, %s22, 1
      %p342 = scmp.lt.s32.totalorder %s339, 1
      %s343 = scalar_select %p342, %s339, 1
      %s344 = smul.addr %s341, 2
      %s345 = sadd.s32 %s343, %s344
      %s346 = smul.addr %s345, 8
      %s347 = scalar_lea.vmem %s6, %s346
      %s348 = smul.u32 2, %s23
      %v350 = vld [vmem:[%s309] sm:$0xf]
      %v351 = vld [vmem:[%s309 + $0x4] sm:$0xf]
      %v352 = vld [vmem:[%s309 + $0x8] sm:$0xf]
      %v353 = vld [vmem:[%s309 + $0xc] sm:$0xf]
      %v354 = vld [vmem:[%s309 + $0x10] sm:$0xf]
      %v355 = vld [vmem:[%s309 + $0x14] sm:$0xf]
      %v356 = vld [vmem:[%s309 + $0x18] sm:$0xf]
      %v357 = vld [vmem:[%s309 + $0x1c] sm:$0xf]
      %v358 = vunpack.c.l.bf16 %v350
      %v359 = vunpack.c.l.bf16 %v351
      %v360 = vunpack.c.l.bf16 %v352
      %v361 = vunpack.c.l.bf16 %v353
      %v362 = vunpack.c.l.bf16 %v354
      %v363 = vunpack.c.l.bf16 %v355
      %v364 = vunpack.c.l.bf16 %v356
      %v365 = vunpack.c.l.bf16 %v357
      %v366 = vld [vmem:[%s2] sm:$0x1]
      %v368 = vlaneseq
      %v369 = vshrl.u32 %v368, 7
      %v370 = vsub.s32 0, %v369
      %v371 = vrot.slane %v366, %v370
      %v373 = vsub.f32 %v358, %v371
      %v374 = vsub.f32 %v359, %v371
      %v375 = vsub.f32 %v360, %v371
      %v376 = vsub.f32 %v361, %v371
      %v377 = vsub.f32 %v362, %v371
      %v378 = vsub.f32 %v363, %v371
      %v379 = vsub.f32 %v364, %v371
      %v380 = vsub.f32 %v365, %v371
      %v381 = vld [vmem:[%s3] sm:$0x1]
      %v383 = vlaneseq
      %v384 = vshrl.u32 %v383, 7
      %v385 = vsub.s32 0, %v384
      %v386 = vrot.slane %v381, %v385
      %v388 = vmul.f32 %v373, %v386
      %v389 = vmul.f32 %v374, %v386
      %v390 = vmul.f32 %v375, %v386
      %v391 = vmul.f32 %v376, %v386
      %v392 = vmul.f32 %v377, %v386
      %v393 = vmul.f32 %v378, %v386
      %v394 = vmul.f32 %v379, %v386
      %v395 = vmul.f32 %v380, %v386
      %v396 = vmax.f32 %v388, 0.0
      %v397 = vmax.f32 %v389, 0.0
      %v398 = vmax.f32 %v390, 0.0
      %v399 = vmax.f32 %v391, 0.0
      %v400 = vmax.f32 %v392, 0.0
      %v401 = vmax.f32 %v393, 0.0
      %v402 = vmax.f32 %v394, 0.0
      %v403 = vmax.f32 %v395, 0.0
      %v404 = vpack.c.bf16 %v397, %v396
      %v405 = vpack.c.bf16 %v399, %v398
      %v406 = vpack.c.bf16 %v401, %v400
      %v407 = vpack.c.bf16 %v403, %v402
      %v408 = vld [vmem:[%s315] sm:$0xff]
      %v409 = vld [vmem:[%s315 + $0x8] sm:$0xff]
      %v410 = vld [vmem:[%s315 + $0x10] sm:$0xff]
      %v411 = vld [vmem:[%s315 + $0x18] sm:$0xff]
      %v412 = vld [vmem:[%s315 + $0x20] sm:$0xff]
      %v413 = vld [vmem:[%s315 + $0x28] sm:$0xff]
      %v414 = vld [vmem:[%s315 + $0x30] sm:$0xff]
      %v415 = vld [vmem:[%s315 + $0x38] sm:$0xff]
      %v424 = vunpack.c.l.b16 %v408
      %v425 = vunpack.c.h.b16 %v408
      %v426 = vunpack.c.l.b16 %v409
      %v427 = vunpack.c.h.b16 %v409
      %v428 = vunpack.c.l.b16 %v410
      %v429 = vunpack.c.h.b16 %v410
      %v430 = vunpack.c.l.b16 %v411
      %v431 = vunpack.c.h.b16 %v411
      %v432 = vunpack.c.l.b16 %v412
      %v433 = vunpack.c.h.b16 %v412
      %v434 = vunpack.c.l.b16 %v413
      %v435 = vunpack.c.h.b16 %v413
      %v436 = vunpack.c.l.b16 %v414
      %v437 = vunpack.c.h.b16 %v414
      %v438 = vunpack.c.l.b16 %v415
      %v439 = vunpack.c.h.b16 %v415
      %v440 = vpack.c.b16 %v426, %v424
      %v441 = vpack.c.b16 %v427, %v425
      %v442 = vpack.c.b16 %v430, %v428
      %v443 = vpack.c.b16 %v431, %v429
      %v444 = vpack.c.b16 %v434, %v432
      %v445 = vpack.c.b16 %v435, %v433
      %v446 = vpack.c.b16 %v438, %v436
      %v447 = vpack.c.b16 %v439, %v437
      %vm456 = vcmask 523264
      %v458 = vsel %vm456, %v404, 0
      %v461 = vsel %vm456, %v405, 0
      %v464 = vsel %vm456, %v406, 0
      %v467 = vsel %vm456, %v407, 0
      %469 = vmatprep.subr.bf16.mxu0 0
      %470 = vmatpush1.bf16.msra.mxu0 0
      %471 = vmatprep.subr.bf16.mxu0 0
      %472 = vmatpush1.bf16.msra.mxu0 0
      %473 = vmatprep.subr.bf16.mxu0 0
      %474 = vmatpush1.bf16.msra.mxu0 0
      %475 = vmatprep.subr.bf16.mxu0 0
      %476 = vmatpush1.bf16.msra.mxu0 0
      %477 = vmatprep.subr.bf16.mxu0 %v447
      %478 = vmatpush1.bf16.msra.mxu0 %v446
      %479 = vmatprep.subr.bf16.mxu0 %v445
      %480 = vmatpush1.bf16.msra.mxu0 %v444
      %481 = vmatprep.subr.bf16.mxu0 %v443
      %482 = vmatpush1.bf16.msra.mxu0 %v442
      %483 = vmatprep.subr.bf16.mxu0 %v441
      %484 = vmatpush1.bf16.msra.mxu0 %v440
      %485 = vmatprep.subr.bf16.mxu0 0
      %486 = vmatpush2.bf16.msra.mxu0 0
      %487 = vmatprep.subr.bf16.mxu0 0
      %488 = vmatpush2.bf16.msra.mxu0 0
      %489 = vmatprep.subr.bf16.mxu0 0
      %490 = vmatpush2.bf16.msra.mxu0 0
      %491 = vmatprep.subr.bf16.mxu0 0
      %492 = vmatpush2.bf16.msra.mxu0 0
      %493 = vmatprep.subr.bf16.mxu0 0
      %494 = vmatpush2.bf16.msra.mxu0 0
      %495 = vmatprep.subr.bf16.mxu0 0
      %496 = vmatpush2.bf16.msra.mxu0 0
      %497 = vmatprep.subr.bf16.mxu0 0
      %498 = vmatpush2.bf16.msra.mxu0 0
      %499 = vmatprep.subr.bf16.mxu0 0
      %500 = vmatpush2.bf16.msra.mxu0 0
      %501 = vmatprep.mubr.bf16.mxu0 0
      %502 = vmatmul.mubr.bf16.gmra.mxu0 %v458
      %v503 = vpop.f32.mrf.mxu0
      %v504 = vadd.f32 0.0, %v503
      %v505 = vpop.f32.mrf.mxu0
      %v506 = vadd.f32 0.0, %v505
      %v507 = vpop.f32.mrf.mxu0
      %v508 = vadd.f32 0.0, %v507
      %v509 = vpop.f32.mrf.mxu0
      %v510 = vadd.f32 0.0, %v509
      %511 = vmatprep.mubr.bf16.mxu0 0
      %512 = vmatmul.mubr.bf16.gmra.mxu0 %v461
      %v513 = vpop.f32.mrf.mxu0
      %v514 = vadd.f32 0.0, %v513
      %v515 = vpop.f32.mrf.mxu0
      %v516 = vadd.f32 0.0, %v515
      %v517 = vpop.f32.mrf.mxu0
      %v518 = vadd.f32 0.0, %v517
      %v519 = vpop.f32.mrf.mxu0
      %v520 = vadd.f32 0.0, %v519
      %521 = vmatprep.mubr.bf16.mxu0 0
      %522 = vmatmul.mubr.bf16.gmra.mxu0 %v464
      %v523 = vpop.f32.mrf.mxu0
      %v524 = vadd.f32 0.0, %v523
      %v525 = vpop.f32.mrf.mxu0
      %v526 = vadd.f32 0.0, %v525
      %v527 = vpop.f32.mrf.mxu0
      %v528 = vadd.f32 0.0, %v527
      %v529 = vpop.f32.mrf.mxu0
      %v530 = vadd.f32 0.0, %v529
      %531 = vmatprep.mubr.bf16.mxu0 0
      %532 = vmatmul.mubr.bf16.gmra.mxu0 %v467
      %v533 = vpop.f32.mrf.mxu0
      %v534 = vadd.f32 0.0, %v533
      %v535 = vpop.f32.mrf.mxu0
      %v536 = vadd.f32 0.0, %v535
      %v537 = vpop.f32.mrf.mxu0
      %v538 = vadd.f32 0.0, %v537
      %v539 = vpop.f32.mrf.mxu0
      %v540 = vadd.f32 0.0, %v539
      %541 = vdwg.mxu0
      %v542 = vpack.c.bf16 %v508, %v504
      %v543 = vpack.c.bf16 %v510, %v506
      %v544 = vpack.c.bf16 %v518, %v514
      %v545 = vpack.c.bf16 %v520, %v516
      %v546 = vpack.c.bf16 %v528, %v524
      %v547 = vpack.c.bf16 %v530, %v526
      %v548 = vpack.c.bf16 %v538, %v534
      %v549 = vpack.c.bf16 %v540, %v536
      %v558 = vunpack.c.l.b16 %v542
      %v559 = vunpack.c.l.b16 %v543
      %v560 = vunpack.c.h.b16 %v542
      %v561 = vunpack.c.h.b16 %v543
      %v562 = vunpack.c.l.b16 %v544
      %v563 = vunpack.c.l.b16 %v545
      %v564 = vunpack.c.h.b16 %v544
      %v565 = vunpack.c.h.b16 %v545
      %v566 = vunpack.c.l.b16 %v546
      %v567 = vunpack.c.l.b16 %v547
      %v568 = vunpack.c.h.b16 %v546
      %v569 = vunpack.c.h.b16 %v547
      %v570 = vunpack.c.l.b16 %v548
      %v571 = vunpack.c.l.b16 %v549
      %v572 = vunpack.c.h.b16 %v548
      %v573 = vunpack.c.h.b16 %v549
      %v574 = vpack.c.b16 %v559, %v558
      %v575 = vpack.c.b16 %v561, %v560
      %v576 = vpack.c.b16 %v563, %v562
      %v577 = vpack.c.b16 %v565, %v564
      %v578 = vpack.c.b16 %v567, %v566
      %v579 = vpack.c.b16 %v569, %v568
      %v580 = vpack.c.b16 %v571, %v570
      %v581 = vpack.c.b16 %v573, %v572
      %590 = vst [vmem:[%s326] sm:$0xff] %v574
      %591 = vst [vmem:[%s326 + $0x8] sm:$0xff] %v575
      %592 = vst [vmem:[%s326 + $0x10] sm:$0xff] %v576
      %593 = vst [vmem:[%s326 + $0x18] sm:$0xff] %v577
      %594 = vst [vmem:[%s326 + $0x20] sm:$0xff] %v578
      %595 = vst [vmem:[%s326 + $0x28] sm:$0xff] %v579
      %596 = vst [vmem:[%s326 + $0x30] sm:$0xff] %v580
      %597 = vst [vmem:[%s326 + $0x38] sm:$0xff] %v581
      %v598 = vadd.f32 %v504, %v508
      %v599 = vadd.f32 %v598, %v514
      %v600 = vadd.f32 %v599, %v518
      %v601 = vadd.f32 %v600, %v524
      %v602 = vadd.f32 %v601, %v528
      %v603 = vadd.f32 %v602, %v534
      %v604 = vadd.f32 %v603, %v538
      %v605 = vrot.slane %v604, 4
      %v606 = vadd.f32 %v604, %v605
      %v607 = vrot.slane %v606, 2
      %v608 = vadd.f32 %v606, %v607
      %v609 = vrot.slane %v608, 1
      %v610 = vadd.f32 %v608, %v609
      %v611 = vadd.f32 %v506, %v510
      %v612 = vadd.f32 %v611, %v516
      %v613 = vadd.f32 %v612, %v520
      %v614 = vadd.f32 %v613, %v526
      %v615 = vadd.f32 %v614, %v530
      %v616 = vadd.f32 %v615, %v536
      %v617 = vadd.f32 %v616, %v540
      %v618 = vrot.slane %v617, 4
      %v619 = vadd.f32 %v617, %v618
      %v620 = vrot.slane %v619, 2
      %v621 = vadd.f32 %v619, %v620
      %v622 = vrot.slane %v621, 1
      %v623 = vadd.f32 %v621, %v622
      %v624 = vmul.f32 %v504, %v504
      %v625 = vmul.f32 %v506, %v506
      %v626 = vmul.f32 %v508, %v508
      %v627 = vmul.f32 %v510, %v510
      %v628 = vmul.f32 %v514, %v514
      %v629 = vmul.f32 %v516, %v516
      %v630 = vmul.f32 %v518, %v518
      %v631 = vmul.f32 %v520, %v520
      %v632 = vmul.f32 %v524, %v524
      %v633 = vmul.f32 %v526, %v526
      %v634 = vmul.f32 %v528, %v528
      %v635 = vmul.f32 %v530, %v530
      %v636 = vmul.f32 %v534, %v534
      %v637 = vmul.f32 %v536, %v536
      %v638 = vmul.f32 %v538, %v538
      %v639 = vmul.f32 %v540, %v540
      %v640 = vadd.f32 %v624, %v626
      %v641 = vadd.f32 %v640, %v628
      %v642 = vadd.f32 %v641, %v630
      %v643 = vadd.f32 %v642, %v632
      %v644 = vadd.f32 %v643, %v634
      %v645 = vadd.f32 %v644, %v636
      %v646 = vadd.f32 %v645, %v638
      %v647 = vrot.slane %v646, 4
      %v648 = vadd.f32 %v646, %v647
      %v649 = vrot.slane %v648, 2
      %v650 = vadd.f32 %v648, %v649
      %v651 = vrot.slane %v650, 1
      %v652 = vadd.f32 %v650, %v651
      %v653 = vadd.f32 %v625, %v627
      %v654 = vadd.f32 %v653, %v629
      %v655 = vadd.f32 %v654, %v631
      %v656 = vadd.f32 %v655, %v633
      %v657 = vadd.f32 %v656, %v635
      %v658 = vadd.f32 %v657, %v637
      %v659 = vadd.f32 %v658, %v639
      %v660 = vrot.slane %v659, 4
      %v661 = vadd.f32 %v659, %v660
      %v662 = vrot.slane %v661, 2
      %v663 = vadd.f32 %v661, %v662
      %v664 = vrot.slane %v663, 1
      %v665 = vadd.f32 %v663, %v664
      %666 = vst [vmem:[%s337] sm:$0xff] %v610
      %667 = vst [vmem:[%s337 + $0x8] sm:$0xff] %v623
      %668 = vst [vmem:[%s347] sm:$0xff] %v652
      %669 = vst [vmem:[%s347 + $0x8] sm:$0xff] %v665
      %s670 = smul.u32 8, %s22
      %s671 = smul.u32 2, %s23
      %p672 = scmp.lt.s32.totalorder %s670, 15
      %s673 = scalar_select %p672, %s670, 15
      %p674 = scmp.lt.s32.totalorder %s671, 1
      %s675 = scalar_select %p674, %s671, 1
      %s676 = smul.addr %s673, 2
      %s677 = sadd.s32 %s675, %s676
      %s678 = smul.addr %s677, 4
      %s679 = scalar_lea.vmem %s4, %s678
      %s680 = smul.u32 2, %s23
      %p681 = scmp.lt.s32.totalorder %s22, 1
      %s682 = scalar_select %p681, %s22, 1
      %p683 = scmp.lt.s32.totalorder %s680, 1
      %s684 = scalar_select %p683, %s680, 1
      %s685 = smul.addr %s682, 2
      %s686 = sadd.s32 %s684, %s685
      %s687 = smul.addr %s686, 8
      %s688 = scalar_lea.vmem %s5, %s687
      %s689 = smul.u32 2, %s23
      %p690 = scmp.lt.s32.totalorder %s22, 1
      %s691 = scalar_select %p690, %s22, 1
      %p692 = scmp.lt.s32.totalorder %s689, 1
      %s693 = scalar_select %p692, %s689, 1
      %s694 = smul.addr %s691, 2
      %s695 = sadd.s32 %s693, %s694
      %s696 = smul.addr %s695, 8
      %s697 = scalar_lea.vmem %s6, %s696
      // Predicated region
      $region37: #{_lambda_.7} parent=35 // pred_check
        %p698 = pneg %p144
      $region38: #{_lambda_.7} parent=35 // pred_check_branch
        %700 = sbr.rel (%p698) target = $region40
      $region39: #{_lambda_.7} parent=35 // pred_region
        %s701 = smul.u32 8, %s22
        %s702 = smul.u32 2, %s23
      $region40: #{_lambda_.7} parent=35 // pred_fallthru
        _
      // Predicated region
      $region41: #{_lambda_.7} parent=35 // pred_check
        %p703 = pneg %p172
      $region42: #{_lambda_.7} parent=35 // pred_check_branch
        %705 = sbr.rel (%p703) target = $region44
      $region43: #{_lambda_.7} parent=35 // pred_region
        %s706 = smul.u32 2, %s23
      $region44: #{_lambda_.7} parent=35 // pred_fallthru
        _
      // Predicated region
      $region45: #{_lambda_.7} parent=35 // pred_check
        %p707 = pneg %p200
      $region46: #{_lambda_.7} parent=35 // pred_check_branch
        %709 = sbr.rel (%p707) target = $region48
      $region47: #{_lambda_.7} parent=35 // pred_region
        %s710 = smul.u32 2, %s23
      $region48: #{_lambda_.7} parent=35 // pred_fallthru
        _
    $region36: #{_lambda_.7} parent=5 // pred_fallthru
      _
    %p711 = scmp.le.s32.totalorder 2, %s13
    // Predicated region
    $region49: #{_lambda_.7} parent=5 // pred_check
      %p712 = pneg %p711
    $region50: #{_lambda_.7} parent=5 // pred_check_branch
      %714 = sbr.rel (%p712) target = $region52
    $region51: #{_lambda_.7} parent=5 // pred_region
      %s715 = ssub.s32 %s13, 2
      // Predicated region
      $region53: #{_lambda_.7} parent=51 // pred_check
        %p716 = pneg %p150
      $region54: #{_lambda_.7} parent=51 // pred_check_branch
        %718 = sbr.rel (%p716) target = $region56
      $region55: #{_lambda_.7} parent=51 // pred_region
        %s719 = smul.u32 8, %s24
        %s720 = smul.u32 2, %s25
        %p721 = scmp.lt.s32.totalorder %s719, 15
        %s722 = scalar_select %p721, %s719, 15
        %p723 = scmp.lt.s32.totalorder %s720, 1
        %s724 = scalar_select %p723, %s720, 1
        %s725 = smul.addr %s722, 2
        %s726 = sadd.s32 %s724, %s725
        %s727 = smul.addr %s726, 4
        %s728 = scalar_lea.vmem %s4, %s727
      $region56: #{_lambda_.7} parent=51 // pred_fallthru
        _
      // Predicated region
      $region57: #{_lambda_.7} parent=51 // pred_check
        %p729 = pneg %p178
      $region58: #{_lambda_.7} parent=51 // pred_check_branch
        %731 = sbr.rel (%p729) target = $region60
      $region59: #{_lambda_.7} parent=51 // pred_region
        %s732 = smul.u32 2, %s25
        %p733 = scmp.lt.s32.totalorder %s24, 1
        %s734 = scalar_select %p733, %s24, 1
        %p735 = scmp.lt.s32.totalorder %s732, 1
        %s736 = scalar_select %p735, %s732, 1
        %s737 = smul.addr %s734, 2
        %s738 = sadd.s32 %s736, %s737
        %s739 = smul.addr %s738, 8
        %s740 = scalar_lea.vmem %s5, %s739
      $region60: #{_lambda_.7} parent=51 // pred_fallthru
        _
      // Predicated region
      $region61: #{_lambda_.7} parent=51 // pred_check
        %p741 = pneg %p206
      $region62: #{_lambda_.7} parent=51 // pred_check_branch
        %743 = sbr.rel (%p741) target = $region64
      $region63: #{_lambda_.7} parent=51 // pred_region
        %s744 = smul.u32 2, %s25
        %p745 = scmp.lt.s32.totalorder %s24, 1
        %s746 = scalar_select %p745, %s24, 1
        %p747 = scmp.lt.s32.totalorder %s744, 1
        %s748 = scalar_select %p747, %s744, 1
        %s749 = smul.addr %s746, 2
        %s750 = sadd.s32 %s748, %s749
        %s751 = smul.addr %s750, 8
        %s752 = scalar_lea.vmem %s6, %s751
      $region64: #{_lambda_.7} parent=51 // pred_fallthru
        _
    $region52: #{_lambda_.7} parent=5 // pred_fallthru
      _
  $region6: #{_lambda_.7} parent=0 // loop_footer
    %s17 = sadd.s32 1, %s13
  $region7: #{_lambda_.7} parent=0 // loop_footer_branch
    %12 = sbr.rel target = $region3
  $region8: #{_lambda_.7} parent=0 // loop_exit
    _

// kernel: _lambda_.9
$region0: #{_lambda_.9}
  #allocation0 [shape = 'u32[]', space=smem, size = 0x4, offset = 0x4, fixed_abs, tag = 'smem constant byte address 0x4 - core index']
  #allocation1 [shape = 'u32[144,128]{1,0:T(1,128)}', space=vmem, size = 0x12000, scoped, tag = 'internal scratch']
  %s0 = inlined_call_operand.vmem [shape: bf16[128,256], index: 0, kind: input, shape index: {}]
  %s1 = inlined_call_operand.vmem [shape: f32[1,256], index: 1, kind: input, shape index: {}]
  %s2 = inlined_call_operand.vmem [shape: f32[1,256], index: 2, kind: input, shape index: {}]
  %s3 = inlined_call_operand.vmem [shape: bf16[128,256], index: 3, kind: input, shape index: {}]
  %s4 = inlined_call_operand.vmem [shape: f32[1,256], index: 4, kind: input, shape index: {}]
  %s5 = inlined_call_operand.vmem [shape: f32[1,256], index: 5, kind: input, shape index: {}]
  %s6 = inlined_call_operand.hbm [shape: f32[128,256], index: 6, kind: output, shape index: {}]
  %s7 = sld [smem:[#allocation0]]
  $region57: #{_lambda_.9} parent=0
    _
  %s9 = ssub.s32 1, %s7
  %s10 = scalar_select 0, %s9, %s7
  $region1: #{_lambda_.9} parent=0
    #allocation2 [shape = 'u8[131072]{0}', space=vmem, size = 0x20000, scoped, tag = 'output window, operand 0']
    #allocation3 [shape = 's32[2]{0}', space=sflag, size = 0x8, scoped, tag = 'scoped memory for _lambda_.9']
    %11 = vsyncpa [#allocation3], 0
    %s12 = scalar_lea.sflag [#allocation3], 1
    %13 = vsyncpa %s12, 0
    loop: start=0, step=1, limit=4
    $region2: #{_lambda_.9} parent=1 // loop_pre_header
      _
    $region3: #{_lambda_.9} parent=1 // loop_header
      %s15 = sphi 0, %s19
      %p16 = scmp.ge.s32.totalorder %s15, 4
      %s25 = sphi 0, %s27
      %s28 = sphi 0, %s25
      %s29 = sphi 0, %s28
      %s45 = sphi 0, %s29
      %s49 = sphi 0, %s49
      %s51 = sphi 0, %s49
      %s52 = sphi 0, %s51
      %s66 = sphi 0, %s52
      %s70 = sphi 0, %s70
      %s72 = sphi 0, %s70
      %s73 = sphi 0, %s72
      %s87 = sphi 0, %s73
      %s93 = sphi 0, %s95
      %s96 = sphi 0, %s93
      %s97 = sphi 0, %s96
      %s113 = sphi 0, %s97
      %s117 = sphi 0, %s117
      %s119 = sphi 0, %s117
      %s120 = sphi 0, %s119
      %s134 = sphi 0, %s120
      %s138 = sphi 0, %s138
      %s140 = sphi 0, %s138
      %s141 = sphi 0, %s140
      %s155 = sphi 0, %s141
      %s161 = sphi 0, %s163
      %s164 = sphi 0, %s161
      %s165 = sphi 0, %s164
      %s181 = sphi 0, %s165
    $region4: #{_lambda_.9} parent=1 // loop_header_branch
      %18 = sbr.rel (%p16) target = $region8
    $region5: #{_lambda_.9} parent=1 // loop_body
      %s20 = ssub.s32 %s15, 1
      %s21 = ssub.s32 %s15, 2
      %s22 = sadd.s32 %s15, 1
      %s23 = ssub.s32 %s15, %s22
      %p24 = scmp.eq.s32.totalorder %s23, 0
      %s26 = sadd.s32 %s25, 1
      %s27 = scalar_select %p24, %s25, %s26
      %p30 = pneg %p24
      %p31 = scmp.eq.s32.totalorder %s15, 1
      %p32 = por %p30, %p31
      %p33 = scmp.ne.s32.totalorder %s25, %s28
      %p34 = scmp.eq.s32.totalorder %s15, 0
      %p35 = por %p33, %p34
      %p36 = scmp.ne.s32.totalorder %s25, %s28
      %p37 = scmp.eq.s32.totalorder %s20, 1
      %p38 = por %p36, %p37
      %p39 = scmp.ne.s32.totalorder %s28, %s29
      %p40 = scmp.eq.s32.totalorder %s20, 0
      %p41 = por %p39, %p40
      %p42 = scmp.ne.s32.totalorder %s28, %s29
      %p43 = scmp.eq.s32.totalorder %s21, 1
      %p44 = por %p42, %p43
      %p46 = scmp.ne.s32.totalorder %s29, %s45
      %p47 = scmp.eq.s32.totalorder %s21, 0
      %p48 = por %p46, %p47
      %s50 = sadd.s32 %s49, 1
      %p53 = scmp.eq.s32.totalorder %s15, 1
      %p54 = scmp.ne.s32.totalorder %s49, %s51
      %p55 = scmp.eq.s32.totalorder %s15, 0
      %p56 = por %p54, %p55
      %p57 = scmp.ne.s32.totalorder %s49, %s51
      %p58 = scmp.eq.s32.totalorder %s20, 1
      %p59 = por %p57, %p58
      %p60 = scmp.ne.s32.totalorder %s51, %s52
      %p61 = scmp.eq.s32.totalorder %s20, 0
      %p62 = por %p60, %p61
      %p63 = scmp.ne.s32.totalorder %s51, %s52
      %p64 = scmp.eq.s32.totalorder %s21, 1
      %p65 = por %p63, %p64
      %p67 = scmp.ne.s32.totalorder %s52, %s66
      %p68 = scmp.eq.s32.totalorder %s21, 0
      %p69 = por %p67, %p68
      %s71 = sadd.s32 %s70, 1
      %p74 = scmp.eq.s32.totalorder %s15, 1
      %p75 = scmp.ne.s32.totalorder %s70, %s72
      %p76 = scmp.eq.s32.totalorder %s15, 0
      %p77 = por %p75, %p76
      %p78 = scmp.ne.s32.totalorder %s70, %s72
      %p79 = scmp.eq.s32.totalorder %s20, 1
      %p80 = por %p78, %p79
      %p81 = scmp.ne.s32.totalorder %s72, %s73
      %p82 = scmp.eq.s32.totalorder %s20, 0
      %p83 = por %p81, %p82
      %p84 = scmp.ne.s32.totalorder %s72, %s73
      %p85 = scmp.eq.s32.totalorder %s21, 1
      %p86 = por %p84, %p85
      %p88 = scmp.ne.s32.totalorder %s73, %s87
      %p89 = scmp.eq.s32.totalorder %s21, 0
      %p90 = por %p88, %p89
      %s91 = ssub.s32 %s15, %s22
      %p92 = scmp.eq.s32.totalorder %s91, 0
      %s94 = sadd.s32 %s93, 1
      %s95 = scalar_select %p92, %s93, %s94
      %p98 = pneg %p92
      %p99 = scmp.eq.s32.totalorder %s15, 1
      %p100 = por %p98, %p99
      %p101 = scmp.ne.s32.totalorder %s93, %s96
      %p102 = scmp.eq.s32.totalorder %s15, 0
      %p103 = por %p101, %p102
      %p104 = scmp.ne.s32.totalorder %s93, %s96
      %p105 = scmp.eq.s32.totalorder %s20, 1
      %p106 = por %p104, %p105
      %p107 = scmp.ne.s32.totalorder %s96, %s97
      %p108 = scmp.eq.s32.totalorder %s20, 0
      %p109 = por %p107, %p108
      %p110 = scmp.ne.s32.totalorder %s96, %s97
      %p111 = scmp.eq.s32.totalorder %s21, 1
      %p112 = por %p110, %p111
      %p114 = scmp.ne.s32.totalorder %s97, %s113
      %p115 = scmp.eq.s32.totalorder %s21, 0
      %p116 = por %p114, %p115
      %s118 = sadd.s32 %s117, 1
      %p121 = scmp.eq.s32.totalorder %s15, 1
      %p122 = scmp.ne.s32.totalorder %s117, %s119
      %p123 = scmp.eq.s32.totalorder %s15, 0
      %p124 = por %p122, %p123
      %p125 = scmp.ne.s32.totalorder %s117, %s119
      %p126 = scmp.eq.s32.totalorder %s20, 1
      %p127 = por %p125, %p126
      %p128 = scmp.ne.s32.totalorder %s119, %s120
      %p129 = scmp.eq.s32.totalorder %s20, 0
      %p130 = por %p128, %p129
      %p131 = scmp.ne.s32.totalorder %s119, %s120
      %p132 = scmp.eq.s32.totalorder %s21, 1
      %p133 = por %p131, %p132
      %p135 = scmp.ne.s32.totalorder %s120, %s134
      %p136 = scmp.eq.s32.totalorder %s21, 0
      %p137 = por %p135, %p136
      %s139 = sadd.s32 %s138, 1
      %p142 = scmp.eq.s32.totalorder %s15, 1
      %p143 = scmp.ne.s32.totalorder %s138, %s140
      %p144 = scmp.eq.s32.totalorder %s15, 0
      %p145 = por %p143, %p144
      %p146 = scmp.ne.s32.totalorder %s138, %s140
      %p147 = scmp.eq.s32.totalorder %s20, 1
      %p148 = por %p146, %p147
      %p149 = scmp.ne.s32.totalorder %s140, %s141
      %p150 = scmp.eq.s32.totalorder %s20, 0
      %p151 = por %p149, %p150
      %p152 = scmp.ne.s32.totalorder %s140, %s141
      %p153 = scmp.eq.s32.totalorder %s21, 1
      %p154 = por %p152, %p153
      %p156 = scmp.ne.s32.totalorder %s141, %s155
      %p157 = scmp.eq.s32.totalorder %s21, 0
      %p158 = por %p156, %p157
      %s159 = ssub.s32 %s15, %s22
      %p160 = scmp.eq.s32.totalorder %s159, 0
      %s162 = sadd.s32 %s161, 1
      %s163 = scalar_select %p160, %s161, %s162
      %p166 = pneg %p160
      %p167 = scmp.eq.s32.totalorder %s15, 1
      %p168 = por %p166, %p167
      %p169 = scmp.ne.s32.totalorder %s161, %s164
      %p170 = scmp.eq.s32.totalorder %s15, 0
      %p171 = por %p169, %p170
      %p172 = scmp.ne.s32.totalorder %s161, %s164
      %p173 = scmp.eq.s32.totalorder %s20, 1
      %p174 = por %p172, %p173
      %p175 = scmp.ne.s32.totalorder %s164, %s165
      %p176 = scmp.eq.s32.totalorder %s20, 0
      %p177 = por %p175, %p176
      %p178 = scmp.ne.s32.totalorder %s164, %s165
      %p179 = scmp.eq.s32.totalorder %s21, 1
      %p180 = por %p178, %p179
      %p182 = scmp.ne.s32.totalorder %s165, %s181
      %p183 = scmp.eq.s32.totalorder %s21, 0
      %p184 = por %p182, %p183
      %p185 = scmp.le.s32.totalorder 1, %s15
      %p186 = scmp.lt.s32.totalorder %s15, 3
      %p187 = pnand %p185, %p186
      %p188 = pneg %p187
      // Predicated region
      $region9: #{_lambda_.9} parent=5 // pred_check
        _
      $region10: #{_lambda_.9} parent=5 // pred_check_branch
        %190 = sbr.rel (%p187) target = $region12
      $region11: #{_lambda_.9} parent=5 // pred_region
        %s191 = ssub.s32 %s15, 1
        // Predicated region
        $region13: #{_lambda_.9} parent=11 // pred_check
          %p192 = pneg %p62
        $region14: #{_lambda_.9} parent=11 // pred_check_branch
          %194 = sbr.rel (%p192) target = $region16
        $region15: #{_lambda_.9} parent=11 // pred_region
          _
        $region16: #{_lambda_.9} parent=11 // pred_fallthru
          _
        // Predicated region
        $region17: #{_lambda_.9} parent=11 // pred_check
          %p195 = pneg %p83
        $region18: #{_lambda_.9} parent=11 // pred_check_branch
          %197 = sbr.rel (%p195) target = $region20
        $region19: #{_lambda_.9} parent=11 // pred_region
          _
        $region20: #{_lambda_.9} parent=11 // pred_fallthru
          _
        // Predicated region
        $region21: #{_lambda_.9} parent=11 // pred_check
          %p198 = pneg %p130
        $region22: #{_lambda_.9} parent=11 // pred_check_branch
          %200 = sbr.rel (%p198) target = $region24
        $region23: #{_lambda_.9} parent=11 // pred_region
          _
        $region24: #{_lambda_.9} parent=11 // pred_fallthru
          _
        // Predicated region
        $region25: #{_lambda_.9} parent=11 // pred_check
          %p201 = pneg %p151
        $region26: #{_lambda_.9} parent=11 // pred_check_branch
          %203 = sbr.rel (%p201) target = $region28
        $region27: #{_lambda_.9} parent=11 // pred_region
          _
        $region28: #{_lambda_.9} parent=11 // pred_fallthru
          _
      $region12: #{_lambda_.9} parent=5 // pred_fallthru
        _
      %p204 = scmp.lt.s32.totalorder %s15, 2
      // Predicated region
      $region29: #{_lambda_.9} parent=5 // pred_check
        %p205 = pneg %p204
      $region30: #{_lambda_.9} parent=5 // pred_check_branch
        %207 = sbr.rel (%p205) target = $region32
      $region31: #{_lambda_.9} parent=5 // pred_region
        // Predicated region
        $region33: #{_lambda_.9} parent=31 // pred_check
          %p208 = pneg %p35
        $region34: #{_lambda_.9} parent=31 // pred_check_branch
          %210 = sbr.rel (%p208) target = $region36
        $region35: #{_lambda_.9} parent=31 // pred_region
          %s211 = smul.u32 8, %s15
          %p212 = scmp.lt.s32.totalorder %s211, 15
          %s213 = scalar_select %p212, %s211, 15
          %s214 = smul.addr %s213, 2
          %s215 = smul.addr %s214, 4
          %s216 = scalar_lea.vmem %s0, %s215
          %s217 = smul.u32 8, %s15
        $region36: #{_lambda_.9} parent=31 // pred_fallthru
          _
        // Predicated region
        $region37: #{_lambda_.9} parent=31 // pred_check
          %p218 = pneg %p103
        $region38: #{_lambda_.9} parent=31 // pred_check_branch
          %220 = sbr.rel (%p218) target = $region40
        $region39: #{_lambda_.9} parent=31 // pred_region
          %s221 = smul.u32 8, %s15
          %p222 = scmp.lt.s32.totalorder %s221, 15
          %s223 = scalar_select %p222, %s221, 15
          %s224 = smul.addr %s223, 2
          %s225 = smul.addr %s224, 4
          %s226 = scalar_lea.vmem %s3, %s225
          %s227 = smul.u32 8, %s15
        $region40: #{_lambda_.9} parent=31 // pred_fallthru
          _
      $region32: #{_lambda_.9} parent=5 // pred_fallthru
        _
      %p228 = scmp.le.s32.totalorder 1, %s15
      %p229 = scmp.lt.s32.totalorder %s15, 3
      %p230 = pnand %p228, %p229
      %p231 = pneg %p230
      // Predicated region
      $region41: #{_lambda_.9} parent=5 // pred_check
        _
      $region42: #{_lambda_.9} parent=5 // pred_check_branch
        %233 = sbr.rel (%p230) target = $region44
      $region43: #{_lambda_.9} parent=5 // pred_region
        %s234 = ssub.s32 %s15, 1
        %s235 = smul.u32 8, %s20
        %p236 = scmp.lt.s32.totalorder %s235, 15
        %s237 = scalar_select %p236, %s235, 15
        %s238 = smul.addr %s237, 2
        %s239 = smul.addr %s238, 4
        %s240 = scalar_lea.vmem %s0, %s239
        %p241 = pneg %p41
        %p242 = pneg %p38
        %p243 = pneg %p62
        %p244 = pneg %p59
        %p245 = pneg %p83
        %p246 = pneg %p80
        %s247 = smul.u32 8, %s20
        %p248 = scmp.lt.s32.totalorder %s247, 15
        %s249 = scalar_select %p248, %s247, 15
        %s250 = smul.addr %s249, 2
        %s251 = smul.addr %s250, 4
        %s252 = scalar_lea.vmem %s3, %s251
        %p253 = pneg %p109
        %p254 = pneg %p106
        %p255 = pneg %p130
        %p256 = pneg %p127
        %p257 = pneg %p151
        %p258 = pneg %p148
        %p259 = pneg %p177
        %p260 = pneg %p174
        %s261 = sand.u32 %s164, 1
        %s262 = scalar_lea.sflag [#allocation3], %s261
        %s263 = sand.u32 %s164, 1
        %s264 = smul.addr %s263, 128
        %s265 = scalar_lea.vmem [#allocation2], %s264
        %s266 = smul.u32 8, %s20
        %p267 = scmp.lt.s32.totalorder %s266, 15
        %s268 = scalar_select %p267, %s266, 15
        %s269 = smul.addr %s268, 2
        %s270 = smul.addr %s269, 4
        %s271 = scalar_lea.vmem %s0, %s270
        %s272 = smul.u32 8, %s20
        %s273 = smul.u32 8, %s20
        %p274 = scmp.lt.s32.totalorder %s273, 15
        %s275 = scalar_select %p274, %s273, 15
        %s276 = smul.addr %s275, 2
        %s277 = smul.addr %s276, 4
        %s278 = scalar_lea.vmem %s3, %s277
        %s279 = smul.u32 8, %s20
        %s280 = smul.u32 8, %s20
        %v281 = vld [vmem:[%s278] sm:$0xff]
        %v282 = vld [vmem:[%s278 + $0x8] sm:$0xff]
        %v283 = vld [vmem:[%s278 + $0x10] sm:$0xff]
        %v284 = vld [vmem:[%s278 + $0x18] sm:$0xff]
        %v285 = vld [vmem:[%s278 + $0x20] sm:$0xff]
        %v286 = vld [vmem:[%s278 + $0x28] sm:$0xff]
        %v287 = vld [vmem:[%s278 + $0x30] sm:$0xff]
        %v288 = vld [vmem:[%s278 + $0x38] sm:$0xff]
        %v289 = vunpack.c.l.bf16 %v281
        %v290 = vunpack.c.h.bf16 %v281
        %v291 = vunpack.c.l.bf16 %v282
        %v292 = vunpack.c.h.bf16 %v282
        %v293 = vunpack.c.l.bf16 %v283
        %v294 = vunpack.c.h.bf16 %v283
        %v295 = vunpack.c.l.bf16 %v284
        %v296 = vunpack.c.h.bf16 %v284
        %v297 = vunpack.c.l.bf16 %v285
        %v298 = vunpack.c.h.bf16 %v285
        %v299 = vunpack.c.l.bf16 %v286
        %v300 = vunpack.c.h.bf16 %v286
        %v301 = vunpack.c.l.bf16 %v287
        %v302 = vunpack.c.h.bf16 %v287
        %v303 = vunpack.c.l.bf16 %v288
        %v304 = vunpack.c.h.bf16 %v288
        %v305 = vld [vmem:[%s4] sm:$0x3]
        %v307 = vlaneseq
        %v308 = vshrl.u32 %v307, 7
        %v309 = vsub.s32 0, %v308
        %v310 = vrot.slane %v305, %v309
        %v311 = vlaneseq
        %v312 = vshrl.u32 %v311, 7
        %v313 = vsub.s32 1, %v312
        %v314 = vrot.slane %v305, %v313
        %v317 = vsub.f32 %v289, %v310
        %v318 = vsub.f32 %v290, %v314
        %v319 = vsub.f32 %v291, %v310
        %v320 = vsub.f32 %v292, %v314
        %v321 = vsub.f32 %v293, %v310
        %v322 = vsub.f32 %v294, %v314
        %v323 = vsub.f32 %v295, %v310
        %v324 = vsub.f32 %v296, %v314
        %v325 = vsub.f32 %v297, %v310
        %v326 = vsub.f32 %v298, %v314
        %v327 = vsub.f32 %v299, %v310
        %v328 = vsub.f32 %v300, %v314
        %v329 = vsub.f32 %v301, %v310
        %v330 = vsub.f32 %v302, %v314
        %v331 = vsub.f32 %v303, %v310
        %v332 = vsub.f32 %v304, %v314
        %v333 = vld [vmem:[%s5] sm:$0x3]
        %v335 = vlaneseq
        %v336 = vshrl.u32 %v335, 7
        %v337 = vsub.s32 0, %v336
        %v338 = vrot.slane %v333, %v337
        %v339 = vlaneseq
        %v340 = vshrl.u32 %v339, 7
        %v341 = vsub.s32 1, %v340
        %v342 = vrot.slane %v333, %v341
        %v345 = vmul.f32 %v317, %v338
        %v346 = vmul.f32 %v318, %v342
        %v347 = vmul.f32 %v319, %v338
        %v348 = vmul.f32 %v320, %v342
        %v349 = vmul.f32 %v321, %v338
        %v350 = vmul.f32 %v322, %v342
        %v351 = vmul.f32 %v323, %v338
        %v352 = vmul.f32 %v324, %v342
        %v353 = vmul.f32 %v325, %v338
        %v354 = vmul.f32 %v326, %v342
        %v355 = vmul.f32 %v327, %v338
        %v356 = vmul.f32 %v328, %v342
        %v357 = vmul.f32 %v329, %v338
        %v358 = vmul.f32 %v330, %v342
        %v359 = vmul.f32 %v331, %v338
        %v360 = vmul.f32 %v332, %v342
        %v361 = vld [vmem:[%s271] sm:$0xff]
        %v362 = vld [vmem:[%s271 + $0x8] sm:$0xff]
        %v363 = vld [vmem:[%s271 + $0x10] sm:$0xff]
        %v364 = vld [vmem:[%s271 + $0x18] sm:$0xff]
        %v365 = vld [vmem:[%s271 + $0x20] sm:$0xff]
        %v366 = vld [vmem:[%s271 + $0x28] sm:$0xff]
        %v367 = vld [vmem:[%s271 + $0x30] sm:$0xff]
        %v368 = vld [vmem:[%s271 + $0x38] sm:$0xff]
        %v369 = vunpack.c.l.bf16 %v361
        %v370 = vunpack.c.h.bf16 %v361
        %v371 = vunpack.c.l.bf16 %v362
        %v372 = vunpack.c.h.bf16 %v362
        %v373 = vunpack.c.l.bf16 %v363
        %v374 = vunpack.c.h.bf16 %v363
        %v375 = vunpack.c.l.bf16 %v364
        %v376 = vunpack.c.h.bf16 %v364
        %v377 = vunpack.c.l.bf16 %v365
        %v378 = vunpack.c.h.bf16 %v365
        %v379 = vunpack.c.l.bf16 %v366
        %v380 = vunpack.c.h.bf16 %v366
        %v381 = vunpack.c.l.bf16 %v367
        %v382 = vunpack.c.h.bf16 %v367
        %v383 = vunpack.c.l.bf16 %v368
        %v384 = vunpack.c.h.bf16 %v368
        %v385 = vld [vmem:[%s1] sm:$0x3]
        %v387 = vlaneseq
        %v388 = vshrl.u32 %v387, 7
        %v389 = vsub.s32 0, %v388
        %v390 = vrot.slane %v385, %v389
        %v391 = vlaneseq
        %v392 = vshrl.u32 %v391, 7
        %v393 = vsub.s32 1, %v392
        %v394 = vrot.slane %v385, %v393
        %v397 = vsub.f32 %v369, %v390
        %v398 = vsub.f32 %v370, %v394
        %v399 = vsub.f32 %v371, %v390
        %v400 = vsub.f32 %v372, %v394
        %v401 = vsub.f32 %v373, %v390
        %v402 = vsub.f32 %v374, %v394
        %v403 = vsub.f32 %v375, %v390
        %v404 = vsub.f32 %v376, %v394
        %v405 = vsub.f32 %v377, %v390
        %v406 = vsub.f32 %v378, %v394
        %v407 = vsub.f32 %v379, %v390
        %v408 = vsub.f32 %v380, %v394
        %v409 = vsub.f32 %v381, %v390
        %v410 = vsub.f32 %v382, %v394
        %v411 = vsub.f32 %v383, %v390
        %v412 = vsub.f32 %v384, %v394
        %v413 = vld [vmem:[%s2] sm:$0x3]
        %v415 = vlaneseq
        %v416 = vshrl.u32 %v415, 7
        %v417 = vsub.s32 0, %v416
        %v418 = vrot.slane %v413, %v417
        %v419 = vlaneseq
        %v420 = vshrl.u32 %v419, 7
        %v421 = vsub.s32 1, %v420
        %v422 = vrot.slane %v413, %v421
        %v425 = vmul.f32 %v397, %v418
        %v426 = vmul.f32 %v398, %v422
        %v427 = vmul.f32 %v399, %v418
        %v428 = vmul.f32 %v400, %v422
        %v429 = vmul.f32 %v401, %v418
        %v430 = vmul.f32 %v402, %v422
        %v431 = vmul.f32 %v403, %v418
        %v432 = vmul.f32 %v404, %v422
        %v433 = vmul.f32 %v405, %v418
        %v434 = vmul.f32 %v406, %v422
        %v435 = vmul.f32 %v407, %v418
        %v436 = vmul.f32 %v408, %v422
        %v437 = vmul.f32 %v409, %v418
        %v438 = vmul.f32 %v410, %v422
        %v439 = vmul.f32 %v411, %v418
        %v440 = vmul.f32 %v412, %v422
        %v441 = vadd.f32 %v425, %v345
        %v442 = vadd.f32 %v426, %v346
        %v443 = vadd.f32 %v427, %v347
        %v444 = vadd.f32 %v428, %v348
        %v445 = vadd.f32 %v429, %v349
        %v446 = vadd.f32 %v430, %v350
        %v447 = vadd.f32 %v431, %v351
        %v448 = vadd.f32 %v432, %v352
        %v449 = vadd.f32 %v433, %v353
        %v450 = vadd.f32 %v434, %v354
        %v451 = vadd.f32 %v435, %v355
        %v452 = vadd.f32 %v436, %v356
        %v453 = vadd.f32 %v437, %v357
        %v454 = vadd.f32 %v438, %v358
        %v455 = vadd.f32 %v439, %v359
        %v456 = vadd.f32 %v440, %v360
        %v457 = vmax.f32 %v441, 0.0
        %v458 = vmax.f32 %v442, 0.0
        %v459 = vmax.f32 %v443, 0.0
        %v460 = vmax.f32 %v444, 0.0
        %v461 = vmax.f32 %v445, 0.0
        %v462 = vmax.f32 %v446, 0.0
        %v463 = vmax.f32 %v447, 0.0
        %v464 = vmax.f32 %v448, 0.0
        %v465 = vmax.f32 %v449, 0.0
        %v466 = vmax.f32 %v450, 0.0
        %v467 = vmax.f32 %v451, 0.0
        %v468 = vmax.f32 %v452, 0.0
        %v469 = vmax.f32 %v453, 0.0
        %v470 = vmax.f32 %v454, 0.0
        %v471 = vmax.f32 %v455, 0.0
        %v472 = vmax.f32 %v456, 0.0
        %473 = vst [vmem:[%s265] sm:$0xff] %v457
        %474 = vst [vmem:[%s265 + $0x8] sm:$0xff] %v458
        %475 = vst [vmem:[%s265 + $0x10] sm:$0xff] %v459
        %476 = vst [vmem:[%s265 + $0x18] sm:$0xff] %v460
        %477 = vst [vmem:[%s265 + $0x20] sm:$0xff] %v461
        %478 = vst [vmem:[%s265 + $0x28] sm:$0xff] %v462
        %479 = vst [vmem:[%s265 + $0x30] sm:$0xff] %v463
        %480 = vst [vmem:[%s265 + $0x38] sm:$0xff] %v464
        %481 = vst [vmem:[%s265 + $0x40] sm:$0xff] %v465
        %482 = vst [vmem:[%s265 + $0x48] sm:$0xff] %v466
        %483 = vst [vmem:[%s265 + $0x50] sm:$0xff] %v467
        %484 = vst [vmem:[%s265 + $0x58] sm:$0xff] %v468
        %485 = vst [vmem:[%s265 + $0x60] sm:$0xff] %v469
        %486 = vst [vmem:[%s265 + $0x68] sm:$0xff] %v470
        %487 = vst [vmem:[%s265 + $0x70] sm:$0xff] %v471
        %488 = vst [vmem:[%s265 + $0x78] sm:$0xff] %v472
        %s489 = sand.u32 %s164, 1
        %s490 = scalar_lea.sflag [#allocation3], %s489
        %s491 = sand.u32 %s164, 1
        %s492 = smul.addr %s491, 128
        %s493 = scalar_lea.vmem [#allocation2], %s492
        // Predicated region
        $region45: #{_lambda_.9} parent=43 // pred_check
          %p494 = pneg %p174
        $region46: #{_lambda_.9} parent=43 // pred_check_branch
          %496 = sbr.rel (%p494) target = $region48
        $region47: #{_lambda_.9} parent=43 // pred_region
          %s497 = smul.u32 8, %s20
          %s499 = ssub.s32 2048, 2048
          %500 = vsyncadd %s490, %s499
          %s501 = smul.addr %s497, 2
          %s502 = smul.addr %s501, 128
          %s503 = scalar_lea.hbm %s6, %s502
          %s504 = sshll.u32 %s493, 4
          %s505 = int_to_ptr.vmem [resolvable:$true] %s504
          %510 = dma.vmem_to_hbm [thread:$0]  %s505, 2048, %s503, %s490, 256, 256, 16
        $region48: #{_lambda_.9} parent=43 // pred_fallthru
          _
      $region44: #{_lambda_.9} parent=5 // pred_fallthru
        _
      %p511 = scmp.le.s32.totalorder 2, %s15
      // Predicated region
      $region49: #{_lambda_.9} parent=5 // pred_check
        %p512 = pneg %p511
      $region50: #{_lambda_.9} parent=5 // pred_check_branch
        %514 = sbr.rel (%p512) target = $region52
      $region51: #{_lambda_.9} parent=5 // pred_region
        %s515 = ssub.s32 %s15, 2
        // Predicated region
        $region53: #{_lambda_.9} parent=51 // pred_check
          %p516 = pneg %p180
        $region54: #{_lambda_.9} parent=51 // pred_check_branch
          %518 = sbr.rel (%p516) target = $region56
        $region55: #{_lambda_.9} parent=51 // pred_region
          %s519 = sand.u32 %s165, 1
          %s520 = scalar_lea.sflag [#allocation3], %s519
          %s521 = sand.u32 %s165, 1
          %s522 = smul.addr %s521, 128
          %s523 = scalar_lea.vmem [#allocation2], %s522
          %524 = dma.done %s520, 2048
        $region56: #{_lambda_.9} parent=51 // pred_fallthru
          _
      $region52: #{_lambda_.9} parent=5 // pred_fallthru
        _
    $region6: #{_lambda_.9} parent=1 // loop_footer
      %s19 = sadd.s32 1, %s15
    $region7: #{_lambda_.9} parent=1 // loop_footer_branch
      %14 = sbr.rel target = $region3
    $region8: #{_lambda_.9} parent=1 // loop_exit
      _
    %525 = vsyncpa [#allocation3], 1
    %s526 = scalar_lea.sflag [#allocation3], 1
    %527 = vsyncpa %s526, 1

// kernel: _lambda_.8
$region0: #{_lambda_.8}
  #allocation0 [shape = 'u32[]', space=smem, size = 0x4, offset = 0x4, fixed_abs, tag = 'smem constant byte address 0x4 - core index']
  #allocation1 [shape = 'u32[144,128]{1,0:T(1,128)}', space=vmem, size = 0x12000, scoped, tag = 'internal scratch']
  %s0 = inlined_call_operand.vmem [shape: bf16[128,128], index: 0, kind: input, shape index: {}]
  %s1 = inlined_call_operand.vmem [shape: bf16[128,256], index: 1, kind: input, shape index: {}]
  %s2 = inlined_call_operand.vmem [shape: bf16[128,256], index: 2, kind: output, shape index: {0}]
  %s3 = inlined_call_operand.vmem [shape: f32[16,256], index: 3, kind: output, shape index: {1}]
  %s4 = inlined_call_operand.vmem [shape: f32[16,256], index: 4, kind: output, shape index: {2}]
  %5 = xla_tuple %s2, %s3, %s4
  %s6 = sld [smem:[#allocation0]]
  $region57: #{_lambda_.8} parent=0
    _
  %s8 = ssub.s32 1, %s6
  %s9 = scalar_select 0, %s8, %s6
  loop: start=0, step=1, limit=4
  $region2: #{_lambda_.8} parent=0 // loop_pre_header
    _
  $region3: #{_lambda_.8} parent=0 // loop_header
    %s11 = sphi 0, %s15
    %p12 = scmp.ge.s32.totalorder %s11, 4
    %s18 = sphi 0, %s30
    %s19 = sphi 0, %s26
    %s20 = sphi 0, %s18
    %s21 = sphi 0, %s19
    %s22 = sphi 0, %s20
    %s23 = sphi 0, %s21
    %s33 = sphi 0, %s35
    %s36 = sphi 0, %s33
    %s37 = sphi 0, %s36
    %s53 = sphi 0, %s37
    %s59 = sphi 0, %s61
    %s62 = sphi 0, %s59
    %s63 = sphi 0, %s62
    %s79 = sphi 0, %s63
    %s87 = sphi 0, %s89
    %s90 = sphi 0, %s87
    %s91 = sphi 0, %s90
    %s107 = sphi 0, %s91
    %s115 = sphi 0, %s117
    %s118 = sphi 0, %s115
    %s119 = sphi 0, %s118
    %s135 = sphi 0, %s119
    %s143 = sphi 0, %s145
    %s146 = sphi 0, %s143
    %s147 = sphi 0, %s146
    %s163 = sphi 0, %s147
  $region4: #{_lambda_.8} parent=0 // loop_header_branch
    %14 = sbr.rel (%p12) target = $region8
  $region5: #{_lambda_.8} parent=0 // loop_body
    %s16 = ssub.s32 %s11, 1
    %s17 = ssub.s32 %s11, 2
    %s24 = sadd.s32 1, %s19
    %p25 = scmp.ge.s32.totalorder %s24, 1
    %s26 = scalar_select %p25, 0, %s24
    %s27 = sadd.s32 1, %s18
    %s28 = scalar_select %p25, %s27, %s18
    %p29 = scmp.ge.s32.totalorder %s28, 2
    %s30 = scalar_select %p29, 0, %s28
    %s31 = ssub.s32 %s18, %s30
    %p32 = scmp.eq.s32.totalorder %s31, 0
    %s34 = sadd.s32 %s33, 1
    %s35 = scalar_select %p32, %s33, %s34
    %p38 = pneg %p32
    %p39 = scmp.eq.s32.totalorder %s11, 1
    %p40 = por %p38, %p39
    %p41 = scmp.ne.s32.totalorder %s33, %s36
    %p42 = scmp.eq.s32.totalorder %s11, 0
    %p43 = por %p41, %p42
    %p44 = scmp.ne.s32.totalorder %s33, %s36
    %p45 = scmp.eq.s32.totalorder %s16, 1
    %p46 = por %p44, %p45
    %p47 = scmp.ne.s32.totalorder %s36, %s37
    %p48 = scmp.eq.s32.totalorder %s16, 0
    %p49 = por %p47, %p48
    %p50 = scmp.ne.s32.totalorder %s36, %s37
    %p51 = scmp.eq.s32.totalorder %s17, 1
    %p52 = por %p50, %p51
    %p54 = scmp.ne.s32.totalorder %s37, %s53
    %p55 = scmp.eq.s32.totalorder %s17, 0
    %p56 = por %p54, %p55
    %s57 = ssub.s32 %s19, %s26
    %p58 = scmp.eq.s32.totalorder %s57, 0
    %s60 = sadd.s32 %s59, 1
    %s61 = scalar_select %p58, %s59, %s60
    %p64 = pneg %p58
    %p65 = scmp.eq.s32.totalorder %s11, 1
    %p66 = por %p64, %p65
    %p67 = scmp.ne.s32.totalorder %s59, %s62
    %p68 = scmp.eq.s32.totalorder %s11, 0
    %p69 = por %p67, %p68
    %p70 = scmp.ne.s32.totalorder %s59, %s62
    %p71 = scmp.eq.s32.totalorder %s16, 1
    %p72 = por %p70, %p71
    %p73 = scmp.ne.s32.totalorder %s62, %s63
    %p74 = scmp.eq.s32.totalorder %s16, 0
    %p75 = por %p73, %p74
    %p76 = scmp.ne.s32.totalorder %s62, %s63
    %p77 = scmp.eq.s32.totalorder %s17, 1
    %p78 = por %p76, %p77
    %p80 = scmp.ne.s32.totalorder %s63, %s79
    %p81 = scmp.eq.s32.totalorder %s17, 0
    %p82 = por %p80, %p81
    %s83 = ssub.s32 %s18, %s30
    %s84 = ssub.s32 %s19, %s26
    %s85 = sor.u32 %s83, %s84
    %p86 = scmp.eq.s32.totalorder %s85, 0
    %s88 = sadd.s32 %s87, 1
    %s89 = scalar_select %p86, %s87, %s88
    %p92 = pneg %p86
    %p93 = scmp.eq.s32.totalorder %s11, 1
    %p94 = por %p92, %p93
    %p95 = scmp.ne.s32.totalorder %s87, %s90
    %p96 = scmp.eq.s32.totalorder %s11, 0
    %p97 = por %p95, %p96
    %p98 = scmp.ne.s32.totalorder %s87, %s90
    %p99 = scmp.eq.s32.totalorder %s16, 1
    %p100 = por %p98, %p99
    %p101 = scmp.ne.s32.totalorder %s90, %s91
    %p102 = scmp.eq.s32.totalorder %s16, 0
    %p103 = por %p101, %p102
    %p104 = scmp.ne.s32.totalorder %s90, %s91
    %p105 = scmp.eq.s32.totalorder %s17, 1
    %p106 = por %p104, %p105
    %p108 = scmp.ne.s32.totalorder %s91, %s107
    %p109 = scmp.eq.s32.totalorder %s17, 0
    %p110 = por %p108, %p109
    %s111 = ssub.s32 %s18, %s30
    %s112 = ssub.s32 %s19, %s26
    %s113 = sor.u32 %s111, %s112
    %p114 = scmp.eq.s32.totalorder %s113, 0
    %s116 = sadd.s32 %s115, 1
    %s117 = scalar_select %p114, %s115, %s116
    %p120 = pneg %p114
    %p121 = scmp.eq.s32.totalorder %s11, 1
    %p122 = por %p120, %p121
    %p123 = scmp.ne.s32.totalorder %s115, %s118
    %p124 = scmp.eq.s32.totalorder %s11, 0
    %p125 = por %p123, %p124
    %p126 = scmp.ne.s32.totalorder %s115, %s118
    %p127 = scmp.eq.s32.totalorder %s16, 1
    %p128 = por %p126, %p127
    %p129 = scmp.ne.s32.totalorder %s118, %s119
    %p130 = scmp.eq.s32.totalorder %s16, 0
    %p131 = por %p129, %p130
    %p132 = scmp.ne.s32.totalorder %s118, %s119
    %p133 = scmp.eq.s32.totalorder %s17, 1
    %p134 = por %p132, %p133
    %p136 = scmp.ne.s32.totalorder %s119, %s135
    %p137 = scmp.eq.s32.totalorder %s17, 0
    %p138 = por %p136, %p137
    %s139 = ssub.s32 %s18, %s30
    %s140 = ssub.s32 %s19, %s26
    %s141 = sor.u32 %s139, %s140
    %p142 = scmp.eq.s32.totalorder %s141, 0
    %s144 = sadd.s32 %s143, 1
    %s145 = scalar_select %p142, %s143, %s144
    %p148 = pneg %p142
    %p149 = scmp.eq.s32.totalorder %s11, 1
    %p150 = por %p148, %p149
    %p151 = scmp.ne.s32.totalorder %s143, %s146
    %p152 = scmp.eq.s32.totalorder %s11, 0
    %p153 = por %p151, %p152
    %p154 = scmp.ne.s32.totalorder %s143, %s146
    %p155 = scmp.eq.s32.totalorder %s16, 1
    %p156 = por %p154, %p155
    %p157 = scmp.ne.s32.totalorder %s146, %s147
    %p158 = scmp.eq.s32.totalorder %s16, 0
    %p159 = por %p157, %p158
    %p160 = scmp.ne.s32.totalorder %s146, %s147
    %p161 = scmp.eq.s32.totalorder %s17, 1
    %p162 = por %p160, %p161
    %p164 = scmp.ne.s32.totalorder %s147, %s163
    %p165 = scmp.eq.s32.totalorder %s17, 0
    %p166 = por %p164, %p165
    %p167 = scmp.le.s32.totalorder 1, %s11
    %p168 = scmp.lt.s32.totalorder %s11, 3
    %p169 = pnand %p167, %p168
    %p170 = pneg %p169
    // Predicated region
    $region9: #{_lambda_.8} parent=5 // pred_check
      _
    $region10: #{_lambda_.8} parent=5 // pred_check_branch
      %172 = sbr.rel (%p169) target = $region12
    $region11: #{_lambda_.8} parent=5 // pred_region
      %s173 = ssub.s32 %s11, 1
      // Predicated region
      $region13: #{_lambda_.8} parent=11 // pred_check
        %p174 = pneg %p75
      $region14: #{_lambda_.8} parent=11 // pred_check_branch
        %176 = sbr.rel (%p174) target = $region16
      $region15: #{_lambda_.8} parent=11 // pred_region
        %s177 = smul.u32 2, %s21
        %p178 = scmp.lt.s32.totalorder %s177, 1
        %s179 = scalar_select %p178, %s177, 1
        %s180 = smul.addr %s179, 4
        %s181 = scalar_lea.vmem %s1, %s180
        %s182 = smul.u32 2, %s21
      $region16: #{_lambda_.8} parent=11 // pred_fallthru
        _
    $region12: #{_lambda_.8} parent=5 // pred_fallthru
      _
    %p183 = scmp.lt.s32.totalorder %s11, 2
    // Predicated region
    $region17: #{_lambda_.8} parent=5 // pred_check
      %p184 = pneg %p183
    $region18: #{_lambda_.8} parent=5 // pred_check_branch
      %186 = sbr.rel (%p184) target = $region20
    $region19: #{_lambda_.8} parent=5 // pred_region
      // Predicated region
      $region21: #{_lambda_.8} parent=19 // pred_check
        %p187 = pneg %p43
      $region22: #{_lambda_.8} parent=19 // pred_check_branch
        %189 = sbr.rel (%p187) target = $region24
      $region23: #{_lambda_.8} parent=19 // pred_region
        %s190 = smul.u32 8, %s18
        %p191 = scmp.lt.s32.totalorder %s190, 15
        %s192 = scalar_select %p191, %s190, 15
        %s193 = smul.addr %s192, 4
        %s194 = scalar_lea.vmem %s0, %s193
        %s195 = smul.u32 8, %s18
      $region24: #{_lambda_.8} parent=19 // pred_fallthru
        _
    $region20: #{_lambda_.8} parent=5 // pred_fallthru
      _
    %p196 = scmp.le.s32.totalorder 1, %s11
    %p197 = scmp.lt.s32.totalorder %s11, 3
    %p198 = pnand %p196, %p197
    %p199 = pneg %p198
    // Predicated region
    $region25: #{_lambda_.8} parent=5 // pred_check
      _
    $region26: #{_lambda_.8} parent=5 // pred_check_branch
      %201 = sbr.rel (%p198) target = $region28
    $region27: #{_lambda_.8} parent=5 // pred_region
      %s202 = ssub.s32 %s11, 1
      %s203 = smul.u32 8, %s20
      %p204 = scmp.lt.s32.totalorder %s203, 15
      %s205 = scalar_select %p204, %s203, 15
      %s206 = smul.addr %s205, 4
      %s207 = scalar_lea.vmem %s0, %s206
      %p208 = pneg %p49
      %p209 = pneg %p46
      %s210 = smul.u32 2, %s21
      %p211 = scmp.lt.s32.totalorder %s210, 1
      %s212 = scalar_select %p211, %s210, 1
      %s213 = smul.addr %s212, 4
      %s214 = scalar_lea.vmem %s1, %s213
      %p215 = pneg %p75
      %p216 = pneg %p72
      %p217 = pneg %p103
      %p218 = pneg %p100
      %s219 = smul.u32 8, %s20
      %s220 = smul.u32 2, %s21
      %p221 = scmp.lt.s32.totalorder %s219, 15
      %s222 = scalar_select %p221, %s219, 15
      %p223 = scmp.lt.s32.totalorder %s220, 1
      %s224 = scalar_select %p223, %s220, 1
      %s225 = smul.addr %s222, 2
      %s226 = sadd.s32 %s224, %s225
      %s227 = smul.addr %s226, 4
      %s228 = scalar_lea.vmem %s2, %s227
      %p229 = pneg %p131
      %p230 = pneg %p128
      %s231 = smul.u32 2, %s21
      %p232 = scmp.lt.s32.totalorder %s20, 1
      %s233 = scalar_select %p232, %s20, 1
      %p234 = scmp.lt.s32.totalorder %s231, 1
      %s235 = scalar_select %p234, %s231, 1
      %s236 = smul.addr %s233, 2
      %s237 = sadd.s32 %s235, %s236
      %s238 = smul.addr %s237, 8
      %s239 = scalar_lea.vmem %s3, %s238
      %p240 = pneg %p159
      %p241 = pneg %p156
      %s242 = smul.u32 2, %s21
      %p243 = scmp.lt.s32.totalorder %s20, 1
      %s244 = scalar_select %p243, %s20, 1
      %p245 = scmp.lt.s32.totalorder %s242, 1
      %s246 = scalar_select %p245, %s242, 1
      %s247 = smul.addr %s244, 2
      %s248 = sadd.s32 %s246, %s247
      %s249 = smul.addr %s248, 8
      %s250 = scalar_lea.vmem %s4, %s249
      %s251 = smul.u32 8, %s20
      %p252 = scmp.lt.s32.totalorder %s251, 15
      %s253 = scalar_select %p252, %s251, 15
      %s254 = smul.addr %s253, 4
      %s255 = scalar_lea.vmem %s0, %s254
      %s256 = smul.u32 8, %s20
      %s257 = smul.u32 2, %s21
      %p258 = scmp.lt.s32.totalorder %s257, 1
      %s259 = scalar_select %p258, %s257, 1
      %s260 = smul.addr %s259, 4
      %s261 = scalar_lea.vmem %s1, %s260
      %s262 = smul.u32 2, %s21
      %s263 = smul.u32 8, %s20
      %s264 = smul.u32 2, %s21
      %p265 = scmp.lt.s32.totalorder %s263, 15
      %s266 = scalar_select %p265, %s263, 15
      %p267 = scmp.lt.s32.totalorder %s264, 1
      %s268 = scalar_select %p267, %s264, 1
      %s269 = smul.addr %s266, 2
      %s270 = sadd.s32 %s268, %s269
      %s271 = smul.addr %s270, 4
      %s272 = scalar_lea.vmem %s2, %s271
      %s273 = smul.u32 8, %s20
      %s274 = smul.u32 2, %s21
      %s275 = smul.u32 2, %s21
      %p276 = scmp.lt.s32.totalorder %s20, 1
      %s277 = scalar_select %p276, %s20, 1
      %p278 = scmp.lt.s32.totalorder %s275, 1
      %s279 = scalar_select %p278, %s275, 1
      %s280 = smul.addr %s277, 2
      %s281 = sadd.s32 %s279, %s280
      %s282 = smul.addr %s281, 8
      %s283 = scalar_lea.vmem %s3, %s282
      %s284 = smul.u32 2, %s21
      %s285 = smul.u32 2, %s21
      %p286 = scmp.lt.s32.totalorder %s20, 1
      %s287 = scalar_select %p286, %s20, 1
      %p288 = scmp.lt.s32.totalorder %s285, 1
      %s289 = scalar_select %p288, %s285, 1
      %s290 = smul.addr %s287, 2
      %s291 = sadd.s32 %s289, %s290
      %s292 = smul.addr %s291, 8
      %s293 = scalar_lea.vmem %s4, %s292
      %s294 = smul.u32 2, %s21
      %v296 = vld [vmem:[%s255] sm:$0xf]
      %v297 = vld [vmem:[%s255 + $0x4] sm:$0xf]
      %v298 = vld [vmem:[%s255 + $0x8] sm:$0xf]
      %v299 = vld [vmem:[%s255 + $0xc] sm:$0xf]
      %v300 = vld [vmem:[%s255 + $0x10] sm:$0xf]
      %v301 = vld [vmem:[%s255 + $0x14] sm:$0xf]
      %v302 = vld [vmem:[%s255 + $0x18] sm:$0xf]
      %v303 = vld [vmem:[%s255 + $0x1c] sm:$0xf]
      %v304 = vld [vmem:[%s261] sm:$0xff]
      %v305 = vld [vmem:[%s261 + $0x8] sm:$0xff]
      %v306 = vld [vmem:[%s261 + $0x10] sm:$0xff]
      %v307 = vld [vmem:[%s261 + $0x18] sm:$0xff]
      %v308 = vld [vmem:[%s261 + $0x20] sm:$0xff]
      %v309 = vld [vmem:[%s261 + $0x28] sm:$0xff]
      %v310 = vld [vmem:[%s261 + $0x30] sm:$0xff]
      %v311 = vld [vmem:[%s261 + $0x38] sm:$0xff]
      %v312 = vld [vmem:[%s261 + $0x40] sm:$0xff]
      %v313 = vld [vmem:[%s261 + $0x48] sm:$0xff]
      %v314 = vld [vmem:[%s261 + $0x50] sm:$0xff]
      %v315 = vld [vmem:[%s261 + $0x58] sm:$0xff]
      %v316 = vld [vmem:[%s261 + $0x60] sm:$0xff]
      %v317 = vld [vmem:[%s261 + $0x68] sm:$0xff]
      %v318 = vld [vmem:[%s261 + $0x70] sm:$0xff]
      %v319 = vld [vmem:[%s261 + $0x78] sm:$0xff]
      %v328 = vunpack.c.l.b16 %v296
      %v329 = vunpack.c.l.b16 %v297
      %v330 = vunpack.c.l.b16 %v298
      %v331 = vunpack.c.l.b16 %v299
      %v332 = vunpack.c.l.b16 %v300
      %v333 = vunpack.c.l.b16 %v301
      %v334 = vunpack.c.l.b16 %v302
      %v335 = vunpack.c.l.b16 %v303
      %v336 = vpack.c.b16 %v329, %v328
      %v337 = vpack.c.b16 %v331, %v330
      %v338 = vpack.c.b16 %v333, %v332
      %v339 = vpack.c.b16 %v335, %v334
      %v360 = vunpack.c.l.b16 %v304
      %v361 = vunpack.c.h.b16 %v304
      %v362 = vunpack.c.l.b16 %v305
      %v363 = vunpack.c.h.b16 %v305
      %v364 = vunpack.c.l.b16 %v306
      %v365 = vunpack.c.h.b16 %v306
      %v366 = vunpack.c.l.b16 %v307
      %v367 = vunpack.c.h.b16 %v307
      %v368 = vunpack.c.l.b16 %v308
      %v369 = vunpack.c.h.b16 %v308
      %v370 = vunpack.c.l.b16 %v309
      %v371 = vunpack.c.h.b16 %v309
      %v372 = vunpack.c.l.b16 %v310
      %v373 = vunpack.c.h.b16 %v310
      %v374 = vunpack.c.l.b16 %v311
      %v375 = vunpack.c.h.b16 %v311
      %v376 = vunpack.c.l.b16 %v312
      %v377 = vunpack.c.h.b16 %v312
      %v378 = vunpack.c.l.b16 %v313
      %v379 = vunpack.c.h.b16 %v313
      %v380 = vunpack.c.l.b16 %v314
      %v381 = vunpack.c.h.b16 %v314
      %v382 = vunpack.c.l.b16 %v315
      %v383 = vunpack.c.h.b16 %v315
      %v384 = vunpack.c.l.b16 %v316
      %v385 = vunpack.c.h.b16 %v316
      %v386 = vunpack.c.l.b16 %v317
      %v387 = vunpack.c.h.b16 %v317
      %v388 = vunpack.c.l.b16 %v318
      %v389 = vunpack.c.h.b16 %v318
      %v390 = vunpack.c.l.b16 %v319
      %v391 = vunpack.c.h.b16 %v319
      %v392 = vpack.c.b16 %v362, %v360
      %v393 = vpack.c.b16 %v363, %v361
      %v394 = vpack.c.b16 %v366, %v364
      %v395 = vpack.c.b16 %v367, %v365
      %v396 = vpack.c.b16 %v370, %v368
      %v397 = vpack.c.b16 %v371, %v369
      %v398 = vpack.c.b16 %v374, %v372
      %v399 = vpack.c.b16 %v375, %v373
      %v400 = vpack.c.b16 %v378, %v376
      %v401 = vpack.c.b16 %v379, %v377
      %v402 = vpack.c.b16 %v382, %v380
      %v403 = vpack.c.b16 %v383, %v381
      %v404 = vpack.c.b16 %v386, %v384
      %v405 = vpack.c.b16 %v387, %v385
      %v406 = vpack.c.b16 %v390, %v388
      %v407 = vpack.c.b16 %v391, %v389
      %424 = vmatprep.subr.bf16.mxu0 %v407
      %425 = vmatpush1.bf16.msra.mxu0 %v406
      %426 = vmatprep.subr.bf16.mxu0 %v405
      %427 = vmatpush1.bf16.msra.mxu0 %v404
      %428 = vmatprep.subr.bf16.mxu0 %v403
      %429 = vmatpush1.bf16.msra.mxu0 %v402
      %430 = vmatprep.subr.bf16.mxu0 %v401
      %431 = vmatpush1.bf16.msra.mxu0 %v400
      %432 = vmatprep.subr.bf16.mxu0 %v399
      %433 = vmatpush1.bf16.msra.mxu0 %v398
      %434 = vmatprep.subr.bf16.mxu0 %v397
      %435 = vmatpush1.bf16.msra.mxu0 %v396
      %436 = vmatprep.subr.bf16.mxu0 %v395
      %437 = vmatpush1.bf16.msra.mxu0 %v394
      %438 = vmatprep.subr.bf16.mxu0 %v393
      %439 = vmatpush1.bf16.msra.mxu0 %v392
      %440 = vmatprep.subr.bf16.mxu0 0
      %441 = vmatpush2.bf16.msra.mxu0 0
      %442 = vmatprep.subr.bf16.mxu0 0
      %443 = vmatpush2.bf16.msra.mxu0 0
      %444 = vmatprep.subr.bf16.mxu0 0
      %445 = vmatpush2.bf16.msra.mxu0 0
      %446 = vmatprep.subr.bf16.mxu0 0
      %447 = vmatpush2.bf16.msra.mxu0 0
      %448 = vmatprep.subr.bf16.mxu0 0
      %449 = vmatpush2.bf16.msra.mxu0 0
      %450 = vmatprep.subr.bf16.mxu0 0
      %451 = vmatpush2.bf16.msra.mxu0 0
      %452 = vmatprep.subr.bf16.mxu0 0
      %453 = vmatpush2.bf16.msra.mxu0 0
      %454 = vmatprep.subr.bf16.mxu0 0
      %455 = vmatpush2.bf16.msra.mxu0 0
      %456 = vmatprep.mubr.bf16.mxu0 0
      %457 = vmatmul.mubr.bf16.gmra.mxu0 %v336
      %v458 = vpop.f32.mrf.mxu0
      %v459 = vadd.f32 0.0, %v458
      %v460 = vpop.f32.mrf.mxu0
      %v461 = vadd.f32 0.0, %v460
      %v462 = vpop.f32.mrf.mxu0
      %v463 = vadd.f32 0.0, %v462
      %v464 = vpop.f32.mrf.mxu0
      %v465 = vadd.f32 0.0, %v464
      %466 = vmatprep.mubr.bf16.mxu0 0
      %467 = vmatmul.mubr.bf16.gmra.mxu0 %v337
      %v468 = vpop.f32.mrf.mxu0
      %v469 = vadd.f32 0.0, %v468
      %v470 = vpop.f32.mrf.mxu0
      %v471 = vadd.f32 0.0, %v470
      %v472 = vpop.f32.mrf.mxu0
      %v473 = vadd.f32 0.0, %v472
      %v474 = vpop.f32.mrf.mxu0
      %v475 = vadd.f32 0.0, %v474
      %476 = vmatprep.mubr.bf16.mxu0 0
      %477 = vmatmul.mubr.bf16.gmra.mxu0 %v338
      %v478 = vpop.f32.mrf.mxu0
      %v479 = vadd.f32 0.0, %v478
      %v480 = vpop.f32.mrf.mxu0
      %v481 = vadd.f32 0.0, %v480
      %v482 = vpop.f32.mrf.mxu0
      %v483 = vadd.f32 0.0, %v482
      %v484 = vpop.f32.mrf.mxu0
      %v485 = vadd.f32 0.0, %v484
      %486 = vmatprep.mubr.bf16.mxu0 0
      %487 = vmatmul.mubr.bf16.gmra.mxu0 %v339
      %v488 = vpop.f32.mrf.mxu0
      %v489 = vadd.f32 0.0, %v488
      %v490 = vpop.f32.mrf.mxu0
      %v491 = vadd.f32 0.0, %v490
      %v492 = vpop.f32.mrf.mxu0
      %v493 = vadd.f32 0.0, %v492
      %v494 = vpop.f32.mrf.mxu0
      %v495 = vadd.f32 0.0, %v494
      %496 = vdwg.mxu0
      %v497 = vpack.c.bf16 %v463, %v459
      %v498 = vpack.c.bf16 %v465, %v461
      %v499 = vpack.c.bf16 %v473, %v469
      %v500 = vpack.c.bf16 %v475, %v471
      %v501 = vpack.c.bf16 %v483, %v479
      %v502 = vpack.c.bf16 %v485, %v481
      %v503 = vpack.c.bf16 %v493, %v489
      %v504 = vpack.c.bf16 %v495, %v491
      %v513 = vunpack.c.l.b16 %v497
      %v514 = vunpack.c.l.b16 %v498
      %v515 = vunpack.c.h.b16 %v497
      %v516 = vunpack.c.h.b16 %v498
      %v517 = vunpack.c.l.b16 %v499
      %v518 = vunpack.c.l.b16 %v500
      %v519 = vunpack.c.h.b16 %v499
      %v520 = vunpack.c.h.b16 %v500
      %v521 = vunpack.c.l.b16 %v501
      %v522 = vunpack.c.l.b16 %v502
      %v523 = vunpack.c.h.b16 %v501
      %v524 = vunpack.c.h.b16 %v502
      %v525 = vunpack.c.l.b16 %v503
      %v526 = vunpack.c.l.b16 %v504
      %v527 = vunpack.c.h.b16 %v503
      %v528 = vunpack.c.h.b16 %v504
      %v529 = vpack.c.b16 %v514, %v513
      %v530 = vpack.c.b16 %v516, %v515
      %v531 = vpack.c.b16 %v518, %v517
      %v532 = vpack.c.b16 %v520, %v519
      %v533 = vpack.c.b16 %v522, %v521
      %v534 = vpack.c.b16 %v524, %v523
      %v535 = vpack.c.b16 %v526, %v525
      %v536 = vpack.c.b16 %v528, %v527
      %545 = vst [vmem:[%s272] sm:$0xff] %v529
      %546 = vst [vmem:[%s272 + $0x8] sm:$0xff] %v530
      %547 = vst [vmem:[%s272 + $0x10] sm:$0xff] %v531
      %548 = vst [vmem:[%s272 + $0x18] sm:$0xff] %v532
      %549 = vst [vmem:[%s272 + $0x20] sm:$0xff] %v533
      %550 = vst [vmem:[%s272 + $0x28] sm:$0xff] %v534
      %551 = vst [vmem:[%s272 + $0x30] sm:$0xff] %v535
      %552 = vst [vmem:[%s272 + $0x38] sm:$0xff] %v536
      %v553 = vadd.f32 %v459, %v463
      %v554 = vadd.f32 %v553, %v469
      %v555 = vadd.f32 %v554, %v473
      %v556 = vadd.f32 %v555, %v479
      %v557 = vadd.f32 %v556, %v483
      %v558 = vadd.f32 %v557, %v489
      %v559 = vadd.f32 %v558, %v493
      %v560 = vrot.slane %v559, 4
      %v561 = vadd.f32 %v559, %v560
      %v562 = vrot.slane %v561, 2
      %v563 = vadd.f32 %v561, %v562
      %v564 = vrot.slane %v563, 1
      %v565 = vadd.f32 %v563, %v564
      %v566 = vadd.f32 %v461, %v465
      %v567 = vadd.f32 %v566, %v471
      %v568 = vadd.f32 %v567, %v475
      %v569 = vadd.f32 %v568, %v481
      %v570 = vadd.f32 %v569, %v485
      %v571 = vadd.f32 %v570, %v491
      %v572 = vadd.f32 %v571, %v495
      %v573 = vrot.slane %v572, 4
      %v574 = vadd.f32 %v572, %v573
      %v575 = vrot.slane %v574, 2
      %v576 = vadd.f32 %v574, %v575
      %v577 = vrot.slane %v576, 1
      %v578 = vadd.f32 %v576, %v577
      %v579 = vmul.f32 %v459, %v459
      %v580 = vmul.f32 %v461, %v461
      %v581 = vmul.f32 %v463, %v463
      %v582 = vmul.f32 %v465, %v465
      %v583 = vmul.f32 %v469, %v469
      %v584 = vmul.f32 %v471, %v471
      %v585 = vmul.f32 %v473, %v473
      %v586 = vmul.f32 %v475, %v475
      %v587 = vmul.f32 %v479, %v479
      %v588 = vmul.f32 %v481, %v481
      %v589 = vmul.f32 %v483, %v483
      %v590 = vmul.f32 %v485, %v485
      %v591 = vmul.f32 %v489, %v489
      %v592 = vmul.f32 %v491, %v491
      %v593 = vmul.f32 %v493, %v493
      %v594 = vmul.f32 %v495, %v495
      %v595 = vadd.f32 %v579, %v581
      %v596 = vadd.f32 %v595, %v583
      %v597 = vadd.f32 %v596, %v585
      %v598 = vadd.f32 %v597, %v587
      %v599 = vadd.f32 %v598, %v589
      %v600 = vadd.f32 %v599, %v591
      %v601 = vadd.f32 %v600, %v593
      %v602 = vrot.slane %v601, 4
      %v603 = vadd.f32 %v601, %v602
      %v604 = vrot.slane %v603, 2
      %v605 = vadd.f32 %v603, %v604
      %v606 = vrot.slane %v605, 1
      %v607 = vadd.f32 %v605, %v606
      %v608 = vadd.f32 %v580, %v582
      %v609 = vadd.f32 %v608, %v584
      %v610 = vadd.f32 %v609, %v586
      %v611 = vadd.f32 %v610, %v588
      %v612 = vadd.f32 %v611, %v590
      %v613 = vadd.f32 %v612, %v592
      %v614 = vadd.f32 %v613, %v594
      %v615 = vrot.slane %v614, 4
      %v616 = vadd.f32 %v614, %v615
      %v617 = vrot.slane %v616, 2
      %v618 = vadd.f32 %v616, %v617
      %v619 = vrot.slane %v618, 1
      %v620 = vadd.f32 %v618, %v619
      %621 = vst [vmem:[%s283] sm:$0xff] %v565
      %622 = vst [vmem:[%s283 + $0x8] sm:$0xff] %v578
      %623 = vst [vmem:[%s293] sm:$0xff] %v607
      %624 = vst [vmem:[%s293 + $0x8] sm:$0xff] %v620
      %s625 = smul.u32 8, %s20
      %s626 = smul.u32 2, %s21
      %p627 = scmp.lt.s32.totalorder %s625, 15
      %s628 = scalar_select %p627, %s625, 15
      %p629 = scmp.lt.s32.totalorder %s626, 1
      %s630 = scalar_select %p629, %s626, 1
      %s631 = smul.addr %s628, 2
      %s632 = sadd.s32 %s630, %s631
      %s633 = smul.addr %s632, 4
      %s634 = scalar_lea.vmem %s2, %s633
      %s635 = smul.u32 2, %s21
      %p636 = scmp.lt.s32.totalorder %s20, 1
      %s637 = scalar_select %p636, %s20, 1
      %p638 = scmp.lt.s32.totalorder %s635, 1
      %s639 = scalar_select %p638, %s635, 1
      %s640 = smul.addr %s637, 2
      %s641 = sadd.s32 %s639, %s640
      %s642 = smul.addr %s641, 8
      %s643 = scalar_lea.vmem %s3, %s642
      %s644 = smul.u32 2, %s21
      %p645 = scmp.lt.s32.totalorder %s20, 1
      %s646 = scalar_select %p645, %s20, 1
      %p647 = scmp.lt.s32.totalorder %s644, 1
      %s648 = scalar_select %p647, %s644, 1
      %s649 = smul.addr %s646, 2
      %s650 = sadd.s32 %s648, %s649
      %s651 = smul.addr %s650, 8
      %s652 = scalar_lea.vmem %s4, %s651
      // Predicated region
      $region29: #{_lambda_.8} parent=27 // pred_check
        %p653 = pneg %p100
      $region30: #{_lambda_.8} parent=27 // pred_check_branch
        %655 = sbr.rel (%p653) target = $region32
      $region31: #{_lambda_.8} parent=27 // pred_region
        %s656 = smul.u32 8, %s20
        %s657 = smul.u32 2, %s21
      $region32: #{_lambda_.8} parent=27 // pred_fallthru
        _
      // Predicated region
      $region33: #{_lambda_.8} parent=27 // pred_check
        %p658 = pneg %p128
      $region34: #{_lambda_.8} parent=27 // pred_check_branch
        %660 = sbr.rel (%p658) target = $region36
      $region35: #{_lambda_.8} parent=27 // pred_region
        %s661 = smul.u32 2, %s21
      $region36: #{_lambda_.8} parent=27 // pred_fallthru
        _
      // Predicated region
      $region37: #{_lambda_.8} parent=27 // pred_check
        %p662 = pneg %p156
      $region38: #{_lambda_.8} parent=27 // pred_check_branch
        %664 = sbr.rel (%p662) target = $region40
      $region39: #{_lambda_.8} parent=27 // pred_region
        %s665 = smul.u32 2, %s21
      $region40: #{_lambda_.8} parent=27 // pred_fallthru
        _
    $region28: #{_lambda_.8} parent=5 // pred_fallthru
      _
    %p666 = scmp.le.s32.totalorder 2, %s11
    // Predicated region
    $region41: #{_lambda_.8} parent=5 // pred_check
      %p667 = pneg %p666
    $region42: #{_lambda_.8} parent=5 // pred_check_branch
      %669 = sbr.rel (%p667) target = $region44
    $region43: #{_lambda_.8} parent=5 // pred_region
      %s670 = ssub.s32 %s11, 2
      // Predicated region
      $region45: #{_lambda_.8} parent=43 // pred_check
        %p671 = pneg %p106
      $region46: #{_lambda_.8} parent=43 // pred_check_branch
        %673 = sbr.rel (%p671) target = $region48
      $region47: #{_lambda_.8} parent=43 // pred_region
        %s674 = smul.u32 8, %s22
        %s675 = smul.u32 2, %s23
        %p676 = scmp.lt.s32.totalorder %s674, 15
        %s677 = scalar_select %p676, %s674, 15
        %p678 = scmp.lt.s32.totalorder %s675, 1
        %s679 = scalar_select %p678, %s675, 1
        %s680 = smul.addr %s677, 2
        %s681 = sadd.s32 %s679, %s680
        %s682 = smul.addr %s681, 4
        %s683 = scalar_lea.vmem %s2, %s682
      $region48: #{_lambda_.8} parent=43 // pred_fallthru
        _
      // Predicated region
      $region49: #{_lambda_.8} parent=43 // pred_check
        %p684 = pneg %p134
      $region50: #{_lambda_.8} parent=43 // pred_check_branch
        %686 = sbr.rel (%p684) target = $region52
      $region51: #{_lambda_.8} parent=43 // pred_region
        %s687 = smul.u32 2, %s23
        %p688 = scmp.lt.s32.totalorder %s22, 1
        %s689 = scalar_select %p688, %s22, 1
        %p690 = scmp.lt.s32.totalorder %s687, 1
        %s691 = scalar_select %p690, %s687, 1
        %s692 = smul.addr %s689, 2
        %s693 = sadd.s32 %s691, %s692
        %s694 = smul.addr %s693, 8
        %s695 = scalar_lea.vmem %s3, %s694
      $region52: #{_lambda_.8} parent=43 // pred_fallthru
        _
      // Predicated region
      $region53: #{_lambda_.8} parent=43 // pred_check
        %p696 = pneg %p162
      $region54: #{_lambda_.8} parent=43 // pred_check_branch
        %698 = sbr.rel (%p696) target = $region56
      $region55: #{_lambda_.8} parent=43 // pred_region
        %s699 = smul.u32 2, %s23
        %p700 = scmp.lt.s32.totalorder %s22, 1
        %s701 = scalar_select %p700, %s22, 1
        %p702 = scmp.lt.s32.totalorder %s699, 1
        %s703 = scalar_select %p702, %s699, 1
        %s704 = smul.addr %s701, 2
        %s705 = sadd.s32 %s703, %s704
        %s706 = smul.addr %s705, 8
        %s707 = scalar_lea.vmem %s4, %s706
      $region56: #{_lambda_.8} parent=43 // pred_fallthru
        _
    $region44: #{_lambda_.8} parent=5 // pred_fallthru
      _
  $region6: #{_lambda_.8} parent=0 // loop_footer
    %s15 = sadd.s32 1, %s11
  $region7: #{_lambda_.8} parent=0 // loop_footer_branch
    %10 = sbr.rel target = $region3
  $region8: #{_lambda_.8} parent=0 // loop_exit
    _

// kernel: _lambda_.6
$region0: #{_lambda_.6}
  #allocation0 [shape = 'u32[]', space=smem, size = 0x4, offset = 0x4, fixed_abs, tag = 'smem constant byte address 0x4 - core index']
  #allocation1 [shape = 'u32[144,128]{1,0:T(1,128)}', space=vmem, size = 0x12000, scoped, tag = 'internal scratch']
  %s0 = inlined_call_operand.vmem [shape: bf16[8,9,9,64], index: 0, kind: input, shape index: {}]
  %s1 = inlined_call_operand.vmem [shape: f32[1,64], index: 1, kind: input, shape index: {}]
  %s2 = inlined_call_operand.vmem [shape: bf16[576,64], index: 2, kind: input, shape index: {}]
  %s3 = inlined_call_operand.vmem [shape: bf16[128,64], index: 3, kind: output, shape index: {0}]
  %s4 = inlined_call_operand.vmem [shape: f32[16,64], index: 4, kind: output, shape index: {1}]
  %s5 = inlined_call_operand.vmem [shape: f32[16,64], index: 5, kind: output, shape index: {2}]
  %6 = xla_tuple %s3, %s4, %s5
  %s7 = sld [smem:[#allocation0]]
  $region61: #{_lambda_.6} parent=0
    _
  %s9 = ssub.s32 1, %s7
  %s10 = scalar_select 0, %s9, %s7
  loop: start=0, step=1, limit=4
  $region2: #{_lambda_.6} parent=0 // loop_pre_header
    _
  $region3: #{_lambda_.6} parent=0 // loop_header
    %s12 = sphi 0, %s16
    %p13 = scmp.ge.s32.totalorder %s12, 4
    %s22 = sphi 0, %s24
    %s25 = sphi 0, %s22
    %s26 = sphi 0, %s25
    %s42 = sphi 0, %s26
    %s46 = sphi 0, %s46
    %s48 = sphi 0, %s46
    %s49 = sphi 0, %s48
    %s63 = sphi 0, %s49
    %s67 = sphi 0, %s67
    %s69 = sphi 0, %s67
    %s70 = sphi 0, %s69
    %s84 = sphi 0, %s70
    %s90 = sphi 0, %s92
    %s93 = sphi 0, %s90
    %s94 = sphi 0, %s93
    %s110 = sphi 0, %s94
    %s116 = sphi 0, %s118
    %s119 = sphi 0, %s116
    %s120 = sphi 0, %s119
    %s136 = sphi 0, %s120
    %s142 = sphi 0, %s144
    %s145 = sphi 0, %s142
    %s146 = sphi 0, %s145
    %s162 = sphi 0, %s146
  $region4: #{_lambda_.6} parent=0 // loop_header_branch
    %15 = sbr.rel (%p13) target = $region8
  $region5: #{_lambda_.6} parent=0 // loop_body
    %s17 = ssub.s32 %s12, 1
    %s18 = ssub.s32 %s12, 2
    %s19 = sadd.s32 %s12, 1
    %s20 = ssub.s32 %s12, %s19
    %p21 = scmp.eq.s32.totalorder %s20, 0
    %s23 = sadd.s32 %s22, 1
    %s24 = scalar_select %p21, %s22, %s23
    %p27 = pneg %p21
    %p28 = scmp.eq.s32.totalorder %s12, 1
    %p29 = por %p27, %p28
    %p30 = scmp.ne.s32.totalorder %s22, %s25
    %p31 = scmp.eq.s32.totalorder %s12, 0
    %p32 = por %p30, %p31
    %p33 = scmp.ne.s32.totalorder %s22, %s25
    %p34 = scmp.eq.s32.totalorder %s17, 1
    %p35 = por %p33, %p34
    %p36 = scmp.ne.s32.totalorder %s25, %s26
    %p37 = scmp.eq.s32.totalorder %s17, 0
    %p38 = por %p36, %p37
    %p39 = scmp.ne.s32.totalorder %s25, %s26
    %p40 = scmp.eq.s32.totalorder %s18, 1
    %p41 = por %p39, %p40
    %p43 = scmp.ne.s32.totalorder %s26, %s42
    %p44 = scmp.eq.s32.totalorder %s18, 0
    %p45 = por %p43, %p44
    %s47 = sadd.s32 %s46, 1
    %p50 = scmp.eq.s32.totalorder %s12, 1
    %p51 = scmp.ne.s32.totalorder %s46, %s48
    %p52 = scmp.eq.s32.totalorder %s12, 0
    %p53 = por %p51, %p52
    %p54 = scmp.ne.s32.totalorder %s46, %s48
    %p55 = scmp.eq.s32.totalorder %s17, 1
    %p56 = por %p54, %p55
    %p57 = scmp.ne.s32.totalorder %s48, %s49
    %p58 = scmp.eq.s32.totalorder %s17, 0
    %p59 = por %p57, %p58
    %p60 = scmp.ne.s32.totalorder %s48, %s49
    %p61 = scmp.eq.s32.totalorder %s18, 1
    %p62 = por %p60, %p61
    %p64 = scmp.ne.s32.totalorder %s49, %s63
    %p65 = scmp.eq.s32.totalorder %s18, 0
    %p66 = por %p64, %p65
    %s68 = sadd.s32 %s67, 1
    %p71 = scmp.eq.s32.totalorder %s12, 1
    %p72 = scmp.ne.s32.totalorder %s67, %s69
    %p73 = scmp.eq.s32.totalorder %s12, 0
    %p74 = por %p72, %p73
    %p75 = scmp.ne.s32.totalorder %s67, %s69
    %p76 = scmp.eq.s32.totalorder %s17, 1
    %p77 = por %p75, %p76
    %p78 = scmp.ne.s32.totalorder %s69, %s70
    %p79 = scmp.eq.s32.totalorder %s17, 0
    %p80 = por %p78, %p79
    %p81 = scmp.ne.s32.totalorder %s69, %s70
    %p82 = scmp.eq.s32.totalorder %s18, 1
    %p83 = por %p81, %p82
    %p85 = scmp.ne.s32.totalorder %s70, %s84
    %p86 = scmp.eq.s32.totalorder %s18, 0
    %p87 = por %p85, %p86
    %s88 = ssub.s32 %s12, %s19
    %p89 = scmp.eq.s32.totalorder %s88, 0
    %s91 = sadd.s32 %s90, 1
    %s92 = scalar_select %p89, %s90, %s91
    %p95 = pneg %p89
    %p96 = scmp.eq.s32.totalorder %s12, 1
    %p97 = por %p95, %p96
    %p98 = scmp.ne.s32.totalorder %s90, %s93
    %p99 = scmp.eq.s32.totalorder %s12, 0
    %p100 = por %p98, %p99
    %p101 = scmp.ne.s32.totalorder %s90, %s93
    %p102 = scmp.eq.s32.totalorder %s17, 1
    %p103 = por %p101, %p102
    %p104 = scmp.ne.s32.totalorder %s93, %s94
    %p105 = scmp.eq.s32.totalorder %s17, 0
    %p106 = por %p104, %p105
    %p107 = scmp.ne.s32.totalorder %s93, %s94
    %p108 = scmp.eq.s32.totalorder %s18, 1
    %p109 = por %p107, %p108
    %p111 = scmp.ne.s32.totalorder %s94, %s110
    %p112 = scmp.eq.s32.totalorder %s18, 0
    %p113 = por %p111, %p112
    %s114 = ssub.s32 %s12, %s19
    %p115 = scmp.eq.s32.totalorder %s114, 0
    %s117 = sadd.s32 %s116, 1
    %s118 = scalar_select %p115, %s116, %s117
    %p121 = pneg %p115
    %p122 = scmp.eq.s32.totalorder %s12, 1
    %p123 = por %p121, %p122
    %p124 = scmp.ne.s32.totalorder %s116, %s119
    %p125 = scmp.eq.s32.totalorder %s12, 0
    %p126 = por %p124, %p125
    %p127 = scmp.ne.s32.totalorder %s116, %s119
    %p128 = scmp.eq.s32.totalorder %s17, 1
    %p129 = por %p127, %p128
    %p130 = scmp.ne.s32.totalorder %s119, %s120
    %p131 = scmp.eq.s32.totalorder %s17, 0
    %p132 = por %p130, %p131
    %p133 = scmp.ne.s32.totalorder %s119, %s120
    %p134 = scmp.eq.s32.totalorder %s18, 1
    %p135 = por %p133, %p134
    %p137 = scmp.ne.s32.totalorder %s120, %s136
    %p138 = scmp.eq.s32.totalorder %s18, 0
    %p139 = por %p137, %p138
    %s140 = ssub.s32 %s12, %s19
    %p141 = scmp.eq.s32.totalorder %s140, 0
    %s143 = sadd.s32 %s142, 1
    %s144 = scalar_select %p141, %s142, %s143
    %p147 = pneg %p141
    %p148 = scmp.eq.s32.totalorder %s12, 1
    %p149 = por %p147, %p148
    %p150 = scmp.ne.s32.totalorder %s142, %s145
    %p151 = scmp.eq.s32.totalorder %s12, 0
    %p152 = por %p150, %p151
    %p153 = scmp.ne.s32.totalorder %s142, %s145
    %p154 = scmp.eq.s32.totalorder %s17, 1
    %p155 = por %p153, %p154
    %p156 = scmp.ne.s32.totalorder %s145, %s146
    %p157 = scmp.eq.s32.totalorder %s17, 0
    %p158 = por %p156, %p157
    %p159 = scmp.ne.s32.totalorder %s145, %s146
    %p160 = scmp.eq.s32.totalorder %s18, 1
    %p161 = por %p159, %p160
    %p163 = scmp.ne.s32.totalorder %s146, %s162
    %p164 = scmp.eq.s32.totalorder %s18, 0
    %p165 = por %p163, %p164
    %p166 = scmp.le.s32.totalorder 1, %s12
    %p167 = scmp.lt.s32.totalorder %s12, 3
    %p168 = pnand %p166, %p167
    %p169 = pneg %p168
    // Predicated region
    $region9: #{_lambda_.6} parent=5 // pred_check
      _
    $region10: #{_lambda_.6} parent=5 // pred_check_branch
      %171 = sbr.rel (%p168) target = $region12
    $region11: #{_lambda_.6} parent=5 // pred_region
      %s172 = ssub.s32 %s12, 1
      // Predicated region
      $region13: #{_lambda_.6} parent=11 // pred_check
        %p173 = pneg %p59
      $region14: #{_lambda_.6} parent=11 // pred_check_branch
        %175 = sbr.rel (%p173) target = $region16
      $region15: #{_lambda_.6} parent=11 // pred_region
        _
      $region16: #{_lambda_.6} parent=11 // pred_fallthru
        _
      // Predicated region
      $region17: #{_lambda_.6} parent=11 // pred_check
        %p176 = pneg %p80
      $region18: #{_lambda_.6} parent=11 // pred_check_branch
        %178 = sbr.rel (%p176) target = $region20
      $region19: #{_lambda_.6} parent=11 // pred_region
        _
      $region20: #{_lambda_.6} parent=11 // pred_fallthru
        _
    $region12: #{_lambda_.6} parent=5 // pred_fallthru
      _
    %p179 = scmp.lt.s32.totalorder %s12, 2
    // Predicated region
    $region21: #{_lambda_.6} parent=5 // pred_check
      %p180 = pneg %p179
    $region22: #{_lambda_.6} parent=5 // pred_check_branch
      %182 = sbr.rel (%p180) target = $region24
    $region23: #{_lambda_.6} parent=5 // pred_region
      // Predicated region
      $region25: #{_lambda_.6} parent=23 // pred_check
        %p183 = pneg %p32
      $region26: #{_lambda_.6} parent=23 // pred_check_branch
        %185 = sbr.rel (%p183) target = $region28
      $region27: #{_lambda_.6} parent=23 // pred_region
        %s186 = smul.u32 4, %s12
        %p187 = scmp.lt.s32.totalorder %s186, 7
        %s188 = scalar_select %p187, %s186, 7
        %s189 = smul.addr %s188, 18
        %s190 = smul.addr %s189, 4
        %s191 = scalar_lea.vmem %s0, %s190
        %s192 = smul.u32 4, %s12
      $region28: #{_lambda_.6} parent=23 // pred_fallthru
        _
    $region24: #{_lambda_.6} parent=5 // pred_fallthru
      _
    %p193 = scmp.le.s32.totalorder 1, %s12
    %p194 = scmp.lt.s32.totalorder %s12, 3
    %p195 = pnand %p193, %p194
    %p196 = pneg %p195
    // Predicated region
    $region29: #{_lambda_.6} parent=5 // pred_check
      _
    $region30: #{_lambda_.6} parent=5 // pred_check_branch
      %198 = sbr.rel (%p195) target = $region32
    $region31: #{_lambda_.6} parent=5 // pred_region
      %s199 = ssub.s32 %s12, 1
      %s200 = smul.u32 4, %s17
      %p201 = scmp.lt.s32.totalorder %s200, 7
      %s202 = scalar_select %p201, %s200, 7
      %s203 = smul.addr %s202, 18
      %s204 = smul.addr %s203, 4
      %s205 = scalar_lea.vmem %s0, %s204
      %p206 = pneg %p38
      %p207 = pneg %p35
      %p208 = pneg %p59
      %p209 = pneg %p56
      %p210 = pneg %p80
      %p211 = pneg %p77
      %p212 = pneg %p106
      %p213 = pneg %p103
      %s214 = smul.u32 8, %s17
      %p215 = scmp.lt.s32.totalorder %s214, 15
      %s216 = scalar_select %p215, %s214, 15
      %s217 = smul.addr %s216, 4
      %s218 = scalar_lea.vmem %s3, %s217
      %p219 = pneg %p132
      %p220 = pneg %p129
      %p221 = scmp.lt.s32.totalorder %s17, 1
      %s222 = scalar_select %p221, %s17, 1
      %s223 = smul.addr %s222, 8
      %s224 = scalar_lea.vmem %s4, %s223
      %p225 = pneg %p158
      %p226 = pneg %p155
      %p227 = scmp.lt.s32.totalorder %s17, 1
      %s228 = scalar_select %p227, %s17, 1
      %s229 = smul.addr %s228, 8
      %s230 = scalar_lea.vmem %s5, %s229
      %s231 = smul.u32 4, %s17
      %p232 = scmp.lt.s32.totalorder %s231, 7
      %s233 = scalar_select %p232, %s231, 7
      %s234 = smul.addr %s233, 18
      %s235 = smul.addr %s234, 4
      %s236 = scalar_lea.vmem %s0, %s235
      %s237 = smul.u32 4, %s17
      %s238 = smul.u32 8, %s17
      %p239 = scmp.lt.s32.totalorder %s238, 15
      %s240 = scalar_select %p239, %s238, 15
      %s241 = smul.addr %s240, 4
      %s242 = scalar_lea.vmem %s3, %s241
      %s243 = smul.u32 8, %s17
      %p244 = scmp.lt.s32.totalorder %s17, 1
      %s245 = scalar_select %p244, %s17, 1
      %s246 = smul.addr %s245, 8
      %s247 = scalar_lea.vmem %s4, %s246
      %p248 = scmp.lt.s32.totalorder %s17, 1
      %s249 = scalar_select %p248, %s17, 1
      %s250 = smul.addr %s249, 8
      %s251 = scalar_lea.vmem %s5, %s250
      %v253 = vld [vmem:[%s1] sm:$0x1]
      %v254 = vld [vmem:[%s236] sm:$0xf]
      %v255 = vld [vmem:[%s236 + $0x8] sm:$0xf]
      %v256 = vld [vmem:[%s236 + $0x10] sm:$0xf]
      %v257 = vld [vmem:[%s236 + $0x18] sm:$0xf]
      %v258 = vld [vmem:[%s236 + $0x20] sm:$0xf]
      %v259 = vld [vmem:[%s236 + $0x28] sm:$0xf]
      %v260 = vld [vmem:[%s236 + $0x30] sm:$0xf]
      %v261 = vld [vmem:[%s236 + $0x38] sm:$0xf]
      %v262 = vunpack.c.l.bf16 %v254
      %v263 = vunpack.c.l.bf16 %v255
      %v264 = vunpack.c.l.bf16 %v256
      %v265 = vunpack.c.l.bf16 %v257
      %v266 = vunpack.c.l.bf16 %v258
      %v267 = vunpack.c.l.bf16 %v259
      %v268 = vunpack.c.l.bf16 %v260
      %v269 = vunpack.c.l.bf16 %v261
      %v271 = vlaneseq
      %v272 = vshrl.u32 %v271, 7
      %v273 = vsub.s32 0, %v272
      %v274 = vrot.slane %v253, %v273
      %v276 = vmul.f32 %v262, %v274
      %v277 = vmul.f32 %v263, %v274
      %v278 = vmul.f32 %v264, %v274
      %v279 = vmul.f32 %v265, %v274
      %v280 = vmul.f32 %v266, %v274
      %v281 = vmul.f32 %v267, %v274
      %v282 = vmul.f32 %v268, %v274
      %v283 = vmul.f32 %v269, %v274
      %v284 = vmax.f32 %v276, 0.0
      %v285 = vmax.f32 %v277, 0.0
      %v286 = vmax.f32 %v278, 0.0
      %v287 = vmax.f32 %v279, 0.0
      %v288 = vmax.f32 %v280, 0.0
      %v289 = vmax.f32 %v281, 0.0
      %v290 = vmax.f32 %v282, 0.0
      %v291 = vmax.f32 %v283, 0.0
      %v292 = vpack.c.bf16 %v285, %v284
      %v293 = vpack.c.bf16 %v287, %v286
      %v294 = vpack.c.bf16 %v289, %v288
      %v295 = vpack.c.bf16 %v291, %v290
      %v296 = vld [vmem:[%s2] sm:$0xf]
      %v297 = vld [vmem:[%s2 + $0x4] sm:$0xf]
      %v298 = vld [vmem:[%s2 + $0x8] sm:$0xf]
      %v299 = vld [vmem:[%s2 + $0xc] sm:$0xf]
      %v300 = vld [vmem:[%s2 + $0x10] sm:$0xf]
      %v301 = vld [vmem:[%s2 + $0x14] sm:$0xf]
      %v302 = vld [vmem:[%s2 + $0x18] sm:$0xf]
      %v303 = vld [vmem:[%s2 + $0x1c] sm:$0xf]
      %s304 = scalar_lea.vmem %s236, 72
      %v305 = vld [vmem:[%s304] sm:$0xf]
      %v306 = vld [vmem:[%s304 + $0x8] sm:$0xf]
      %v307 = vld [vmem:[%s304 + $0x10] sm:$0xf]
      %v308 = vld [vmem:[%s304 + $0x18] sm:$0xf]
      %v309 = vld [vmem:[%s304 + $0x20] sm:$0xf]
      %v310 = vld [vmem:[%s304 + $0x28] sm:$0xf]
      %v311 = vld [vmem:[%s304 + $0x30] sm:$0xf]
      %v312 = vld [vmem:[%s304 + $0x38] sm:$0xf]
      %v313 = vunpack.c.l.bf16 %v305
      %v314 = vunpack.c.l.bf16 %v306
      %v315 = vunpack.c.l.bf16 %v307
      %v316 = vunpack.c.l.bf16 %v308
      %v317 = vunpack.c.l.bf16 %v309
      %v318 = vunpack.c.l.bf16 %v310
      %v319 = vunpack.c.l.bf16 %v311
      %v320 = vunpack.c.l.bf16 %v312
      %v321 = vmul.f32 %v313, %v274
      %v322 = vmul.f32 %v314, %v274
      %v323 = vmul.f32 %v315, %v274
      %v324 = vmul.f32 %v316, %v274
      %v325 = vmul.f32 %v317, %v274
      %v326 = vmul.f32 %v318, %v274
      %v327 = vmul.f32 %v319, %v274
      %v328 = vmul.f32 %v320, %v274
      %v329 = vmax.f32 %v321, 0.0
      %v330 = vmax.f32 %v322, 0.0
      %v331 = vmax.f32 %v323, 0.0
      %v332 = vmax.f32 %v324, 0.0
      %v333 = vmax.f32 %v325, 0.0
      %v334 = vmax.f32 %v326, 0.0
      %v335 = vmax.f32 %v327, 0.0
      %v336 = vmax.f32 %v328, 0.0
      %v337 = vpack.c.bf16 %v330, %v329
      %v338 = vpack.c.bf16 %v332, %v331
      %v339 = vpack.c.bf16 %v334, %v333
      %v340 = vpack.c.bf16 %v336, %v335
      %v341 = vld [vmem:[%s2 + $0x20] sm:$0xf]
      %v342 = vld [vmem:[%s2 + $0x24] sm:$0xf]
      %v343 = vld [vmem:[%s2 + $0x28] sm:$0xf]
      %v344 = vld [vmem:[%s2 + $0x2c] sm:$0xf]
      %v345 = vld [vmem:[%s2 + $0x30] sm:$0xf]
      %v346 = vld [vmem:[%s2 + $0x34] sm:$0xf]
      %v347 = vld [vmem:[%s2 + $0x38] sm:$0xf]
      %v348 = vld [vmem:[%s2 + $0x3c] sm:$0xf]
      %v357 = vunpack.c.l.b16 %v341
      %v358 = vunpack.c.l.b16 %v342
      %v359 = vunpack.c.l.b16 %v343
      %v360 = vunpack.c.l.b16 %v344
      %v361 = vunpack.c.l.b16 %v345
      %v362 = vunpack.c.l.b16 %v346
      %v363 = vunpack.c.l.b16 %v347
      %v364 = vunpack.c.l.b16 %v348
      %v365 = vpack.c.b16 %v358, %v357
      %v366 = vpack.c.b16 %v360, %v359
      %v367 = vpack.c.b16 %v362, %v361
      %v368 = vpack.c.b16 %v364, %v363
      %vm373 = vcmask 523264
      %v375 = vsel %vm373, %v337, 0
      %v378 = vsel %vm373, %v338, 0
      %v381 = vsel %vm373, %v339, 0
      %v384 = vsel %vm373, %v340, 0
      %386 = vmatprep.subr.bf16.mxu0 0
      %387 = vmatpush1.bf16.msra.mxu0 0
      %388 = vmatprep.subr.bf16.mxu0 0
      %389 = vmatpush1.bf16.msra.mxu0 0
      %390 = vmatprep.subr.bf16.mxu0 0
      %391 = vmatpush1.bf16.msra.mxu0 0
      %392 = vmatprep.subr.bf16.mxu0 0
      %393 = vmatpush1.bf16.msra.mxu0 0
      %394 = vmatprep.subr.bf16.mxu0 0
      %395 = vmatpush1.bf16.msra.mxu0 %v368
      %396 = vmatprep.subr.bf16.mxu0 0
      %397 = vmatpush1.bf16.msra.mxu0 %v367
      %398 = vmatprep.subr.bf16.mxu0 0
      %399 = vmatpush1.bf16.msra.mxu0 %v366
      %400 = vmatprep.subr.bf16.mxu0 0
      %401 = vmatpush1.bf16.msra.mxu0 %v365
      %402 = vmatprep.subr.bf16.mxu0 0
      %403 = vmatpush2.bf16.msra.mxu0 0
      %404 = vmatprep.subr.bf16.mxu0 0
      %405 = vmatpush2.bf16.msra.mxu0 0
      %406 = vmatprep.subr.bf16.mxu0 0
      %407 = vmatpush2.bf16.msra.mxu0 0
      %408 = vmatprep.subr.bf16.mxu0 0
      %409 = vmatpush2.bf16.msra.mxu0 0
      %410 = vmatprep.subr.bf16.mxu0 0
      %411 = vmatpush2.bf16.msra.mxu0 0
      %412 = vmatprep.subr.bf16.mxu0 0
      %413 = vmatpush2.bf16.msra.mxu0 0
      %414 = vmatprep.subr.bf16.mxu0 0
      %415 = vmatpush2.bf16.msra.mxu0 0
      %416 = vmatprep.subr.bf16.mxu0 0
      %417 = vmatpush2.bf16.msra.mxu0 0
      %418 = vmatprep.mubr.bf16.mxu0 0
      %419 = vmatmul.mubr.bf16.gmra.mxu0 %v375
      %v420 = vpop.f32.mrf.mxu0
      %v421 = vadd.f32 0.0, %v420
      %v422 = vpop.f32.mrf.mxu0
      %v423 = vpop.f32.mrf.mxu0
      %v424 = vadd.f32 0.0, %v423
      %v425 = vpop.f32.mrf.mxu0
      %426 = vmatprep.mubr.bf16.mxu0 0
      %427 = vmatmul.mubr.bf16.gmra.mxu0 %v378
      %v428 = vpop.f32.mrf.mxu0
      %v429 = vadd.f32 0.0, %v428
      %v430 = vpop.f32.mrf.mxu0
      %v431 = vpop.f32.mrf.mxu0
      %v432 = vadd.f32 0.0, %v431
      %v433 = vpop.f32.mrf.mxu0
      %434 = vmatprep.mubr.bf16.mxu0 0
      %435 = vmatmul.mubr.bf16.gmra.mxu0 %v381
      %v436 = vpop.f32.mrf.mxu0
      %v437 = vadd.f32 0.0, %v436
      %v438 = vpop.f32.mrf.mxu0
      %v439 = vpop.f32.mrf.mxu0
      %v440 = vadd.f32 0.0, %v439
      %v441 = vpop.f32.mrf.mxu0
      %442 = vmatprep.mubr.bf16.mxu0 0
      %443 = vmatmul.mubr.bf16.gmra.mxu0 %v384
      %v444 = vpop.f32.mrf.mxu0
      %v445 = vadd.f32 0.0, %v444
      %v446 = vpop.f32.mrf.mxu0
      %v447 = vpop.f32.mrf.mxu0
      %v448 = vadd.f32 0.0, %v447
      %v449 = vpop.f32.mrf.mxu0
      %450 = vdwg.mxu0
      %v459 = vunpack.c.l.b16 %v296
      %v460 = vunpack.c.l.b16 %v297
      %v461 = vunpack.c.l.b16 %v298
      %v462 = vunpack.c.l.b16 %v299
      %v463 = vunpack.c.l.b16 %v300
      %v464 = vunpack.c.l.b16 %v301
      %v465 = vunpack.c.l.b16 %v302
      %v466 = vunpack.c.l.b16 %v303
      %v467 = vpack.c.b16 %v460, %v459
      %v468 = vpack.c.b16 %v462, %v461
      %v469 = vpack.c.b16 %v464, %v463
      %v470 = vpack.c.b16 %v466, %v465
      %v476 = vsel %vm373, %v292, 0
      %v479 = vsel %vm373, %v293, 0
      %v482 = vsel %vm373, %v294, 0
      %v485 = vsel %vm373, %v295, 0
      %487 = vmatprep.subr.bf16.mxu0 0
      %488 = vmatpush1.bf16.msra.mxu0 0
      %489 = vmatprep.subr.bf16.mxu0 0
      %490 = vmatpush1.bf16.msra.mxu0 0
      %491 = vmatprep.subr.bf16.mxu0 0
      %492 = vmatpush1.bf16.msra.mxu0 0
      %493 = vmatprep.subr.bf16.mxu0 0
      %494 = vmatpush1.bf16.msra.mxu0 0
      %495 = vmatprep.subr.bf16.mxu0 0
      %496 = vmatpush1.bf16.msra.mxu0 %v470
      %497 = vmatprep.subr.bf16.mxu0 0
      %498 = vmatpush1.bf16.msra.mxu0 %v469
      %499 = vmatprep.subr.bf16.mxu0 0
      %500 = vmatpush1.bf16.msra.mxu0 %v468
      %501 = vmatprep.subr.bf16.mxu0 0
      %502 = vmatpush1.bf16.msra.mxu0 %v467
      %503 = vmatprep.subr.bf16.mxu0 0
      %504 = vmatpush2.bf16.msra.mxu0 0
      %505 = vmatprep.subr.bf16.mxu0 0
      %506 = vmatpush2.bf16.msra.mxu0 0
      %507 = vmatprep.subr.bf16.mxu0 0
      %508 = vmatpush2.bf16.msra.mxu0 0
      %509 = vmatprep.subr.bf16.mxu0 0
      %510 = vmatpush2.bf16.msra.mxu0 0
      %511 = vmatprep.subr.bf16.mxu0 0
      %512 = vmatpush2.bf16.msra.mxu0 0
      %513 = vmatprep.subr.bf16.mxu0 0
      %514 = vmatpush2.bf16.msra.mxu0 0
      %515 = vmatprep.subr.bf16.mxu0 0
      %516 = vmatpush2.bf16.msra.mxu0 0
      %517 = vmatprep.subr.bf16.mxu0 0
      %518 = vmatpush2.bf16.msra.mxu0 0
      %519 = vmatprep.mubr.bf16.mxu0 0
      %520 = vmatmul.mubr.bf16.gmra.mxu0 %v476
      %v521 = vpop.f32.mrf.mxu0
      %v522 = vadd.f32 %v421, %v521
      %v523 = vpop.f32.mrf.mxu0
      %v524 = vpop.f32.mrf.mxu0
      %v525 = vadd.f32 %v424, %v524
      %v526 = vpop.f32.mrf.mxu0
      %527 = vmatprep.mubr.bf16.mxu0 0
      %528 = vmatmul.mubr.bf16.gmra.mxu0 %v479
      %v529 = vpop.f32.mrf.mxu0
      %v530 = vadd.f32 %v429, %v529
      %v531 = vpop.f32.mrf.mxu0
      %v532 = vpop.f32.mrf.mxu0
      %v533 = vadd.f32 %v432, %v532
      %v534 = vpop.f32.mrf.mxu0
      %535 = vmatprep.mubr.bf16.mxu0 0
      %536 = vmatmul.mubr.bf16.gmra.mxu0 %v482
      %v537 = vpop.f32.mrf.mxu0
      %v538 = vadd.f32 %v437, %v537
      %v539 = vpop.f32.mrf.mxu0
      %v540 = vpop.f32.mrf.mxu0
      %v541 = vadd.f32 %v440, %v540
      %v542 = vpop.f32.mrf.mxu0
      %543 = vmatprep.mubr.bf16.mxu0 0
      %544 = vmatmul.mubr.bf16.gmra.mxu0 %v485
      %v545 = vpop.f32.mrf.mxu0
      %v546 = vadd.f32 %v445, %v545
      %v547 = vpop.f32.mrf.mxu0
      %v548 = vpop.f32.mrf.mxu0
      %v549 = vadd.f32 %v448, %v548
      %v550 = vpop.f32.mrf.mxu0
      %551 = vdwg.mxu0
      %v552 = vld [vmem:[%s236] sm:$0xf]
      %v553 = vld [vmem:[%s236 + $0x4] sm:$0x1]
      %v554 = vld [vmem:[%s236 + $0x8] sm:$0xf]
      %v555 = vld [vmem:[%s236 + $0xc] sm:$0x1]
      %v556 = vld [vmem:[%s236 + $0x10] sm:$0xf]
      %v557 = vld [vmem:[%s236 + $0x14] sm:$0x1]
      %v558 = vld [vmem:[%s236 + $0x18] sm:$0xf]
      %v559 = vld [vmem:[%s236 + $0x1c] sm:$0x1]
      %v560 = vld [vmem:[%s236 + $0x20] sm:$0xf]
      %v561 = vld [vmem:[%s236 + $0x24] sm:$0x1]
      %v562 = vld [vmem:[%s236 + $0x28] sm:$0xf]
      %v563 = vld [vmem:[%s236 + $0x2c] sm:$0x1]
      %v564 = vld [vmem:[%s236 + $0x30] sm:$0xf]
      %v565 = vld [vmem:[%s236 + $0x34] sm:$0x1]
      %v566 = vld [vmem:[%s236 + $0x38] sm:$0xf]
      %v567 = vld [vmem:[%s236 + $0x3c] sm:$0x1]
      %v568 = vunpack.c.l.bf16 %v552
      %v569 = vunpack.c.l.bf16 %v553
      %v570 = vunpack.c.l.bf16 %v554
      %v571 = vunpack.c.l.bf16 %v555
      %v572 = vunpack.c.l.bf16 %v556
      %v573 = vunpack.c.l.bf16 %v557
      %v574 = vunpack.c.l.bf16 %v558
      %v575 = vunpack.c.l.bf16 %v559
      %v576 = vunpack.c.l.bf16 %v560
      %v577 = vunpack.c.l.bf16 %v561
      %v578 = vunpack.c.l.bf16 %v562
      %v579 = vunpack.c.l.bf16 %v563
      %v580 = vunpack.c.l.bf16 %v564
      %v581 = vunpack.c.l.bf16 %v565
      %v582 = vunpack.c.l.bf16 %v566
      %v583 = vunpack.c.l.bf16 %v567
      %vm600 = vcmask 1046528
      %v601 = vrot.slane %v568, 1
      %v602 = vrot.slane %v569, 1
      %v603 = vsel %vm600, %v601, %v602
      %v604 = vrot.slane %v570, 1
      %v605 = vrot.slane %v571, 1
      %v606 = vsel %vm600, %v604, %v605
      %v607 = vrot.slane %v572, 1
      %v608 = vrot.slane %v573, 1
      %v609 = vsel %vm600, %v607, %v608
      %v610 = vrot.slane %v574, 1
      %v611 = vrot.slane %v575, 1
      %v612 = vsel %vm600, %v610, %v611
      %v613 = vrot.slane %v576, 1
      %v614 = vrot.slane %v577, 1
      %v615 = vsel %vm600, %v613, %v614
      %v616 = vrot.slane %v578, 1
      %v617 = vrot.slane %v579, 1
      %v618 = vsel %vm600, %v616, %v617
      %v619 = vrot.slane %v580, 1
      %v620 = vrot.slane %v581, 1
      %v621 = vsel %vm600, %v619, %v620
      %v622 = vrot.slane %v582, 1
      %v623 = vrot.slane %v583, 1
      %v624 = vsel %vm600, %v622, %v623
      %v633 = vmul.f32 %v603, %v274
      %v634 = vmul.f32 %v606, %v274
      %v635 = vmul.f32 %v609, %v274
      %v636 = vmul.f32 %v612, %v274
      %v637 = vmul.f32 %v615, %v274
      %v638 = vmul.f32 %v618, %v274
      %v639 = vmul.f32 %v621, %v274
      %v640 = vmul.f32 %v624, %v274
      %v641 = vmax.f32 %v633, 0.0
      %v642 = vmax.f32 %v634, 0.0
      %v643 = vmax.f32 %v635, 0.0
      %v644 = vmax.f32 %v636, 0.0
      %v645 = vmax.f32 %v637, 0.0
      %v646 = vmax.f32 %v638, 0.0
      %v647 = vmax.f32 %v639, 0.0
      %v648 = vmax.f32 %v640, 0.0
      %v649 = vpack.c.bf16 %v642, %v641
      %v650 = vpack.c.bf16 %v644, %v643
      %v651 = vpack.c.bf16 %v646, %v645
      %v652 = vpack.c.bf16 %v648, %v647
      %v653 = vld [vmem:[%s2 + $0x40] sm:$0xf]
      %v654 = vld [vmem:[%s2 + $0x44] sm:$0xf]
      %v655 = vld [vmem:[%s2 + $0x48] sm:$0xf]
      %v656 = vld [vmem:[%s2 + $0x4c] sm:$0xf]
      %v657 = vld [vmem:[%s2 + $0x50] sm:$0xf]
      %v658 = vld [vmem:[%s2 + $0x54] sm:$0xf]
      %v659 = vld [vmem:[%s2 + $0x58] sm:$0xf]
      %v660 = vld [vmem:[%s2 + $0x5c] sm:$0xf]
      %v669 = vunpack.c.l.b16 %v653
      %v670 = vunpack.c.l.b16 %v654
      %v671 = vunpack.c.l.b16 %v655
      %v672 = vunpack.c.l.b16 %v656
      %v673 = vunpack.c.l.b16 %v657
      %v674 = vunpack.c.l.b16 %v658
      %v675 = vunpack.c.l.b16 %v659
      %v676 = vunpack.c.l.b16 %v660
      %v677 = vpack.c.b16 %v670, %v669
      %v678 = vpack.c.b16 %v672, %v671
      %v679 = vpack.c.b16 %v674, %v673
      %v680 = vpack.c.b16 %v676, %v675
      %v686 = vsel %vm373, %v649, 0
      %v689 = vsel %vm373, %v650, 0
      %v692 = vsel %vm373, %v651, 0
      %v695 = vsel %vm373, %v652, 0
      %697 = vmatprep.subr.bf16.mxu0 0
      %698 = vmatpush1.bf16.msra.mxu0 0
      %699 = vmatprep.subr.bf16.mxu0 0
      %700 = vmatpush1.bf16.msra.mxu0 0
      %701 = vmatprep.subr.bf16.mxu0 0
      %702 = vmatpush1.bf16.msra.mxu0 0
      %703 = vmatprep.subr.bf16.mxu0 0
      %704 = vmatpush1.bf16.msra.mxu0 0
      %705 = vmatprep.subr.bf16.mxu0 0
      %706 = vmatpush1.bf16.msra.mxu0 %v680
      %707 = vmatprep.subr.bf16.mxu0 0
      %708 = vmatpush1.bf16.msra.mxu0 %v679
      %709 = vmatprep.subr.bf16.mxu0 0
      %710 = vmatpush1.bf16.msra.mxu0 %v678
      %711 = vmatprep.subr.bf16.mxu0 0
      %712 = vmatpush1.bf16.msra.mxu0 %v677
      %713 = vmatprep.subr.bf16.mxu0 0
      %714 = vmatpush2.bf16.msra.mxu0 0
      %715 = vmatprep.subr.bf16.mxu0 0
      %716 = vmatpush2.bf16.msra.mxu0 0
      %717 = vmatprep.subr.bf16.mxu0 0
      %718 = vmatpush2.bf16.msra.mxu0 0
      %719 = vmatprep.subr.bf16.mxu0 0
      %720 = vmatpush2.bf16.msra.mxu0 0
      %721 = vmatprep.subr.bf16.mxu0 0
      %722 = vmatpush2.bf16.msra.mxu0 0
      %723 = vmatprep.subr.bf16.mxu0 0
      %724 = vmatpush2.bf16.msra.mxu0 0
      %725 = vmatprep.subr.bf16.mxu0 0
      %726 = vmatpush2.bf16.msra.mxu0 0
      %727 = vmatprep.subr.bf16.mxu0 0
      %728 = vmatpush2.bf16.msra.mxu0 0
      %729 = vmatprep.mubr.bf16.mxu0 0
      %730 = vmatmul.mubr.bf16.gmra.mxu0 %v686
      %v731 = vpop.f32.mrf.mxu0
      %v732 = vadd.f32 0.0, %v731
      %v733 = vpop.f32.mrf.mxu0
      %v734 = vpop.f32.mrf.mxu0
      %v735 = vadd.f32 0.0, %v734
      %v736 = vpop.f32.mrf.mxu0
      %737 = vmatprep.mubr.bf16.mxu0 0
      %738 = vmatmul.mubr.bf16.gmra.mxu0 %v689
      %v739 = vpop.f32.mrf.mxu0
      %v740 = vadd.f32 0.0, %v739
      %v741 = vpop.f32.mrf.mxu0
      %v742 = vpop.f32.mrf.mxu0
      %v743 = vadd.f32 0.0, %v742
      %v744 = vpop.f32.mrf.mxu0
      %745 = vmatprep.mubr.bf16.mxu0 0
      %746 = vmatmul.mubr.bf16.gmra.mxu0 %v692
      %v747 = vpop.f32.mrf.mxu0
      %v748 = vadd.f32 0.0, %v747
      %v749 = vpop.f32.mrf.mxu0
      %v750 = vpop.f32.mrf.mxu0
      %v751 = vadd.f32 0.0, %v750
      %v752 = vpop.f32.mrf.mxu0
      %753 = vmatprep.mubr.bf16.mxu0 0
      %754 = vmatmul.mubr.bf16.gmra.mxu0 %v695
      %v755 = vpop.f32.mrf.mxu0
      %v756 = vadd.f32 0.0, %v755
      %v757 = vpop.f32.mrf.mxu0
      %v758 = vpop.f32.mrf.mxu0
      %v759 = vadd.f32 0.0, %v758
      %v760 = vpop.f32.mrf.mxu0
      %761 = vdwg.mxu0
      %v762 = vadd.f32 %v522, %v732
      %v763 = vadd.f32 %v525, %v735
      %v764 = vadd.f32 %v530, %v740
      %v765 = vadd.f32 %v533, %v743
      %v766 = vadd.f32 %v538, %v748
      %v767 = vadd.f32 %v541, %v751
      %v768 = vadd.f32 %v546, %v756
      %v769 = vadd.f32 %v549, %v759
      %s770 = scalar_lea.vmem %s236, 144
      %v771 = vld [vmem:[%s770] sm:$0xf]
      %v772 = vld [vmem:[%s770 + $0x8] sm:$0xf]
      %v773 = vld [vmem:[%s770 + $0x10] sm:$0xf]
      %v774 = vld [vmem:[%s770 + $0x18] sm:$0xf]
      %v775 = vld [vmem:[%s770 + $0x20] sm:$0xf]
      %v776 = vld [vmem:[%s770 + $0x28] sm:$0xf]
      %v777 = vld [vmem:[%s770 + $0x30] sm:$0xf]
      %v778 = vld [vmem:[%s770 + $0x38] sm:$0xf]
      %v779 = vunpack.c.l.bf16 %v771
      %v780 = vunpack.c.l.bf16 %v772
      %v781 = vunpack.c.l.bf16 %v773
      %v782 = vunpack.c.l.bf16 %v774
      %v783 = vunpack.c.l.bf16 %v775
      %v784 = vunpack.c.l.bf16 %v776
      %v785 = vunpack.c.l.bf16 %v777
      %v786 = vunpack.c.l.bf16 %v778
      %v787 = vmul.f32 %v779, %v274
      %v788 = vmul.f32 %v780, %v274
      %v789 = vmul.f32 %v781, %v274
      %v790 = vmul.f32 %v782, %v274
      %v791 = vmul.f32 %v783, %v274
      %v792 = vmul.f32 %v784, %v274
      %v793 = vmul.f32 %v785, %v274
      %v794 = vmul.f32 %v786, %v274
      %v795 = vmax.f32 %v787, 0.0
      %v796 = vmax.f32 %v788, 0.0
      %v797 = vmax.f32 %v789, 0.0
      %v798 = vmax.f32 %v790, 0.0
      %v799 = vmax.f32 %v791, 0.0
      %v800 = vmax.f32 %v792, 0.0
      %v801 = vmax.f32 %v793, 0.0
      %v802 = vmax.f32 %v794, 0.0
      %v803 = vpack.c.bf16 %v796, %v795
      %v804 = vpack.c.bf16 %v798, %v797
      %v805 = vpack.c.bf16 %v800, %v799
      %v806 = vpack.c.bf16 %v802, %v801
      %v807 = vld [vmem:[%s2 + $0x60] sm:$0xf]
      %v808 = vld [vmem:[%s2 + $0x64] sm:$0xf]
      %v809 = vld [vmem:[%s2 + $0x68] sm:$0xf]
      %v810 = vld [vmem:[%s2 + $0x6c] sm:$0xf]
      %v811 = vld [vmem:[%s2 + $0x70] sm:$0xf]
      %v812 = vld [vmem:[%s2 + $0x74] sm:$0xf]
      %v813 = vld [vmem:[%s2 + $0x78] sm:$0xf]
      %v814 = vld [vmem:[%s2 + $0x7c] sm:$0xf]
      %v823 = vunpack.c.l.b16 %v807
      %v824 = vunpack.c.l.b16 %v808
      %v825 = vunpack.c.l.b16 %v809
      %v826 = vunpack.c.l.b16 %v810
      %v827 = vunpack.c.l.b16 %v811
      %v828 = vunpack.c.l.b16 %v812
      %v829 = vunpack.c.l.b16 %v813
      %v830 = vunpack.c.l.b16 %v814
      %v831 = vpack.c.b16 %v824, %v823
      %v832 = vpack.c.b16 %v826, %v825
      %v833 = vpack.c.b16 %v828, %v827
      %v834 = vpack.c.b16 %v830, %v829
      %v840 = vsel %vm373, %v803, 0
      %v843 = vsel %vm373, %v804, 0
      %v846 = vsel %vm373, %v805, 0
      %v849 = vsel %vm373, %v806, 0
      %851 = vmatprep.subr.bf16.mxu0 0
      %852 = vmatpush1.bf16.msra.mxu0 0
      %853 = vmatprep.subr.bf16.mxu0 0
      %854 = vmatpush1.bf16.msra.mxu0 0
      %855 = vmatprep.subr.bf16.mxu0 0
      %856 = vmatpush1.bf16.msra.mxu0 0
      %857 = vmatprep.subr.bf16.mxu0 0
      %858 = vmatpush1.bf16.msra.mxu0 0
      %859 = vmatprep.subr.bf16.mxu0 0
      %860 = vmatpush1.bf16.msra.mxu0 %v834
      %861 = vmatprep.subr.bf16.mxu0 0
      %862 = vmatpush1.bf16.msra.mxu0 %v833
      %863 = vmatprep.subr.bf16.mxu0 0
      %864 = vmatpush1.bf16.msra.mxu0 %v832
      %865 = vmatprep.subr.bf16.mxu0 0
      %866 = vmatpush1.bf16.msra.mxu0 %v831
      %867 = vmatprep.subr.bf16.mxu0 0
      %868 = vmatpush2.bf16.msra.mxu0 0
      %869 = vmatprep.subr.bf16.mxu0 0
      %870 = vmatpush2.bf16.msra.mxu0 0
      %871 = vmatprep.subr.bf16.mxu0 0
      %872 = vmatpush2.bf16.msra.mxu0 0
      %873 = vmatprep.subr.bf16.mxu0 0
      %874 = vmatpush2.bf16.msra.mxu0 0
      %875 = vmatprep.subr.bf16.mxu0 0
      %876 = vmatpush2.bf16.msra.mxu0 0
      %877 = vmatprep.subr.bf16.mxu0 0
      %878 = vmatpush2.bf16.msra.mxu0 0
      %879 = vmatprep.subr.bf16.mxu0 0
      %880 = vmatpush2.bf16.msra.mxu0 0
      %881 = vmatprep.subr.bf16.mxu0 0
      %882 = vmatpush2.bf16.msra.mxu0 0
      %883 = vmatprep.mubr.bf16.mxu0 0
      %884 = vmatmul.mubr.bf16.gmra.mxu0 %v840
      %v885 = vpop.f32.mrf.mxu0
      %v886 = vadd.f32 0.0, %v885
      %v887 = vpop.f32.mrf.mxu0
      %v888 = vpop.f32.mrf.mxu0
      %v889 = vadd.f32 0.0, %v888
      %v890 = vpop.f32.mrf.mxu0
      %891 = vmatprep.mubr.bf16.mxu0 0
      %892 = vmatmul.mubr.bf16.gmra.mxu0 %v843
      %v893 = vpop.f32.mrf.mxu0
      %v894 = vadd.f32 0.0, %v893
      %v895 = vpop.f32.mrf.mxu0
      %v896 = vpop.f32.mrf.mxu0
      %v897 = vadd.f32 0.0, %v896
      %v898 = vpop.f32.mrf.mxu0
      %899 = vmatprep.mubr.bf16.mxu0 0
      %900 = vmatmul.mubr.bf16.gmra.mxu0 %v846
      %v901 = vpop.f32.mrf.mxu0
      %v902 = vadd.f32 0.0, %v901
      %v903 = vpop.f32.mrf.mxu0
      %v904 = vpop.f32.mrf.mxu0
      %v905 = vadd.f32 0.0, %v904
      %v906 = vpop.f32.mrf.mxu0
      %907 = vmatprep.mubr.bf16.mxu0 0
      %908 = vmatmul.mubr.bf16.gmra.mxu0 %v849
      %v909 = vpop.f32.mrf.mxu0
      %v910 = vadd.f32 0.0, %v909
      %v911 = vpop.f32.mrf.mxu0
      %v912 = vpop.f32.mrf.mxu0
      %v913 = vadd.f32 0.0, %v912
      %v914 = vpop.f32.mrf.mxu0
      %915 = vdwg.mxu0
      %v916 = vadd.f32 %v762, %v886
      %v917 = vadd.f32 %v763, %v889
      %v918 = vadd.f32 %v764, %v894
      %v919 = vadd.f32 %v765, %v897
      %v920 = vadd.f32 %v766, %v902
      %v921 = vadd.f32 %v767, %v905
      %v922 = vadd.f32 %v768, %v910
      %v923 = vadd.f32 %v769, %v913
      %s924 = scalar_lea.vmem %s236, 216
      %v925 = vld [vmem:[%s924] sm:$0xf]
      %v926 = vld [vmem:[%s924 + $0x8] sm:$0xf]
      %v927 = vld [vmem:[%s924 + $0x10] sm:$0xf]
      %v928 = vld [vmem:[%s924 + $0x18] sm:$0xf]
      %v929 = vld [vmem:[%s924 + $0x20] sm:$0xf]
      %v930 = vld [vmem:[%s924 + $0x28] sm:$0xf]
      %v931 = vld [vmem:[%s924 + $0x30] sm:$0xf]
      %v932 = vld [vmem:[%s924 + $0x38] sm:$0xf]
      %v933 = vunpack.c.l.bf16 %v925
      %v934 = vunpack.c.l.bf16 %v926
      %v935 = vunpack.c.l.bf16 %v927
      %v936 = vunpack.c.l.bf16 %v928
      %v937 = vunpack.c.l.bf16 %v929
      %v938 = vunpack.c.l.bf16 %v930
      %v939 = vunpack.c.l.bf16 %v931
      %v940 = vunpack.c.l.bf16 %v932
      %v941 = vmul.f32 %v933, %v274
      %v942 = vmul.f32 %v934, %v274
      %v943 = vmul.f32 %v935, %v274
      %v944 = vmul.f32 %v936, %v274
      %v945 = vmul.f32 %v937, %v274
      %v946 = vmul.f32 %v938, %v274
      %v947 = vmul.f32 %v939, %v274
      %v948 = vmul.f32 %v940, %v274
      %v949 = vmax.f32 %v941, 0.0
      %v950 = vmax.f32 %v942, 0.0
      %v951 = vmax.f32 %v943, 0.0
      %v952 = vmax.f32 %v944, 0.0
      %v953 = vmax.f32 %v945, 0.0
      %v954 = vmax.f32 %v946, 0.0
      %v955 = vmax.f32 %v947, 0.0
      %v956 = vmax.f32 %v948, 0.0
      %v957 = vpack.c.bf16 %v950, %v949
      %v958 = vpack.c.bf16 %v952, %v951
      %v959 = vpack.c.bf16 %v954, %v953
      %v960 = vpack.c.bf16 %v956, %v955
      %v961 = vld [vmem:[%s2 + $0x80] sm:$0xf]
      %v962 = vld [vmem:[%s2 + $0x84] sm:$0xf]
      %v963 = vld [vmem:[%s2 + $0x88] sm:$0xf]
      %v964 = vld [vmem:[%s2 + $0x8c] sm:$0xf]
      %v965 = vld [vmem:[%s2 + $0x90] sm:$0xf]
      %v966 = vld [vmem:[%s2 + $0x94] sm:$0xf]
      %v967 = vld [vmem:[%s2 + $0x98] sm:$0xf]
      %v968 = vld [vmem:[%s2 + $0x9c] sm:$0xf]
      %v977 = vunpack.c.l.b16 %v961
      %v978 = vunpack.c.l.b16 %v962
      %v979 = vunpack.c.l.b16 %v963
      %v980 = vunpack.c.l.b16 %v964
      %v981 = vunpack.c.l.b16 %v965
      %v982 = vunpack.c.l.b16 %v966
      %v983 = vunpack.c.l.b16 %v967
      %v984 = vunpack.c.l.b16 %v968
      %v985 = vpack.c.b16 %v978, %v977
      %v986 = vpack.c.b16 %v980, %v979
      %v987 = vpack.c.b16 %v982, %v981
      %v988 = vpack.c.b16 %v984, %v983
      %v994 = vsel %vm373, %v957, 0
      %v997 = vsel %vm373, %v958, 0
      %v1000 = vsel %vm373, %v959, 0
      %v1003 = vsel %vm373, %v960, 0
      %1005 = vmatprep.subr.bf16.mxu0 0
      %1006 = vmatpush1.bf16.msra.mxu0 0
      %1007 = vmatprep.subr.bf16.mxu0 0
      %1008 = vmatpush1.bf16.msra.mxu0 0
      %1009 = vmatprep.subr.bf16.mxu0 0
      %1010 = vmatpush1.bf16.msra.mxu0 0
      %1011 = vmatprep.subr.bf16.mxu0 0
      %1012 = vmatpush1.bf16.msra.mxu0 0
      %1013 = vmatprep.subr.bf16.mxu0 0
      %1014 = vmatpush1.bf16.msra.mxu0 %v988
      %1015 = vmatprep.subr.bf16.mxu0 0
      %1016 = vmatpush1.bf16.msra.mxu0 %v987
      %1017 = vmatprep.subr.bf16.mxu0 0
      %1018 = vmatpush1.bf16.msra.mxu0 %v986
      %1019 = vmatprep.subr.bf16.mxu0 0
      %1020 = vmatpush1.bf16.msra.mxu0 %v985
      %1021 = vmatprep.subr.bf16.mxu0 0
      %1022 = vmatpush2.bf16.msra.mxu0 0
      %1023 = vmatprep.subr.bf16.mxu0 0
      %1024 = vmatpush2.bf16.msra.mxu0 0
      %1025 = vmatprep.subr.bf16.mxu0 0
      %1026 = vmatpush2.bf16.msra.mxu0 0
      %1027 = vmatprep.subr.bf16.mxu0 0
      %1028 = vmatpush2.bf16.msra.mxu0 0
      %1029 = vmatprep.subr.bf16.mxu0 0
      %1030 = vmatpush2.bf16.msra.mxu0 0
      %1031 = vmatprep.subr.bf16.mxu0 0
      %1032 = vmatpush2.bf16.msra.mxu0 0
      %1033 = vmatprep.subr.bf16.mxu0 0
      %1034 = vmatpush2.bf16.msra.mxu0 0
      %1035 = vmatprep.subr.bf16.mxu0 0
      %1036 = vmatpush2.bf16.msra.mxu0 0
      %1037 = vmatprep.mubr.bf16.mxu0 0
      %1038 = vmatmul.mubr.bf16.gmra.mxu0 %v994
      %v1039 = vpop.f32.mrf.mxu0
      %v1040 = vadd.f32 0.0, %v1039
      %v1041 = vpop.f32.mrf.mxu0
      %v1042 = vpop.f32.mrf.mxu0
      %v1043 = vadd.f32 0.0, %v1042
      %v1044 = vpop.f32.mrf.mxu0
      %1045 = vmatprep.mubr.bf16.mxu0 0
      %1046 = vmatmul.mubr.bf16.gmra.mxu0 %v997
      %v1047 = vpop.f32.mrf.mxu0
      %v1048 = vadd.f32 0.0, %v1047
      %v1049 = vpop.f32.mrf.mxu0
      %v1050 = vpop.f32.mrf.mxu0
      %v1051 = vadd.f32 0.0, %v1050
      %v1052 = vpop.f32.mrf.mxu0
      %1053 = vmatprep.mubr.bf16.mxu0 0
      %1054 = vmatmul.mubr.bf16.gmra.mxu0 %v1000
      %v1055 = vpop.f32.mrf.mxu0
      %v1056 = vadd.f32 0.0, %v1055
      %v1057 = vpop.f32.mrf.mxu0
      %v1058 = vpop.f32.mrf.mxu0
      %v1059 = vadd.f32 0.0, %v1058
      %v1060 = vpop.f32.mrf.mxu0
      %1061 = vmatprep.mubr.bf16.mxu0 0
      %1062 = vmatmul.mubr.bf16.gmra.mxu0 %v1003
      %v1063 = vpop.f32.mrf.mxu0
      %v1064 = vadd.f32 0.0, %v1063
      %v1065 = vpop.f32.mrf.mxu0
      %v1066 = vpop.f32.mrf.mxu0
      %v1067 = vadd.f32 0.0, %v1066
      %v1068 = vpop.f32.mrf.mxu0
      %1069 = vdwg.mxu0
      %v1070 = vadd.f32 %v916, %v1040
      %v1071 = vadd.f32 %v917, %v1043
      %v1072 = vadd.f32 %v918, %v1048
      %v1073 = vadd.f32 %v919, %v1051
      %v1074 = vadd.f32 %v920, %v1056
      %v1075 = vadd.f32 %v921, %v1059
      %v1076 = vadd.f32 %v922, %v1064
      %v1077 = vadd.f32 %v923, %v1067
      %v1078 = vld [vmem:[%s770] sm:$0xf]
      %v1079 = vld [vmem:[%s770 + $0x4] sm:$0x1]
      %v1080 = vld [vmem:[%s770 + $0x8] sm:$0xf]
      %v1081 = vld [vmem:[%s770 + $0xc] sm:$0x1]
      %v1082 = vld [vmem:[%s770 + $0x10] sm:$0xf]
      %v1083 = vld [vmem:[%s770 + $0x14] sm:$0x1]
      %v1084 = vld [vmem:[%s770 + $0x18] sm:$0xf]
      %v1085 = vld [vmem:[%s770 + $0x1c] sm:$0x1]
      %v1086 = vld [vmem:[%s770 + $0x20] sm:$0xf]
      %v1087 = vld [vmem:[%s770 + $0x24] sm:$0x1]
      %v1088 = vld [vmem:[%s770 + $0x28] sm:$0xf]
      %v1089 = vld [vmem:[%s770 + $0x2c] sm:$0x1]
      %v1090 = vld [vmem:[%s770 + $0x30] sm:$0xf]
      %v1091 = vld [vmem:[%s770 + $0x34] sm:$0x1]
      %v1092 = vld [vmem:[%s770 + $0x38] sm:$0xf]
      %v1093 = vld [vmem:[%s770 + $0x3c] sm:$0x1]
      %v1094 = vunpack.c.l.bf16 %v1078
      %v1095 = vunpack.c.l.bf16 %v1079
      %v1096 = vunpack.c.l.bf16 %v1080
      %v1097 = vunpack.c.l.bf16 %v1081
      %v1098 = vunpack.c.l.bf16 %v1082
      %v1099 = vunpack.c.l.bf16 %v1083
      %v1100 = vunpack.c.l.bf16 %v1084
      %v1101 = vunpack.c.l.bf16 %v1085
      %v1102 = vunpack.c.l.bf16 %v1086
      %v1103 = vunpack.c.l.bf16 %v1087
      %v1104 = vunpack.c.l.bf16 %v1088
      %v1105 = vunpack.c.l.bf16 %v1089
      %v1106 = vunpack.c.l.bf16 %v1090
      %v1107 = vunpack.c.l.bf16 %v1091
      %v1108 = vunpack.c.l.bf16 %v1092
      %v1109 = vunpack.c.l.bf16 %v1093
      %v1126 = vrot.slane %v1094, 1
      %v1127 = vrot.slane %v1095, 1
      %v1128 = vsel %vm600, %v1126, %v1127
      %v1129 = vrot.slane %v1096, 1
      %v1130 = vrot.slane %v1097, 1
      %v1131 = vsel %vm600, %v1129, %v1130
      %v1132 = vrot.slane %v1098, 1
      %v1133 = vrot.slane %v1099, 1
      %v1134 = vsel %vm600, %v1132, %v1133
      %v1135 = vrot.slane %v1100, 1
      %v1136 = vrot.slane %v1101, 1
      %v1137 = vsel %vm600, %v1135, %v1136
      %v1138 = vrot.slane %v1102, 1
      %v1139 = vrot.slane %v1103, 1
      %v1140 = vsel %vm600, %v1138, %v1139
      %v1141 = vrot.slane %v1104, 1
      %v1142 = vrot.slane %v1105, 1
      %v1143 = vsel %vm600, %v1141, %v1142
      %v1144 = vrot.slane %v1106, 1
      %v1145 = vrot.slane %v1107, 1
      %v1146 = vsel %vm600, %v1144, %v1145
      %v1147 = vrot.slane %v1108, 1
      %v1148 = vrot.slane %v1109, 1
      %v1149 = vsel %vm600, %v1147, %v1148
      %v1158 = vmul.f32 %v1128, %v274
      %v1159 = vmul.f32 %v1131, %v274
      %v1160 = vmul.f32 %v1134, %v274
      %v1161 = vmul.f32 %v1137, %v274
      %v1162 = vmul.f32 %v1140, %v274
      %v1163 = vmul.f32 %v1143, %v274
      %v1164 = vmul.f32 %v1146, %v274
      %v1165 = vmul.f32 %v1149, %v274
      %v1166 = vmax.f32 %v1158, 0.0
      %v1167 = vmax.f32 %v1159, 0.0
      %v1168 = vmax.f32 %v1160, 0.0
      %v1169 = vmax.f32 %v1161, 0.0
      %v1170 = vmax.f32 %v1162, 0.0
      %v1171 = vmax.f32 %v1163, 0.0
      %v1172 = vmax.f32 %v1164, 0.0
      %v1173 = vmax.f32 %v1165, 0.0
      %v1174 = vpack.c.bf16 %v1167, %v1166
      %v1175 = vpack.c.bf16 %v1169, %v1168
      %v1176 = vpack.c.bf16 %v1171, %v1170
      %v1177 = vpack.c.bf16 %v1173, %v1172
      %v1178 = vld [vmem:[%s2 + $0xa0] sm:$0xf]
      %v1179 = vld [vmem:[%s2 + $0xa4] sm:$0xf]
      %v1180 = vld [vmem:[%s2 + $0xa8] sm:$0xf]
      %v1181 = vld [vmem:[%s2 + $0xac] sm:$0xf]
      %v1182 = vld [vmem:[%s2 + $0xb0] sm:$0xf]
      %v1183 = vld [vmem:[%s2 + $0xb4] sm:$0xf]
      %v1184 = vld [vmem:[%s2 + $0xb8] sm:$0xf]
      %v1185 = vld [vmem:[%s2 + $0xbc] sm:$0xf]
      %v1194 = vunpack.c.l.b16 %v1178
      %v1195 = vunpack.c.l.b16 %v1179
      %v1196 = vunpack.c.l.b16 %v1180
      %v1197 = vunpack.c.l.b16 %v1181
      %v1198 = vunpack.c.l.b16 %v1182
      %v1199 = vunpack.c.l.b16 %v1183
      %v1200 = vunpack.c.l.b16 %v1184
      %v1201 = vunpack.c.l.b16 %v1185
      %v1202 = vpack.c.b16 %v1195, %v1194
      %v1203 = vpack.c.b16 %v1197, %v1196
      %v1204 = vpack.c.b16 %v1199, %v1198
      %v1205 = vpack.c.b16 %v1201, %v1200
      %v1211 = vsel %vm373, %v1174, 0
      %v1214 = vsel %vm373, %v1175, 0
      %v1217 = vsel %vm373, %v1176, 0
      %v1220 = vsel %vm373, %v1177, 0
      %1222 = vmatprep.subr.bf16.mxu0 0
      %1223 = vmatpush1.bf16.msra.mxu0 0
      %1224 = vmatprep.subr.bf16.mxu0 0
      %1225 = vmatpush1.bf16.msra.mxu0 0
      %1226 = vmatprep.subr.bf16.mxu0 0
      %1227 = vmatpush1.bf16.msra.mxu0 0
      %1228 = vmatprep.subr.bf16.mxu0 0
      %1229 = vmatpush1.bf16.msra.mxu0 0
      %1230 = vmatprep.subr.bf16.mxu0 0
      %1231 = vmatpush1.bf16.msra.mxu0 %v1205
      %1232 = vmatprep.subr.bf16.mxu0 0
      %1233 = vmatpush1.bf16.msra.mxu0 %v1204
      %1234 = vmatprep.subr.bf16.mxu0 0
      %1235 = vmatpush1.bf16.msra.mxu0 %v1203
      %1236 = vmatprep.subr.bf16.mxu0 0
      %1237 = vmatpush1.bf16.msra.mxu0 %v1202
      %1238 = vmatprep.subr.bf16.mxu0 0
      %1239 = vmatpush2.bf16.msra.mxu0 0
      %1240 = vmatprep.subr.bf16.mxu0 0
      %1241 = vmatpush2.bf16.msra.mxu0 0
      %1242 = vmatprep.subr.bf16.mxu0 0
      %1243 = vmatpush2.bf16.msra.mxu0 0
      %1244 = vmatprep.subr.bf16.mxu0 0
      %1245 = vmatpush2.bf16.msra.mxu0 0
      %1246 = vmatprep.subr.bf16.mxu0 0
      %1247 = vmatpush2.bf16.msra.mxu0 0
      %1248 = vmatprep.subr.bf16.mxu0 0
      %1249 = vmatpush2.bf16.msra.mxu0 0
      %1250 = vmatprep.subr.bf16.mxu0 0
      %1251 = vmatpush2.bf16.msra.mxu0 0
      %1252 = vmatprep.subr.bf16.mxu0 0
      %1253 = vmatpush2.bf16.msra.mxu0 0
      %1254 = vmatprep.mubr.bf16.mxu0 0
      %1255 = vmatmul.mubr.bf16.gmra.mxu0 %v1211
      %v1256 = vpop.f32.mrf.mxu0
      %v1257 = vadd.f32 0.0, %v1256
      %v1258 = vpop.f32.mrf.mxu0
      %v1259 = vpop.f32.mrf.mxu0
      %v1260 = vadd.f32 0.0, %v1259
      %v1261 = vpop.f32.mrf.mxu0
      %1262 = vmatprep.mubr.bf16.mxu0 0
      %1263 = vmatmul.mubr.bf16.gmra.mxu0 %v1214
      %v1264 = vpop.f32.mrf.mxu0
      %v1265 = vadd.f32 0.0, %v1264
      %v1266 = vpop.f32.mrf.mxu0
      %v1267 = vpop.f32.mrf.mxu0
      %v1268 = vadd.f32 0.0, %v1267
      %v1269 = vpop.f32.mrf.mxu0
      %1270 = vmatprep.mubr.bf16.mxu0 0
      %1271 = vmatmul.mubr.bf16.gmra.mxu0 %v1217
      %v1272 = vpop.f32.mrf.mxu0
      %v1273 = vadd.f32 0.0, %v1272
      %v1274 = vpop.f32.mrf.mxu0
      %v1275 = vpop.f32.mrf.mxu0
      %v1276 = vadd.f32 0.0, %v1275
      %v1277 = vpop.f32.mrf.mxu0
      %1278 = vmatprep.mubr.bf16.mxu0 0
      %1279 = vmatmul.mubr.bf16.gmra.mxu0 %v1220
      %v1280 = vpop.f32.mrf.mxu0
      %v1281 = vadd.f32 0.0, %v1280
      %v1282 = vpop.f32.mrf.mxu0
      %v1283 = vpop.f32.mrf.mxu0
      %v1284 = vadd.f32 0.0, %v1283
      %v1285 = vpop.f32.mrf.mxu0
      %1286 = vdwg.mxu0
      %v1287 = vadd.f32 %v1070, %v1257
      %v1288 = vadd.f32 %v1071, %v1260
      %v1289 = vadd.f32 %v1072, %v1265
      %v1290 = vadd.f32 %v1073, %v1268
      %v1291 = vadd.f32 %v1074, %v1273
      %v1292 = vadd.f32 %v1075, %v1276
      %v1293 = vadd.f32 %v1076, %v1281
      %v1294 = vadd.f32 %v1077, %v1284
      %s1295 = scalar_lea.vmem %s236, 8
      %v1296 = vld [vmem:[%s1295] sm:$0xf]
      %v1297 = vld [vmem:[%s1295 + $0x8] sm:$0xf]
      %v1298 = vld [vmem:[%s1295 + $0x10] sm:$0xf]
      %v1299 = vld [vmem:[%s1295 + $0x18] sm:$0xf]
      %v1300 = vld [vmem:[%s1295 + $0x20] sm:$0xf]
      %v1301 = vld [vmem:[%s1295 + $0x28] sm:$0xf]
      %v1302 = vld [vmem:[%s1295 + $0x30] sm:$0xf]
      %v1303 = vld [vmem:[%s1295 + $0x38] sm:$0xf]
      %v1304 = vunpack.c.l.bf16 %v1296
      %v1305 = vunpack.c.l.bf16 %v1297
      %v1306 = vunpack.c.l.bf16 %v1298
      %v1307 = vunpack.c.l.bf16 %v1299
      %v1308 = vunpack.c.l.bf16 %v1300
      %v1309 = vunpack.c.l.bf16 %v1301
      %v1310 = vunpack.c.l.bf16 %v1302
      %v1311 = vunpack.c.l.bf16 %v1303
      %v1312 = vmul.f32 %v1304, %v274
      %v1313 = vmul.f32 %v1305, %v274
      %v1314 = vmul.f32 %v1306, %v274
      %v1315 = vmul.f32 %v1307, %v274
      %v1316 = vmul.f32 %v1308, %v274
      %v1317 = vmul.f32 %v1309, %v274
      %v1318 = vmul.f32 %v1310, %v274
      %v1319 = vmul.f32 %v1311, %v274
      %v1320 = vmax.f32 %v1312, 0.0
      %v1321 = vmax.f32 %v1313, 0.0
      %v1322 = vmax.f32 %v1314, 0.0
      %v1323 = vmax.f32 %v1315, 0.0
      %v1324 = vmax.f32 %v1316, 0.0
      %v1325 = vmax.f32 %v1317, 0.0
      %v1326 = vmax.f32 %v1318, 0.0
      %v1327 = vmax.f32 %v1319, 0.0
      %v1328 = vpack.c.bf16 %v1321, %v1320
      %v1329 = vpack.c.bf16 %v1323, %v1322
      %v1330 = vpack.c.bf16 %v1325, %v1324
      %v1331 = vpack.c.bf16 %v1327, %v1326
      %v1332 = vld [vmem:[%s2 + $0xc0] sm:$0xf]
      %v1333 = vld [vmem:[%s2 + $0xc4] sm:$0xf]
      %v1334 = vld [vmem:[%s2 + $0xc8] sm:$0xf]
      %v1335 = vld [vmem:[%s2 + $0xcc] sm:$0xf]
      %v1336 = vld [vmem:[%s2 + $0xd0] sm:$0xf]
      %v1337 = vld [vmem:[%s2 + $0xd4] sm:$0xf]
      %v1338 = vld [vmem:[%s2 + $0xd8] sm:$0xf]
      %v1339 = vld [vmem:[%s2 + $0xdc] sm:$0xf]
      %v1348 = vunpack.c.l.b16 %v1332
      %v1349 = vunpack.c.l.b16 %v1333
      %v1350 = vunpack.c.l.b16 %v1334
      %v1351 = vunpack.c.l.b16 %v1335
      %v1352 = vunpack.c.l.b16 %v1336
      %v1353 = vunpack.c.l.b16 %v1337
      %v1354 = vunpack.c.l.b16 %v1338
      %v1355 = vunpack.c.l.b16 %v1339
      %v1356 = vpack.c.b16 %v1349, %v1348
      %v1357 = vpack.c.b16 %v1351, %v1350
      %v1358 = vpack.c.b16 %v1353, %v1352
      %v1359 = vpack.c.b16 %v1355, %v1354
      %v1365 = vsel %vm373, %v1328, 0
      %v1368 = vsel %vm373, %v1329, 0
      %v1371 = vsel %vm373, %v1330, 0
      %v1374 = vsel %vm373, %v1331, 0
      %1376 = vmatprep.subr.bf16.mxu0 0
      %1377 = vmatpush1.bf16.msra.mxu0 0
      %1378 = vmatprep.subr.bf16.mxu0 0
      %1379 = vmatpush1.bf16.msra.mxu0 0
      %1380 = vmatprep.subr.bf16.mxu0 0
      %1381 = vmatpush1.bf16.msra.mxu0 0
      %1382 = vmatprep.subr.bf16.mxu0 0
      %1383 = vmatpush1.bf16.msra.mxu0 0
      %1384 = vmatprep.subr.bf16.mxu0 0
      %1385 = vmatpush1.bf16.msra.mxu0 %v1359
      %1386 = vmatprep.subr.bf16.mxu0 0
      %1387 = vmatpush1.bf16.msra.mxu0 %v1358
      %1388 = vmatprep.subr.bf16.mxu0 0
      %1389 = vmatpush1.bf16.msra.mxu0 %v1357
      %1390 = vmatprep.subr.bf16.mxu0 0
      %1391 = vmatpush1.bf16.msra.mxu0 %v1356
      %1392 = vmatprep.subr.bf16.mxu0 0
      %1393 = vmatpush2.bf16.msra.mxu0 0
      %1394 = vmatprep.subr.bf16.mxu0 0
      %1395 = vmatpush2.bf16.msra.mxu0 0
      %1396 = vmatprep.subr.bf16.mxu0 0
      %1397 = vmatpush2.bf16.msra.mxu0 0
      %1398 = vmatprep.subr.bf16.mxu0 0
      %1399 = vmatpush2.bf16.msra.mxu0 0
      %1400 = vmatprep.subr.bf16.mxu0 0
      %1401 = vmatpush2.bf16.msra.mxu0 0
      %1402 = vmatprep.subr.bf16.mxu0 0
      %1403 = vmatpush2.bf16.msra.mxu0 0
      %1404 = vmatprep.subr.bf16.mxu0 0
      %1405 = vmatpush2.bf16.msra.mxu0 0
      %1406 = vmatprep.subr.bf16.mxu0 0
      %1407 = vmatpush2.bf16.msra.mxu0 0
      %1408 = vmatprep.mubr.bf16.mxu0 0
      %1409 = vmatmul.mubr.bf16.gmra.mxu0 %v1365
      %v1410 = vpop.f32.mrf.mxu0
      %v1411 = vadd.f32 0.0, %v1410
      %v1412 = vpop.f32.mrf.mxu0
      %v1413 = vpop.f32.mrf.mxu0
      %v1414 = vadd.f32 0.0, %v1413
      %v1415 = vpop.f32.mrf.mxu0
      %1416 = vmatprep.mubr.bf16.mxu0 0
      %1417 = vmatmul.mubr.bf16.gmra.mxu0 %v1368
      %v1418 = vpop.f32.mrf.mxu0
      %v1419 = vadd.f32 0.0, %v1418
      %v1420 = vpop.f32.mrf.mxu0
      %v1421 = vpop.f32.mrf.mxu0
      %v1422 = vadd.f32 0.0, %v1421
      %v1423 = vpop.f32.mrf.mxu0
      %1424 = vmatprep.mubr.bf16.mxu0 0
      %1425 = vmatmul.mubr.bf16.gmra.mxu0 %v1371
      %v1426 = vpop.f32.mrf.mxu0
      %v1427 = vadd.f32 0.0, %v1426
      %v1428 = vpop.f32.mrf.mxu0
      %v1429 = vpop.f32.mrf.mxu0
      %v1430 = vadd.f32 0.0, %v1429
      %v1431 = vpop.f32.mrf.mxu0
      %1432 = vmatprep.mubr.bf16.mxu0 0
      %1433 = vmatmul.mubr.bf16.gmra.mxu0 %v1374
      %v1434 = vpop.f32.mrf.mxu0
      %v1435 = vadd.f32 0.0, %v1434
      %v1436 = vpop.f32.mrf.mxu0
      %v1437 = vpop.f32.mrf.mxu0
      %v1438 = vadd.f32 0.0, %v1437
      %v1439 = vpop.f32.mrf.mxu0
      %1440 = vdwg.mxu0
      %v1441 = vadd.f32 %v1287, %v1411
      %v1442 = vadd.f32 %v1288, %v1414
      %v1443 = vadd.f32 %v1289, %v1419
      %v1444 = vadd.f32 %v1290, %v1422
      %v1445 = vadd.f32 %v1291, %v1427
      %v1446 = vadd.f32 %v1292, %v1430
      %v1447 = vadd.f32 %v1293, %v1435
      %v1448 = vadd.f32 %v1294, %v1438
      %s1449 = scalar_lea.vmem %s236, 80
      %v1450 = vld [vmem:[%s1449] sm:$0xf]
      %v1451 = vld [vmem:[%s1449 + $0x8] sm:$0xf]
      %v1452 = vld [vmem:[%s1449 + $0x10] sm:$0xf]
      %v1453 = vld [vmem:[%s1449 + $0x18] sm:$0xf]
      %v1454 = vld [vmem:[%s1449 + $0x20] sm:$0xf]
      %v1455 = vld [vmem:[%s1449 + $0x28] sm:$0xf]
      %v1456 = vld [vmem:[%s1449 + $0x30] sm:$0xf]
      %v1457 = vld [vmem:[%s1449 + $0x38] sm:$0xf]
      %v1458 = vunpack.c.l.bf16 %v1450
      %v1459 = vunpack.c.l.bf16 %v1451
      %v1460 = vunpack.c.l.bf16 %v1452
      %v1461 = vunpack.c.l.bf16 %v1453
      %v1462 = vunpack.c.l.bf16 %v1454
      %v1463 = vunpack.c.l.bf16 %v1455
      %v1464 = vunpack.c.l.bf16 %v1456
      %v1465 = vunpack.c.l.bf16 %v1457
      %v1466 = vmul.f32 %v1458, %v274
      %v1467 = vmul.f32 %v1459, %v274
      %v1468 = vmul.f32 %v1460, %v274
      %v1469 = vmul.f32 %v1461, %v274
      %v1470 = vmul.f32 %v1462, %v274
      %v1471 = vmul.f32 %v1463, %v274
      %v1472 = vmul.f32 %v1464, %v274
      %v1473 = vmul.f32 %v1465, %v274
      %v1474 = vmax.f32 %v1466, 0.0
      %v1475 = vmax.f32 %v1467, 0.0
      %v1476 = vmax.f32 %v1468, 0.0
      %v1477 = vmax.f32 %v1469, 0.0
      %v1478 = vmax.f32 %v1470, 0.0
      %v1479 = vmax.f32 %v1471, 0.0
      %v1480 = vmax.f32 %v1472, 0.0
      %v1481 = vmax.f32 %v1473, 0.0
      %v1482 = vpack.c.bf16 %v1475, %v1474
      %v1483 = vpack.c.bf16 %v1477, %v1476
      %v1484 = vpack.c.bf16 %v1479, %v1478
      %v1485 = vpack.c.bf16 %v1481, %v1480
      %v1486 = vld [vmem:[%s2 + $0xe0] sm:$0xf]
      %v1487 = vld [vmem:[%s2 + $0xe4] sm:$0xf]
      %v1488 = vld [vmem:[%s2 + $0xe8] sm:$0xf]
      %v1489 = vld [vmem:[%s2 + $0xec] sm:$0xf]
      %v1490 = vld [vmem:[%s2 + $0xf0] sm:$0xf]
      %v1491 = vld [vmem:[%s2 + $0xf4] sm:$0xf]
      %v1492 = vld [vmem:[%s2 + $0xf8] sm:$0xf]
      %v1493 = vld [vmem:[%s2 + $0xfc] sm:$0xf]
      %v1502 = vunpack.c.l.b16 %v1486
      %v1503 = vunpack.c.l.b16 %v1487
      %v1504 = vunpack.c.l.b16 %v1488
      %v1505 = vunpack.c.l.b16 %v1489
      %v1506 = vunpack.c.l.b16 %v1490
      %v1507 = vunpack.c.l.b16 %v1491
      %v1508 = vunpack.c.l.b16 %v1492
      %v1509 = vunpack.c.l.b16 %v1493
      %v1510 = vpack.c.b16 %v1503, %v1502
      %v1511 = vpack.c.b16 %v1505, %v1504
      %v1512 = vpack.c.b16 %v1507, %v1506
      %v1513 = vpack.c.b16 %v1509, %v1508
      %v1519 = vsel %vm373, %v1482, 0
      %v1522 = vsel %vm373, %v1483, 0
      %v1525 = vsel %vm373, %v1484, 0
      %v1528 = vsel %vm373, %v1485, 0
      %1530 = vmatprep.subr.bf16.mxu0 0
      %1531 = vmatpush1.bf16.msra.mxu0 0
      %1532 = vmatprep.subr.bf16.mxu0 0
      %1533 = vmatpush1.bf16.msra.mxu0 0
      %1534 = vmatprep.subr.bf16.mxu0 0
      %1535 = vmatpush1.bf16.msra.mxu0 0
      %1536 = vmatprep.subr.bf16.mxu0 0
      %1537 = vmatpush1.bf16.msra.mxu0 0
      %1538 = vmatprep.subr.bf16.mxu0 0
      %1539 = vmatpush1.bf16.msra.mxu0 %v1513
      %1540 = vmatprep.subr.bf16.mxu0 0
      %1541 = vmatpush1.bf16.msra.mxu0 %v1512
      %1542 = vmatprep.subr.bf16.mxu0 0
      %1543 = vmatpush1.bf16.msra.mxu0 %v1511
      %1544 = vmatprep.subr.bf16.mxu0 0
      %1545 = vmatpush1.bf16.msra.mxu0 %v1510
      %1546 = vmatprep.subr.bf16.mxu0 0
      %1547 = vmatpush2.bf16.msra.mxu0 0
      %1548 = vmatprep.subr.bf16.mxu0 0
      %1549 = vmatpush2.bf16.msra.mxu0 0
      %1550 = vmatprep.subr.bf16.mxu0 0
      %1551 = vmatpush2.bf16.msra.mxu0 0
      %1552 = vmatprep.subr.bf16.mxu0 0
      %1553 = vmatpush2.bf16.msra.mxu0 0
      %1554 = vmatprep.subr.bf16.mxu0 0
      %1555 = vmatpush2.bf16.msra.mxu0 0
      %1556 = vmatprep.subr.bf16.mxu0 0
      %1557 = vmatpush2.bf16.msra.mxu0 0
      %1558 = vmatprep.subr.bf16.mxu0 0
      %1559 = vmatpush2.bf16.msra.mxu0 0
      %1560 = vmatprep.subr.bf16.mxu0 0
      %1561 = vmatpush2.bf16.msra.mxu0 0
      %1562 = vmatprep.mubr.bf16.mxu0 0
      %1563 = vmatmul.mubr.bf16.gmra.mxu0 %v1519
      %v1564 = vpop.f32.mrf.mxu0
      %v1565 = vadd.f32 0.0, %v1564
      %v1566 = vpop.f32.mrf.mxu0
      %v1567 = vpop.f32.mrf.mxu0
      %v1568 = vadd.f32 0.0, %v1567
      %v1569 = vpop.f32.mrf.mxu0
      %1570 = vmatprep.mubr.bf16.mxu0 0
      %1571 = vmatmul.mubr.bf16.gmra.mxu0 %v1522
      %v1572 = vpop.f32.mrf.mxu0
      %v1573 = vadd.f32 0.0, %v1572
      %v1574 = vpop.f32.mrf.mxu0
      %v1575 = vpop.f32.mrf.mxu0
      %v1576 = vadd.f32 0.0, %v1575
      %v1577 = vpop.f32.mrf.mxu0
      %1578 = vmatprep.mubr.bf16.mxu0 0
      %1579 = vmatmul.mubr.bf16.gmra.mxu0 %v1525
      %v1580 = vpop.f32.mrf.mxu0
      %v1581 = vadd.f32 0.0, %v1580
      %v1582 = vpop.f32.mrf.mxu0
      %v1583 = vpop.f32.mrf.mxu0
      %v1584 = vadd.f32 0.0, %v1583
      %v1585 = vpop.f32.mrf.mxu0
      %1586 = vmatprep.mubr.bf16.mxu0 0
      %1587 = vmatmul.mubr.bf16.gmra.mxu0 %v1528
      %v1588 = vpop.f32.mrf.mxu0
      %v1589 = vadd.f32 0.0, %v1588
      %v1590 = vpop.f32.mrf.mxu0
      %v1591 = vpop.f32.mrf.mxu0
      %v1592 = vadd.f32 0.0, %v1591
      %v1593 = vpop.f32.mrf.mxu0
      %1594 = vdwg.mxu0
      %v1595 = vadd.f32 %v1441, %v1565
      %v1596 = vadd.f32 %v1442, %v1568
      %v1597 = vadd.f32 %v1443, %v1573
      %v1598 = vadd.f32 %v1444, %v1576
      %v1599 = vadd.f32 %v1445, %v1581
      %v1600 = vadd.f32 %v1446, %v1584
      %v1601 = vadd.f32 %v1447, %v1589
      %v1602 = vadd.f32 %v1448, %v1592
      %v1603 = vld [vmem:[%s1295] sm:$0xf]
      %v1604 = vld [vmem:[%s1295 + $0x4] sm:$0x1]
      %v1605 = vld [vmem:[%s1295 + $0x8] sm:$0xf]
      %v1606 = vld [vmem:[%s1295 + $0xc] sm:$0x1]
      %v1607 = vld [vmem:[%s1295 + $0x10] sm:$0xf]
      %v1608 = vld [vmem:[%s1295 + $0x14] sm:$0x1]
      %v1609 = vld [vmem:[%s1295 + $0x18] sm:$0xf]
      %v1610 = vld [vmem:[%s1295 + $0x1c] sm:$0x1]
      %v1611 = vld [vmem:[%s1295 + $0x20] sm:$0xf]
      %v1612 = vld [vmem:[%s1295 + $0x24] sm:$0x1]
      %v1613 = vld [vmem:[%s1295 + $0x28] sm:$0xf]
      %v1614 = vld [vmem:[%s1295 + $0x2c] sm:$0x1]
      %v1615 = vld [vmem:[%s1295 + $0x30] sm:$0xf]
      %v1616 = vld [vmem:[%s1295 + $0x34] sm:$0x1]
      %v1617 = vld [vmem:[%s1295 + $0x38] sm:$0xf]
      %v1618 = vld [vmem:[%s1295 + $0x3c] sm:$0x1]
      %v1619 = vunpack.c.l.bf16 %v1603
      %v1620 = vunpack.c.l.bf16 %v1604
      %v1621 = vunpack.c.l.bf16 %v1605
      %v1622 = vunpack.c.l.bf16 %v1606
      %v1623 = vunpack.c.l.bf16 %v1607
      %v1624 = vunpack.c.l.bf16 %v1608
      %v1625 = vunpack.c.l.bf16 %v1609
      %v1626 = vunpack.c.l.bf16 %v1610
      %v1627 = vunpack.c.l.bf16 %v1611
      %v1628 = vunpack.c.l.bf16 %v1612
      %v1629 = vunpack.c.l.bf16 %v1613
      %v1630 = vunpack.c.l.bf16 %v1614
      %v1631 = vunpack.c.l.bf16 %v1615
      %v1632 = vunpack.c.l.bf16 %v1616
      %v1633 = vunpack.c.l.bf16 %v1617
      %v1634 = vunpack.c.l.bf16 %v1618
      %v1651 = vrot.slane %v1619, 1
      %v1652 = vrot.slane %v1620, 1
      %v1653 = vsel %vm600, %v1651, %v1652
      %v1654 = vrot.slane %v1621, 1
      %v1655 = vrot.slane %v1622, 1
      %v1656 = vsel %vm600, %v1654, %v1655
      %v1657 = vrot.slane %v1623, 1
      %v1658 = vrot.slane %v1624, 1
      %v1659 = vsel %vm600, %v1657, %v1658
      %v1660 = vrot.slane %v1625, 1
      %v1661 = vrot.slane %v1626, 1
      %v1662 = vsel %vm600, %v1660, %v1661
      %v1663 = vrot.slane %v1627, 1
      %v1664 = vrot.slane %v1628, 1
      %v1665 = vsel %vm600, %v1663, %v1664
      %v1666 = vrot.slane %v1629, 1
      %v1667 = vrot.slane %v1630, 1
      %v1668 = vsel %vm600, %v1666, %v1667
      %v1669 = vrot.slane %v1631, 1
      %v1670 = vrot.slane %v1632, 1
      %v1671 = vsel %vm600, %v1669, %v1670
      %v1672 = vrot.slane %v1633, 1
      %v1673 = vrot.slane %v1634, 1
      %v1674 = vsel %vm600, %v1672, %v1673
      %v1683 = vmul.f32 %v1653, %v274
      %v1684 = vmul.f32 %v1656, %v274
      %v1685 = vmul.f32 %v1659, %v274
      %v1686 = vmul.f32 %v1662, %v274
      %v1687 = vmul.f32 %v1665, %v274
      %v1688 = vmul.f32 %v1668, %v274
      %v1689 = vmul.f32 %v1671, %v274
      %v1690 = vmul.f32 %v1674, %v274
      %v1691 = vmax.f32 %v1683, 0.0
      %v1692 = vmax.f32 %v1684, 0.0
      %v1693 = vmax.f32 %v1685, 0.0
      %v1694 = vmax.f32 %v1686, 0.0
      %v1695 = vmax.f32 %v1687, 0.0
      %v1696 = vmax.f32 %v1688, 0.0
      %v1697 = vmax.f32 %v1689, 0.0
      %v1698 = vmax.f32 %v1690, 0.0
      %v1699 = vpack.c.bf16 %v1692, %v1691
      %v1700 = vpack.c.bf16 %v1694, %v1693
      %v1701 = vpack.c.bf16 %v1696, %v1695
      %v1702 = vpack.c.bf16 %v1698, %v1697
      %v1703 = vld [vmem:[%s2 + $0x100] sm:$0xf]
      %v1704 = vld [vmem:[%s2 + $0x104] sm:$0xf]
      %v1705 = vld [vmem:[%s2 + $0x108] sm:$0xf]
      %v1706 = vld [vmem:[%s2 + $0x10c] sm:$0xf]
      %v1707 = vld [vmem:[%s2 + $0x110] sm:$0xf]
      %v1708 = vld [vmem:[%s2 + $0x114] sm:$0xf]
      %v1709 = vld [vmem:[%s2 + $0x118] sm:$0xf]
      %v1710 = vld [vmem:[%s2 + $0x11c] sm:$0xf]
      %v1719 = vunpack.c.l.b16 %v1703
      %v1720 = vunpack.c.l.b16 %v1704
      %v1721 = vunpack.c.l.b16 %v1705
      %v1722 = vunpack.c.l.b16 %v1706
      %v1723 = vunpack.c.l.b16 %v1707
      %v1724 = vunpack.c.l.b16 %v1708
      %v1725 = vunpack.c.l.b16 %v1709
      %v1726 = vunpack.c.l.b16 %v1710
      %v1727 = vpack.c.b16 %v1720, %v1719
      %v1728 = vpack.c.b16 %v1722, %v1721
      %v1729 = vpack.c.b16 %v1724, %v1723
      %v1730 = vpack.c.b16 %v1726, %v1725
      %v1736 = vsel %vm373, %v1699, 0
      %v1739 = vsel %vm373, %v1700, 0
      %v1742 = vsel %vm373, %v1701, 0
      %v1745 = vsel %vm373, %v1702, 0
      %1747 = vmatprep.subr.bf16.mxu0 0
      %1748 = vmatpush1.bf16.msra.mxu0 0
      %1749 = vmatprep.subr.bf16.mxu0 0
      %1750 = vmatpush1.bf16.msra.mxu0 0
      %1751 = vmatprep.subr.bf16.mxu0 0
      %1752 = vmatpush1.bf16.msra.mxu0 0
      %1753 = vmatprep.subr.bf16.mxu0 0
      %1754 = vmatpush1.bf16.msra.mxu0 0
      %1755 = vmatprep.subr.bf16.mxu0 0
      %1756 = vmatpush1.bf16.msra.mxu0 %v1730
      %1757 = vmatprep.subr.bf16.mxu0 0
      %1758 = vmatpush1.bf16.msra.mxu0 %v1729
      %1759 = vmatprep.subr.bf16.mxu0 0
      %1760 = vmatpush1.bf16.msra.mxu0 %v1728
      %1761 = vmatprep.subr.bf16.mxu0 0
      %1762 = vmatpush1.bf16.msra.mxu0 %v1727
      %1763 = vmatprep.subr.bf16.mxu0 0
      %1764 = vmatpush2.bf16.msra.mxu0 0
      %1765 = vmatprep.subr.bf16.mxu0 0
      %1766 = vmatpush2.bf16.msra.mxu0 0
      %1767 = vmatprep.subr.bf16.mxu0 0
      %1768 = vmatpush2.bf16.msra.mxu0 0
      %1769 = vmatprep.subr.bf16.mxu0 0
      %1770 = vmatpush2.bf16.msra.mxu0 0
      %1771 = vmatprep.subr.bf16.mxu0 0
      %1772 = vmatpush2.bf16.msra.mxu0 0
      %1773 = vmatprep.subr.bf16.mxu0 0
      %1774 = vmatpush2.bf16.msra.mxu0 0
      %1775 = vmatprep.subr.bf16.mxu0 0
      %1776 = vmatpush2.bf16.msra.mxu0 0
      %1777 = vmatprep.subr.bf16.mxu0 0
      %1778 = vmatpush2.bf16.msra.mxu0 0
      %1779 = vmatprep.mubr.bf16.mxu0 0
      %1780 = vmatmul.mubr.bf16.gmra.mxu0 %v1736
      %v1781 = vpop.f32.mrf.mxu0
      %v1782 = vadd.f32 0.0, %v1781
      %v1783 = vpop.f32.mrf.mxu0
      %v1784 = vpop.f32.mrf.mxu0
      %v1785 = vadd.f32 0.0, %v1784
      %v1786 = vpop.f32.mrf.mxu0
      %1787 = vmatprep.mubr.bf16.mxu0 0
      %1788 = vmatmul.mubr.bf16.gmra.mxu0 %v1739
      %v1789 = vpop.f32.mrf.mxu0
      %v1790 = vadd.f32 0.0, %v1789
      %v1791 = vpop.f32.mrf.mxu0
      %v1792 = vpop.f32.mrf.mxu0
      %v1793 = vadd.f32 0.0, %v1792
      %v1794 = vpop.f32.mrf.mxu0
      %1795 = vmatprep.mubr.bf16.mxu0 0
      %1796 = vmatmul.mubr.bf16.gmra.mxu0 %v1742
      %v1797 = vpop.f32.mrf.mxu0
      %v1798 = vadd.f32 0.0, %v1797
      %v1799 = vpop.f32.mrf.mxu0
      %v1800 = vpop.f32.mrf.mxu0
      %v1801 = vadd.f32 0.0, %v1800
      %v1802 = vpop.f32.mrf.mxu0
      %1803 = vmatprep.mubr.bf16.mxu0 0
      %1804 = vmatmul.mubr.bf16.gmra.mxu0 %v1745
      %v1805 = vpop.f32.mrf.mxu0
      %v1806 = vadd.f32 0.0, %v1805
      %v1807 = vpop.f32.mrf.mxu0
      %v1808 = vpop.f32.mrf.mxu0
      %v1809 = vadd.f32 0.0, %v1808
      %v1810 = vpop.f32.mrf.mxu0
      %1811 = vdwg.mxu0
      %v1812 = vadd.f32 %v1595, %v1782
      %v1813 = vadd.f32 %v1596, %v1785
      %v1814 = vadd.f32 %v1597, %v1790
      %v1815 = vadd.f32 %v1598, %v1793
      %v1816 = vadd.f32 %v1599, %v1798
      %v1817 = vadd.f32 %v1600, %v1801
      %v1818 = vadd.f32 %v1601, %v1806
      %v1819 = vadd.f32 %v1602, %v1809
      %v1820 = vpack.c.bf16 %v1813, %v1812
      %v1821 = vpack.c.bf16 %v1815, %v1814
      %v1822 = vpack.c.bf16 %v1817, %v1816
      %v1823 = vpack.c.bf16 %v1819, %v1818
      %v1828 = vunpack.c.l.b16 %v1820
      %v1829 = vunpack.c.h.b16 %v1820
      %v1830 = vunpack.c.l.b16 %v1821
      %v1831 = vunpack.c.h.b16 %v1821
      %v1832 = vunpack.c.l.b16 %v1822
      %v1833 = vunpack.c.h.b16 %v1822
      %v1834 = vunpack.c.l.b16 %v1823
      %v1835 = vunpack.c.h.b16 %v1823
      %v1836 = vpack.c.b16 %v1828, %v1828
      %v1837 = vpack.c.b16 %v1829, %v1829
      %v1838 = vpack.c.b16 %v1830, %v1830
      %v1839 = vpack.c.b16 %v1831, %v1831
      %v1840 = vpack.c.b16 %v1832, %v1832
      %v1841 = vpack.c.b16 %v1833, %v1833
      %v1842 = vpack.c.b16 %v1834, %v1834
      %v1843 = vpack.c.b16 %v1835, %v1835
      %vm1852 = vcmask 519168
      %1853 = vst.msk [vmem:[%s242] sm:$0xf] %vm1852, %v1836
      %1854 = vst.msk [vmem:[%s242 + $0x4] sm:$0xf] %vm1852, %v1837
      %1855 = vst.msk [vmem:[%s242 + $0x8] sm:$0xf] %vm1852, %v1838
      %1856 = vst.msk [vmem:[%s242 + $0xc] sm:$0xf] %vm1852, %v1839
      %1857 = vst.msk [vmem:[%s242 + $0x10] sm:$0xf] %vm1852, %v1840
      %1858 = vst.msk [vmem:[%s242 + $0x14] sm:$0xf] %vm1852, %v1841
      %1859 = vst.msk [vmem:[%s242 + $0x18] sm:$0xf] %vm1852, %v1842
      %1860 = vst.msk [vmem:[%s242 + $0x1c] sm:$0xf] %vm1852, %v1843
      %v1861 = vsel %vm373, %v1812, 0.0
      %v1862 = vsel %vm373, %v1813, 0.0
      %v1863 = vadd.f32 %v1861, %v1862
      %v1864 = vsel %vm373, %v1814, 0.0
      %v1865 = vadd.f32 %v1863, %v1864
      %v1866 = vsel %vm373, %v1815, 0.0
      %v1867 = vadd.f32 %v1865, %v1866
      %v1868 = vsel %vm373, %v1816, 0.0
      %v1869 = vadd.f32 %v1867, %v1868
      %v1870 = vsel %vm373, %v1817, 0.0
      %v1871 = vadd.f32 %v1869, %v1870
      %v1872 = vsel %vm373, %v1818, 0.0
      %v1873 = vadd.f32 %v1871, %v1872
      %v1874 = vsel %vm373, %v1819, 0.0
      %v1875 = vadd.f32 %v1873, %v1874
      %v1876 = vrot.slane %v1875, 4
      %v1877 = vadd.f32 %v1875, %v1876
      %v1878 = vrot.slane %v1877, 2
      %v1879 = vadd.f32 %v1877, %v1878
      %v1880 = vrot.slane %v1879, 1
      %v1881 = vadd.f32 %v1879, %v1880
      %v1882 = vmul.f32 %v1812, %v1812
      %v1883 = vmul.f32 %v1813, %v1813
      %v1884 = vmul.f32 %v1814, %v1814
      %v1885 = vmul.f32 %v1815, %v1815
      %v1886 = vmul.f32 %v1816, %v1816
      %v1887 = vmul.f32 %v1817, %v1817
      %v1888 = vmul.f32 %v1818, %v1818
      %v1889 = vmul.f32 %v1819, %v1819
      %v1890 = vsel %vm373, %v1882, 0.0
      %v1891 = vsel %vm373, %v1883, 0.0
      %v1892 = vadd.f32 %v1890, %v1891
      %v1893 = vsel %vm373, %v1884, 0.0
      %v1894 = vadd.f32 %v1892, %v1893
      %v1895 = vsel %vm373, %v1885, 0.0
      %v1896 = vadd.f32 %v1894, %v1895
      %v1897 = vsel %vm373, %v1886, 0.0
      %v1898 = vadd.f32 %v1896, %v1897
      %v1899 = vsel %vm373, %v1887, 0.0
      %v1900 = vadd.f32 %v1898, %v1899
      %v1901 = vsel %vm373, %v1888, 0.0
      %v1902 = vadd.f32 %v1900, %v1901
      %v1903 = vsel %vm373, %v1889, 0.0
      %v1904 = vadd.f32 %v1902, %v1903
      %v1905 = vrot.slane %v1904, 4
      %v1906 = vadd.f32 %v1904, %v1905
      %v1907 = vrot.slane %v1906, 2
      %v1908 = vadd.f32 %v1906, %v1907
      %v1909 = vrot.slane %v1908, 1
      %v1910 = vadd.f32 %v1908, %v1909
      %1911 = vst.msk [vmem:[%s247] sm:$0xff] %vm373, %v1881
      %1912 = vst.msk [vmem:[%s251] sm:$0xff] %vm373, %v1910
      %s1913 = smul.u32 8, %s17
      %p1914 = scmp.lt.s32.totalorder %s1913, 15
      %s1915 = scalar_select %p1914, %s1913, 15
      %s1916 = smul.addr %s1915, 4
      %s1917 = scalar_lea.vmem %s3, %s1916
      %p1918 = scmp.lt.s32.totalorder %s17, 1
      %s1919 = scalar_select %p1918, %s17, 1
      %s1920 = smul.addr %s1919, 8
      %s1921 = scalar_lea.vmem %s4, %s1920
      %p1922 = scmp.lt.s32.totalorder %s17, 1
      %s1923 = scalar_select %p1922, %s17, 1
      %s1924 = smul.addr %s1923, 8
      %s1925 = scalar_lea.vmem %s5, %s1924
      // Predicated region
      $region33: #{_lambda_.6} parent=31 // pred_check
        %p1926 = pneg %p103
      $region34: #{_lambda_.6} parent=31 // pred_check_branch
        %1928 = sbr.rel (%p1926) target = $region36
      $region35: #{_lambda_.6} parent=31 // pred_region
        %s1929 = smul.u32 8, %s17
      $region36: #{_lambda_.6} parent=31 // pred_fallthru
        _
      // Predicated region
      $region37: #{_lambda_.6} parent=31 // pred_check
        %p1930 = pneg %p129
      $region38: #{_lambda_.6} parent=31 // pred_check_branch
        %1932 = sbr.rel (%p1930) target = $region40
      $region39: #{_lambda_.6} parent=31 // pred_region
        _
      $region40: #{_lambda_.6} parent=31 // pred_fallthru
        _
      // Predicated region
      $region41: #{_lambda_.6} parent=31 // pred_check
        %p1933 = pneg %p155
      $region42: #{_lambda_.6} parent=31 // pred_check_branch
        %1935 = sbr.rel (%p1933) target = $region44
      $region43: #{_lambda_.6} parent=31 // pred_region
        _
      $region44: #{_lambda_.6} parent=31 // pred_fallthru
        _
    $region32: #{_lambda_.6} parent=5 // pred_fallthru
      _
    %p1936 = scmp.le.s32.totalorder 2, %s12
    // Predicated region
    $region45: #{_lambda_.6} parent=5 // pred_check
      %p1937 = pneg %p1936
    $region46: #{_lambda_.6} parent=5 // pred_check_branch
      %1939 = sbr.rel (%p1937) target = $region48
    $region47: #{_lambda_.6} parent=5 // pred_region
      %s1940 = ssub.s32 %s12, 2
      // Predicated region
      $region49: #{_lambda_.6} parent=47 // pred_check
        %p1941 = pneg %p109
      $region50: #{_lambda_.6} parent=47 // pred_check_branch
        %1943 = sbr.rel (%p1941) target = $region52
      $region51: #{_lambda_.6} parent=47 // pred_region
        %s1944 = smul.u32 8, %s18
        %p1945 = scmp.lt.s32.totalorder %s1944, 15
        %s1946 = scalar_select %p1945, %s1944, 15
        %s1947 = smul.addr %s1946, 4
        %s1948 = scalar_lea.vmem %s3, %s1947
      $region52: #{_lambda_.6} parent=47 // pred_fallthru
        _
      // Predicated region
      $region53: #{_lambda_.6} parent=47 // pred_check
        %p1949 = pneg %p135
      $region54: #{_lambda_.6} parent=47 // pred_check_branch
        %1951 = sbr.rel (%p1949) target = $region56
      $region55: #{_lambda_.6} parent=47 // pred_region
        %p1952 = scmp.lt.s32.totalorder %s18, 1
        %s1953 = scalar_select %p1952, %s18, 1
        %s1954 = smul.addr %s1953, 8
        %s1955 = scalar_lea.vmem %s4, %s1954
      $region56: #{_lambda_.6} parent=47 // pred_fallthru
        _
      // Predicated region
      $region57: #{_lambda_.6} parent=47 // pred_check
        %p1956 = pneg %p161
      $region58: #{_lambda_.6} parent=47 // pred_check_branch
        %1958 = sbr.rel (%p1956) target = $region60
      $region59: #{_lambda_.6} parent=47 // pred_region
        %p1959 = scmp.lt.s32.totalorder %s18, 1
        %s1960 = scalar_select %p1959, %s18, 1
        %s1961 = smul.addr %s1960, 8
        %s1962 = scalar_lea.vmem %s5, %s1961
      $region60: #{_lambda_.6} parent=47 // pred_fallthru
        _
    $region48: #{_lambda_.6} parent=5 // pred_fallthru
      _
  $region6: #{_lambda_.6} parent=0 // loop_footer
    %s16 = sadd.s32 1, %s12
  $region7: #{_lambda_.6} parent=0 // loop_footer_branch
    %11 = sbr.rel target = $region3
  $region8: #{_lambda_.6} parent=0 // loop_exit
    _

</llo_original>
